<compile_context>
chip_gen: v7x
topology: tpu7x:2x2x1
jax: 0.10.0
libtpu: 0.0.40
codegen_flags: <defaults>
</compile_context>

<pallas_src>
import functools

import jax
import jax.numpy as jnp
import numpy as np
from jax.experimental import pallas as pl
from jax.experimental.pallas import tpu as pltpu

NEG_SLOPE = 0.01   # nn.LeakyReLU default
IN_EPS = 1e-5      # nn.InstanceNorm2d default (affine=False, biased variance)


def _round_up(x, m):
    return (x + m - 1) // m * m


# ----------------------------------------------------------------------------
# Fused Pallas kernel: one sample per grid step.
# ----------------------------------------------------------------------------
def _down_block_kernel(x_ref, w1_ref, b1_ref, w2_ref, b2_ref, wr_ref, br_ref,
                       o_ref, xp_pad, h1_pad, *, hp, wp, wl):
    ws = wl + 2                      # scratch width: [pad | wl cols | pad]
    cin_p = xp_pad.shape[-1]
    cout_p = h1_pad.shape[-1]
    cnt = float(hp * wp)             # number of valid pixels per channel

    # Zero only the halo ring / right-pad columns each step (interior is
    # always fully overwritten; full-plane zeroing was pure extra vst traffic).
    def zero_halo(ref):
        c = ref.shape[-1]
        zrow = jnp.zeros((1, ws, c), ref.dtype)
        ref[pl.ds(0, 1), :, :] = zrow                       # top pad row
        ref[pl.ds(hp + 1, 1), :, :] = zrow                  # bottom pad row
        ref[:, pl.ds(0, 1), :] = jnp.zeros((hp + 2, 1, c), ref.dtype)
        ref[:, pl.ds(wp + 1, ws - wp - 1), :] = jnp.zeros(
            (hp + 2, ws - wp - 1, c), ref.dtype)            # right pad cols

    zero_halo(xp_pad)
    zero_halo(h1_pad)

    # --- fused MaxPool2d(2).  The wrapper packed the W-pair into the lane dim
    # ((hp, 2, wp, 2*Cin)), so the 4-way max needs no strided slices.
    xv = x_ref[...]                                         # bf16
    rmax = jnp.maximum(xv[:, 0], xv[:, 1])                  # (hp, wp, 2*cin_p)
    pooled = jnp.maximum(rmax[:, :, :cin_p], rmax[:, :, cin_p:])
    xp_pad[pl.ds(1, hp), pl.ds(1, wp), :] = pooled          # interior store

    # Columns >= wp of the (hp, wl, ...) working planes are garbage; mask them
    # out of the InstanceNorm statistics.
    valid_col = jax.lax.broadcasted_iota(jnp.int32, (1, wl, 1), 1) < wp

    def conv3x3(src_ref, w_ref, b_ref):
        # 'same' 3x3 conv: three dx-shifted full-height plane loads from the
        # zero-padded bf16 scratch, lane-concatenated (128-aligned channel
        # blocks) so each dy row is ONE matmul with K = 3*Ci.
        ci = src_ref.shape[-1]
        planes = [src_ref[:, pl.ds(dx, wl), :] for dx in range(3)]
        wide = jnp.concatenate(planes, axis=-1)             # (hp+2, wl, 3*ci)
        acc = b_ref[...]                                     # init acc w/ bias
        for dy in range(3):
            a = wide[dy:dy + hp].reshape(hp * wl, 3 * ci)    # free (wl % 8 == 0)
            acc = acc + jnp.dot(a, w_ref[dy],
                                preferred_element_type=jnp.float32)
        return acc.reshape(hp, wl, cout_p), planes[1]

    def inorm_lrelu(y):
        # InstanceNorm2d (biased variance, centred two-pass) + LeakyReLU, f32.
        ym = jnp.where(valid_col, y, 0.0)
        mu = jnp.sum(ym, axis=(0, 1), keepdims=True) / cnt
        d = jnp.where(valid_col, y - mu, 0.0)
        var = jnp.sum(d * d, axis=(0, 1), keepdims=True) / cnt
        yn = (y - mu) * jax.lax.rsqrt(var + IN_EPS)
        return jnp.where(yn >= 0, yn, NEG_SLOPE * yn)

    # --- conv1 + Dropout2d (identity, eval) + InstanceNorm + LeakyReLU
    y1, x_center = conv3x3(xp_pad, w1_ref, b1_ref)
    h1 = inorm_lrelu(y1)
    h1_pad[pl.ds(1, hp), pl.ds(1, wp), :] = h1[:, :wp, :].astype(h1_pad.dtype)

    # --- conv2 + InstanceNorm + LeakyReLU (h1 never leaves VMEM)
    y2, _ = conv3x3(h1_pad, w2_ref, b2_ref)
    h2 = inorm_lrelu(y2)

    # --- 1x1 residual conv on the pooled input, fused add.  Reuse conv1's
    # already-loaded centre plane: its rows 1..hp are exactly the pooled data
    # with zero pad columns.
    xin = x_center[1:1 + hp].reshape(hp * wl, cin_p)
    res = jnp.dot(xin, wr_ref[...], preferred_element_type=jnp.float32)
    res = (res + br_ref[...]).reshape(hp, wl, cout_p)

    o_ref[...] = (h2 + res).astype(o_ref.dtype)


# ----------------------------------------------------------------------------
# Wrapper: layout glue (NCHW <-> lane-dense channel-last, padding, bf16 cast).
# ----------------------------------------------------------------------------
@jax.jit
def nnunet_down_block(x, params):
    """x: (N, Cin, H, W) f32 -> (N, Cout, H//2, W//2) f32."""
    n, cin, h, w = x.shape
    cout = params["w1"].shape[0]
    hp, wp = h // 2, w // 2
    wl = _round_up(wp, 8)            # sublane-aligned working width
    cin_p = _round_up(cin, 128)      # lane-dense K (concat blocks 128-aligned)
    cout_p = _round_up(cout, 128)    # lane-dense output channels

    # Cast to bf16 FIRST (halves every subsequent wrapper pass), then layout.
    x_bf = x.astype(jnp.bfloat16)
    x_nhwc = jnp.transpose(x_bf, (0, 2, 3, 1))
    x_nhwc = jnp.pad(x_nhwc, ((0, 0), (0, 0), (0, 0), (0, cin_p - cin)))
    # Free reshape: (N, H, W, C) -> (N, hp, 2, wp, 2*C); the 2x2 pooling
    # window becomes (axis 2) x (lane halves) and is reduced in-kernel.
    x_in = x_nhwc.reshape(n, hp, 2, wp, 2 * cin_p)

    def prep_w3x3(wt, ci_p):
        # torch (Co, Ci, 3, 3) -> (3, 3*Ci_p, Co_p) bf16, K ordered [dx0|dx1|dx2].
        co, ci = wt.shape[0], wt.shape[1]
        wk = jnp.transpose(wt, (2, 3, 1, 0))                 # (3, 3, Ci, Co)
        wk = jnp.pad(wk, ((0, 0), (0, 0), (0, ci_p - ci), (0, cout_p - co)))
        return wk.reshape(3, 3 * ci_p, cout_p).astype(jnp.bfloat16)

    def prep_bias(b):
        return jnp.pad(b.reshape(1, -1),
                       ((0, 0), (0, cout_p - b.shape[0]))).astype(jnp.float32)

    w1k = prep_w3x3(params["w1"], cin_p)
    w2k = prep_w3x3(params["w2"], cout_p)
    wrk = jnp.pad(params["wr"][:, :, 0, 0].T,
                  ((0, cin_p - cin), (0, cout_p - cout))).astype(jnp.bfloat16)
    b1 = prep_bias(params["b1"])
    b2 = prep_bias(params["b2"])
    br = prep_bias(params["br"])

    kernel = functools.partial(_down_block_kernel, hp=hp, wp=wp, wl=wl)

    out = pl.pallas_call(
        kernel,
        out_shape=jax.ShapeDtypeStruct((n, hp, wl, cout_p), jnp.float32),
        grid=(n,),
        in_specs=[
            pl.BlockSpec((None, hp, 2, wp, 2 * cin_p),
                         lambda i: (i, 0, 0, 0, 0)),                     # x
            pl.BlockSpec((3, 3 * cin_p, cout_p), lambda i: (0, 0, 0)),    # w1
            pl.BlockSpec((1, cout_p), lambda i: (0, 0)),                  # b1
            pl.BlockSpec((3, 3 * cout_p, cout_p), lambda i: (0, 0, 0)),   # w2
            pl.BlockSpec((1, cout_p), lambda i: (0, 0)),                  # b2
            pl.BlockSpec((cin_p, cout_p), lambda i: (0, 0)),              # wr
            pl.BlockSpec((1, cout_p), lambda i: (0, 0)),                  # br
        ],
        out_specs=pl.BlockSpec((None, hp, wl, cout_p),
                               lambda i: (i, 0, 0, 0)),
        scratch_shapes=[
            pltpu.VMEM((hp + 2, wl + 2, cin_p), jnp.bfloat16),   # padded pooled x
            pltpu.VMEM((hp + 2, wl + 2, cout_p), jnp.bfloat16),  # padded h1
        ],
        compiler_params=pltpu.CompilerParams(
            dimension_semantics=("parallel",),
            vmem_limit_bytes=64 * 1024 * 1024),
    )(x_in, w1k, b1, w2k, b2, wrk, br)

    out = out[:, :, :wp, :cout]                      # drop pad cols / channels
    return jnp.transpose(out, (0, 3, 1, 2))          # back to NCHW


# ----------------------------------------------------------------------------
# Pure-JAX reference (for numerical verification)
# ----------------------------------------------------------------------------
def _ref_conv(x, w, b, pad):
    y = jax.lax.conv_general_dilated(
        x, w, window_strides=(1, 1), padding=((pad, pad), (pad, pad)),
        dimension_numbers=("NCHW", "OIHW", "NCHW"))
    return y + b.reshape(1, -1, 1, 1)


def ref_forward(x, params):
    N, C, H, W = x.shape
    xp = jnp.max(x.reshape(N, C, H // 2, 2, W // 2, 2), axis=(3, 5))

    def block(h, w, b):
        y = _ref_conv(h, w, b, pad=1)
        mu = jnp.mean(y, axis=(2, 3), keepdims=True)
        var = jnp.mean((y - mu) ** 2, axis=(2, 3), keepdims=True)
        y = (y - mu) * jax.lax.rsqrt(var + IN_EPS)
        return jnp.where(y >= 0, y, NEG_SLOPE * y)

    h = block(xp, params["w1"], params["b1"])
    h = block(h, params["w2"], params["b2"])
    res = _ref_conv(xp, params["wr"], params["br"], pad=0)
    return h + res


# ----------------------------------------------------------------------------
if __name__ == "__main__":
    key = jax.random.PRNGKey(0)
    N, Cin, H, W = 2, 4, 16, 16
    Cout = 8
    ks = jax.random.split(key, 7)

    x = jax.random.normal(ks[0], (N, Cin, H, W), jnp.float32)
    params = dict(
        w1=jax.random.normal(ks[1], (Cout, Cin, 3, 3), jnp.float32) * 0.1,
        b1=jax.random.normal(ks[2], (Cout,), jnp.float32) * 0.1,
        w2=jax.random.normal(ks[3], (Cout, Cout, 3, 3), jnp.float32) * 0.1,
        b2=jax.random.normal(ks[4], (Cout,), jnp.float32) * 0.1,
        wr=jax.random.normal(ks[5], (Cout, Cin, 1, 1), jnp.float32) * 0.1,
        br=jax.random.normal(ks[6], (Cout,), jnp.float32) * 0.1,
    )

    out = jax.block_until_ready(nnunet_down_block(x, params))
    assert out.shape == (N, Cout, H // 2, W // 2), out.shape

    ref = jax.block_until_ready(ref_forward(x, params))
    # Tolerance accounts for bf16 MXU operands (f32 accumulation, f32 IN math).
    np.testing.assert_allclose(np.asarray(out), np.asarray(ref),
                               atol=5e-2, rtol=5e-2)

    print("KERNEL_OK")
</pallas_src>

<mosaic_0001>
module attributes {stable_mosaic.version = 11 : i64} {
  func.func @_down_block_kernel(%arg0: i32, %arg1: memref<1x8x2x8x256xbf16, #tpu.memory_space<vmem>>, %arg2: memref<3x384x128xbf16, #tpu.memory_space<vmem>>, %arg3: memref<1x128xf32, #tpu.memory_space<vmem>>, %arg4: memref<3x384x128xbf16, #tpu.memory_space<vmem>>, %arg5: memref<1x128xf32, #tpu.memory_space<vmem>>, %arg6: memref<128x128xbf16, #tpu.memory_space<vmem>>, %arg7: memref<1x128xf32, #tpu.memory_space<vmem>>, %arg8: memref<1x8x8x128xf32, #tpu.memory_space<vmem>>, %arg9: memref<10x10x128xbf16, #tpu.memory_space<vmem>>, %arg10: memref<10x10x128xbf16, #tpu.memory_space<vmem>>) attributes {dimension_semantics = [#tpu.dimension_semantics<parallel>], iteration_bounds = array<i64: 2>, scalar_prefetch = 0 : i64, scratch_operands = 2 : i64, tpu.core_type = #tpu.core_type<tc>, window_params = [{transform_indices = @transform_0, window_bounds = array<i64: 1, 8, 2, 8, 256>}, {pipeline_mode = #tpu.pipeline_mode<synchronous>, transform_indices = @transform_1, window_bounds = array<i64: 3, 384, 128>}, {pipeline_mode = #tpu.pipeline_mode<synchronous>, transform_indices = @transform_2, window_bounds = array<i64: 1, 128>}, {pipeline_mode = #tpu.pipeline_mode<synchronous>, transform_indices = @transform_3, window_bounds = array<i64: 3, 384, 128>}, {pipeline_mode = #tpu.pipeline_mode<synchronous>, transform_indices = @transform_4, window_bounds = array<i64: 1, 128>}, {pipeline_mode = #tpu.pipeline_mode<synchronous>, transform_indices = @transform_5, window_bounds = array<i64: 128, 128>}, {pipeline_mode = #tpu.pipeline_mode<synchronous>, transform_indices = @transform_6, window_bounds = array<i64: 1, 128>}, {transform_indices = @transform_7, window_bounds = array<i64: 1, 8, 8, 128>}]} {
    %cst = arith.constant 0.000000e+00 : bf16
    %0 = vector.broadcast %cst : bf16 to vector<1x10x128xbf16>
    %c0 = arith.constant 0 : index
    %c0_0 = arith.constant 0 : index
    %c0_1 = arith.constant 0 : index
    %1 = vector.load %arg9[%c0, %c0_0, %c0_1] : memref<10x10x128xbf16, #tpu.memory_space<vmem>>, vector<1x10x128xbf16>
    tpu.vector_store %arg9[%c0, %c0_0, %c0_1], %0 {strides = array<i32>} : memref<10x10x128xbf16, #tpu.memory_space<vmem>>, vector<1x10x128xbf16>,
    %c9 = arith.constant 9 : index
    %c0_2 = arith.constant 0 : index
    %c0_3 = arith.constant 0 : index
    %2 = vector.load %arg9[%c9, %c0_2, %c0_3] : memref<10x10x128xbf16, #tpu.memory_space<vmem>>, vector<1x10x128xbf16>
    tpu.vector_store %arg9[%c9, %c0_2, %c0_3], %0 {strides = array<i32>} : memref<10x10x128xbf16, #tpu.memory_space<vmem>>, vector<1x10x128xbf16>,
    %cst_4 = arith.constant 0.000000e+00 : bf16
    %3 = vector.broadcast %cst_4 : bf16 to vector<10x1x128xbf16>
    %c0_5 = arith.constant 0 : index
    %c0_6 = arith.constant 0 : index
    %c0_7 = arith.constant 0 : index
    %4 = vector.load %arg9[%c0_5, %c0_6, %c0_7] : memref<10x10x128xbf16, #tpu.memory_space<vmem>>, vector<10x1x128xbf16>
    tpu.vector_store %arg9[%c0_5, %c0_6, %c0_7], %3 {strides = array<i32>} : memref<10x10x128xbf16, #tpu.memory_space<vmem>>, vector<10x1x128xbf16>,
    %cst_8 = arith.constant 0.000000e+00 : bf16
    %5 = vector.broadcast %cst_8 : bf16 to vector<10x1x128xbf16>
    %c0_9 = arith.constant 0 : index
    %c9_10 = arith.constant 9 : index
    %c0_11 = arith.constant 0 : index
    %6 = vector.load %arg9[%c0_9, %c9_10, %c0_11] : memref<10x10x128xbf16, #tpu.memory_space<vmem>>, vector<10x1x128xbf16>
    tpu.vector_store %arg9[%c0_9, %c9_10, %c0_11], %5 {strides = array<i32>} : memref<10x10x128xbf16, #tpu.memory_space<vmem>>, vector<10x1x128xbf16>,
    %cst_12 = arith.constant 0.000000e+00 : bf16
    %7 = vector.broadcast %cst_12 : bf16 to vector<1x10x128xbf16>
    %c0_13 = arith.constant 0 : index
    %c0_14 = arith.constant 0 : index
    %c0_15 = arith.constant 0 : index
    %8 = vector.load %arg10[%c0_13, %c0_14, %c0_15] : memref<10x10x128xbf16, #tpu.memory_space<vmem>>, vector<1x10x128xbf16>
    tpu.vector_store %arg10[%c0_13, %c0_14, %c0_15], %7 {strides = array<i32>} : memref<10x10x128xbf16, #tpu.memory_space<vmem>>, vector<1x10x128xbf16>,
    %c9_16 = arith.constant 9 : index
    %c0_17 = arith.constant 0 : index
    %c0_18 = arith.constant 0 : index
    %9 = vector.load %arg10[%c9_16, %c0_17, %c0_18] : memref<10x10x128xbf16, #tpu.memory_space<vmem>>, vector<1x10x128xbf16>
    tpu.vector_store %arg10[%c9_16, %c0_17, %c0_18], %7 {strides = array<i32>} : memref<10x10x128xbf16, #tpu.memory_space<vmem>>, vector<1x10x128xbf16>,
    %cst_19 = arith.constant 0.000000e+00 : bf16
    %10 = vector.broadcast %cst_19 : bf16 to vector<10x1x128xbf16>
    %c0_20 = arith.constant 0 : index
    %c0_21 = arith.constant 0 : index
    %c0_22 = arith.constant 0 : index
    %11 = vector.load %arg10[%c0_20, %c0_21, %c0_22] : memref<10x10x128xbf16, #tpu.memory_space<vmem>>, vector<10x1x128xbf16>
    tpu.vector_store %arg10[%c0_20, %c0_21, %c0_22], %10 {strides = array<i32>} : memref<10x10x128xbf16, #tpu.memory_space<vmem>>, vector<10x1x128xbf16>,
    %cst_23 = arith.constant 0.000000e+00 : bf16
    %12 = vector.broadcast %cst_23 : bf16 to vector<10x1x128xbf16>
    %c0_24 = arith.constant 0 : index
    %c9_25 = arith.constant 9 : index
    %c0_26 = arith.constant 0 : index
    %13 = vector.load %arg10[%c0_24, %c9_25, %c0_26] : memref<10x10x128xbf16, #tpu.memory_space<vmem>>, vector<10x1x128xbf16>
    tpu.vector_store %arg10[%c0_24, %c9_25, %c0_26], %12 {strides = array<i32>} : memref<10x10x128xbf16, #tpu.memory_space<vmem>>, vector<10x1x128xbf16>,
    %c0_27 = arith.constant 0 : index
    %c0_28 = arith.constant 0 : index
    %c0_29 = arith.constant 0 : index
    %c0_30 = arith.constant 0 : index
    %c0_31 = arith.constant 0 : index
    %14 = vector.load %arg1[%c0_27, %c0_28, %c0_29, %c0_30, %c0_31] : memref<1x8x2x8x256xbf16, #tpu.memory_space<vmem>>, vector<1x8x2x8x256xbf16>
    %15 = vector.shape_cast %14 : vector<1x8x2x8x256xbf16> to vector<8x2x8x256xbf16>
    %16 = vector.extract_strided_slice %15 {offsets = [0, 0, 0, 0], sizes = [8, 1, 8, 256], strides = [1, 1, 1, 1]} : vector<8x2x8x256xbf16> to vector<8x1x8x256xbf16>
    %17 = vector.shape_cast %16 : vector<8x1x8x256xbf16> to vector<8x8x256xbf16>
    %18 = vector.extract_strided_slice %15 {offsets = [0, 1, 0, 0], sizes = [8, 1, 8, 256], strides = [1, 1, 1, 1]} : vector<8x2x8x256xbf16> to vector<8x1x8x256xbf16>
    %19 = vector.shape_cast %18 : vector<8x1x8x256xbf16> to vector<8x8x256xbf16>
    %20 = arith.maximumf %17, %19 : vector<8x8x256xbf16>
    %21 = vector.extract_strided_slice %20 {offsets = [0, 0, 0], sizes = [8, 8, 128], strides = [1, 1, 1]} : vector<8x8x256xbf16> to vector<8x8x128xbf16>
    %22 = vector.extract_strided_slice %20 {offsets = [0, 0, 128], sizes = [8, 8, 128], strides = [1, 1, 1]} : vector<8x8x256xbf16> to vector<8x8x128xbf16>
    %23 = arith.maximumf %21, %22 : vector<8x8x128xbf16>
    %c1 = arith.constant 1 : index
    %c1_32 = arith.constant 1 : index
    %c0_33 = arith.constant 0 : index
    %24 = vector.load %arg9[%c1, %c1_32, %c0_33] : memref<10x10x128xbf16, #tpu.memory_space<vmem>>, vector<8x8x128xbf16>
    tpu.vector_store %arg9[%c1, %c1_32, %c0_33], %23 {strides = array<i32>} : memref<10x10x128xbf16, #tpu.memory_space<vmem>>, vector<8x8x128xbf16>,
    %25 = tpu.iota {dimensions = array<i32: 1>} : vector<1x8x1xi32>
    %c8_i32 = arith.constant 8 : i32
    %26 = vector.broadcast %c8_i32 : i32 to vector<1x8x1xi32>
    %27 = arith.cmpi slt, %25, %26 : vector<1x8x1xi32>
    %c0_34 = arith.constant 0 : index
    %c0_35 = arith.constant 0 : index
    %c0_36 = arith.constant 0 : index
    %28 = vector.load %arg9[%c0_34, %c0_35, %c0_36] : memref<10x10x128xbf16, #tpu.memory_space<vmem>>, vector<10x8x128xbf16>
    %c0_37 = arith.constant 0 : index
    %c1_38 = arith.constant 1 : index
    %c0_39 = arith.constant 0 : index
    %29 = vector.load %arg9[%c0_37, %c1_38, %c0_39] : memref<10x10x128xbf16, #tpu.memory_space<vmem>>, vector<10x8x128xbf16>
    %c0_40 = arith.constant 0 : index
    %c2 = arith.constant 2 : index
    %c0_41 = arith.constant 0 : index
    %30 = vector.load %arg9[%c0_40, %c2, %c0_41] : memref<10x10x128xbf16, #tpu.memory_space<vmem>>, vector<10x8x128xbf16>
    %31 = tpu.concatenate %28, %29, %30 in 2 : vector<10x8x128xbf16>, vector<10x8x128xbf16>, vector<10x8x128xbf16> -> vector<10x8x384xbf16>
    %c0_42 = arith.constant 0 : index
    %c0_43 = arith.constant 0 : index
    %32 = vector.load %arg3[%c0_42, %c0_43] : memref<1x128xf32, #tpu.memory_space<vmem>>, vector<1x128xf32>
    %33 = vector.extract_strided_slice %31 {offsets = [0, 0, 0], sizes = [8, 8, 384], strides = [1, 1, 1]} : vector<10x8x384xbf16> to vector<8x8x384xbf16>
    %34 = vector.shape_cast %33 : vector<8x8x384xbf16> to vector<64x384xbf16>
    %c0_44 = arith.constant 0 : index
    %c0_45 = arith.constant 0 : index
    %c0_46 = arith.constant 0 : index
    %35 = vector.load %arg2[%c0_44, %c0_45, %c0_46] : memref<3x384x128xbf16, #tpu.memory_space<vmem>>, vector<1x384x128xbf16>
    %36 = vector.shape_cast %35 : vector<1x384x128xbf16> to vector<384x128xbf16>
    %cst_47 = arith.constant dense<0.000000e+00> : vector<64x128xf32>
    %37 = tpu.matmul %34, %36, %cst_47 {dimension_numbers = #tpu.dot_dimension_numbers<[1], [0], [0], [1], [0, 0, 1, 1], [], []>} : vector<64x384xbf16>, vector<384x128xbf16>, vector<64x128xf32> -> vector<64x128xf32>
    %38 = vector.broadcast %32 : vector<1x128xf32> to vector<64x128xf32>
    %39 = arith.addf %38, %37 : vector<64x128xf32>
    %40 = vector.extract_strided_slice %31 {offsets = [1, 0, 0], sizes = [8, 8, 384], strides = [1, 1, 1]} : vector<10x8x384xbf16> to vector<8x8x384xbf16>
    %41 = vector.shape_cast %40 : vector<8x8x384xbf16> to vector<64x384xbf16>
    %c1_48 = arith.constant 1 : index
    %c0_49 = arith.constant 0 : index
    %c0_50 = arith.constant 0 : index
    %42 = vector.load %arg2[%c1_48, %c0_49, %c0_50] : memref<3x384x128xbf16, #tpu.memory_space<vmem>>, vector<1x384x128xbf16>
    %43 = vector.shape_cast %42 : vector<1x384x128xbf16> to vector<384x128xbf16>
    %cst_51 = arith.constant dense<0.000000e+00> : vector<64x128xf32>
    %44 = tpu.matmul %41, %43, %cst_51 {dimension_numbers = #tpu.dot_dimension_numbers<[1], [0], [0], [1], [0, 0, 1, 1], [], []>} : vector<64x384xbf16>, vector<384x128xbf16>, vector<64x128xf32> -> vector<64x128xf32>
    %45 = arith.addf %39, %44 : vector<64x128xf32>
    %46 = vector.extract_strided_slice %31 {offsets = [2, 0, 0], sizes = [8, 8, 384], strides = [1, 1, 1]} : vector<10x8x384xbf16> to vector<8x8x384xbf16>
    %47 = vector.shape_cast %46 : vector<8x8x384xbf16> to vector<64x384xbf16>
    %c2_52 = arith.constant 2 : index
    %c0_53 = arith.constant 0 : index
    %c0_54 = arith.constant 0 : index
    %48 = vector.load %arg2[%c2_52, %c0_53, %c0_54] : memref<3x384x128xbf16, #tpu.memory_space<vmem>>, vector<1x384x128xbf16>
    %49 = vector.shape_cast %48 : vector<1x384x128xbf16> to vector<384x128xbf16>
    %cst_55 = arith.constant dense<0.000000e+00> : vector<64x128xf32>
    %50 = tpu.matmul %47, %49, %cst_55 {dimension_numbers = #tpu.dot_dimension_numbers<[1], [0], [0], [1], [0, 0, 1, 1], [], []>} : vector<64x384xbf16>, vector<384x128xbf16>, vector<64x128xf32> -> vector<64x128xf32>
    %51 = arith.addf %45, %50 : vector<64x128xf32>
    %52 = vector.shape_cast %51 : vector<64x128xf32> to vector<8x8x128xf32>
    %cst_56 = arith.constant 0.000000e+00 : f32
    %53 = vector.shape_cast %27 : vector<1x8x1xi1> to vector<1x8x1xi1>
    %54 = vector.broadcast %53 : vector<1x8x1xi1> to vector<8x8x128xi1>
    %55 = vector.broadcast %cst_56 : f32 to vector<8x8x128xf32>
    %56 = arith.select %54, %52, %55 : vector<8x8x128xi1>, vector<8x8x128xf32>
    %cst_57 = arith.constant dense<0.000000e+00> : vector<128xf32>
    %57 = vector.multi_reduction <add>, %56, %cst_57 [0, 1] : vector<8x8x128xf32> to vector<128xf32>
    %58 = vector.shape_cast %57 : vector<128xf32> to vector<1x1x128xf32>
    %cst_58 = arith.constant 6.400000e+01 : f32
    %59 = vector.broadcast %cst_58 : f32 to vector<1x1x128xf32>
    %60 = arith.divf %58, %59 : vector<1x1x128xf32>
    %61 = vector.broadcast %60 : vector<1x1x128xf32> to vector<8x8x128xf32>
    %62 = arith.subf %52, %61 : vector<8x8x128xf32>
    %cst_59 = arith.constant 0.000000e+00 : f32
    %63 = vector.shape_cast %27 : vector<1x8x1xi1> to vector<1x8x1xi1>
    %64 = vector.broadcast %63 : vector<1x8x1xi1> to vector<8x8x128xi1>
    %65 = vector.broadcast %cst_59 : f32 to vector<8x8x128xf32>
    %66 = arith.select %64, %62, %65 : vector<8x8x128xi1>, vector<8x8x128xf32>
    %67 = arith.mulf %66, %66 : vector<8x8x128xf32>
    %cst_60 = arith.constant dense<0.000000e+00> : vector<128xf32>
    %68 = vector.multi_reduction <add>, %67, %cst_60 [0, 1] : vector<8x8x128xf32> to vector<128xf32>
    %69 = vector.shape_cast %68 : vector<128xf32> to vector<1x1x128xf32>
    %cst_61 = arith.constant 6.400000e+01 : f32
    %70 = vector.broadcast %cst_61 : f32 to vector<1x1x128xf32>
    %71 = arith.divf %69, %70 : vector<1x1x128xf32>
    %72 = vector.broadcast %60 : vector<1x1x128xf32> to vector<8x8x128xf32>
    %73 = arith.subf %52, %72 : vector<8x8x128xf32>
    %cst_62 = arith.constant 9.99999974E-6 : f32
    %74 = vector.broadcast %cst_62 : f32 to vector<1x1x128xf32>
    %75 = arith.addf %71, %74 : vector<1x1x128xf32>
    %76 = math.rsqrt %75 : vector<1x1x128xf32>
    %77 = vector.broadcast %76 : vector<1x1x128xf32> to vector<8x8x128xf32>
    %78 = arith.mulf %73, %77 : vector<8x8x128xf32>
    %cst_63 = arith.constant 0.000000e+00 : f32
    %79 = vector.broadcast %cst_63 : f32 to vector<8x8x128xf32>
    %80 = arith.cmpf oge, %78, %79 : vector<8x8x128xf32>
    %cst_64 = arith.constant 0.00999999977 : f32
    %81 = vector.broadcast %cst_64 : f32 to vector<8x8x128xf32>
    %82 = arith.mulf %81, %78 : vector<8x8x128xf32>
    %83 = arith.select %80, %78, %82 : vector<8x8x128xi1>, vector<8x8x128xf32>
    %84 = arith.truncf %83 : vector<8x8x128xf32> to vector<8x8x128xbf16>
    %c1_65 = arith.constant 1 : index
    %c1_66 = arith.constant 1 : index
    %c0_67 = arith.constant 0 : index
    %85 = vector.load %arg10[%c1_65, %c1_66, %c0_67] : memref<10x10x128xbf16, #tpu.memory_space<vmem>>, vector<8x8x128xbf16>
    tpu.vector_store %arg10[%c1_65, %c1_66, %c0_67], %84 {strides = array<i32>} : memref<10x10x128xbf16, #tpu.memory_space<vmem>>, vector<8x8x128xbf16>,
    %c0_68 = arith.constant 0 : index
    %c0_69 = arith.constant 0 : index
    %c0_70 = arith.constant 0 : index
    %86 = vector.load %arg10[%c0_68, %c0_69, %c0_70] : memref<10x10x128xbf16, #tpu.memory_space<vmem>>, vector<10x8x128xbf16>
    %c0_71 = arith.constant 0 : index
    %c1_72 = arith.constant 1 : index
    %c0_73 = arith.constant 0 : index
    %87 = vector.load %arg10[%c0_71, %c1_72, %c0_73] : memref<10x10x128xbf16, #tpu.memory_space<vmem>>, vector<10x8x128xbf16>
    %c0_74 = arith.constant 0 : index
    %c2_75 = arith.constant 2 : index
    %c0_76 = arith.constant 0 : index
    %88 = vector.load %arg10[%c0_74, %c2_75, %c0_76] : memref<10x10x128xbf16, #tpu.memory_space<vmem>>, vector<10x8x128xbf16>
    %89 = tpu.concatenate %86, %87, %88 in 2 : vector<10x8x128xbf16>, vector<10x8x128xbf16>, vector<10x8x128xbf16> -> vector<10x8x384xbf16>
    %c0_77 = arith.constant 0 : index
    %c0_78 = arith.constant 0 : index
    %90 = vector.load %arg5[%c0_77, %c0_78] : memref<1x128xf32, #tpu.memory_space<vmem>>, vector<1x128xf32>
    %91 = vector.extract_strided_slice %89 {offsets = [0, 0, 0], sizes = [8, 8, 384], strides = [1, 1, 1]} : vector<10x8x384xbf16> to vector<8x8x384xbf16>
    %92 = vector.shape_cast %91 : vector<8x8x384xbf16> to vector<64x384xbf16>
    %c0_79 = arith.constant 0 : index
    %c0_80 = arith.constant 0 : index
    %c0_81 = arith.constant 0 : index
    %93 = vector.load %arg4[%c0_79, %c0_80, %c0_81] : memref<3x384x128xbf16, #tpu.memory_space<vmem>>, vector<1x384x128xbf16>
    %94 = vector.shape_cast %93 : vector<1x384x128xbf16> to vector<384x128xbf16>
    %cst_82 = arith.constant dense<0.000000e+00> : vector<64x128xf32>
    %95 = tpu.matmul %92, %94, %cst_82 {dimension_numbers = #tpu.dot_dimension_numbers<[1], [0], [0], [1], [0, 0, 1, 1], [], []>} : vector<64x384xbf16>, vector<384x128xbf16>, vector<64x128xf32> -> vector<64x128xf32>
    %96 = vector.broadcast %90 : vector<1x128xf32> to vector<64x128xf32>
    %97 = arith.addf %96, %95 : vector<64x128xf32>
    %98 = vector.extract_strided_slice %89 {offsets = [1, 0, 0], sizes = [8, 8, 384], strides = [1, 1, 1]} : vector<10x8x384xbf16> to vector<8x8x384xbf16>
    %99 = vector.shape_cast %98 : vector<8x8x384xbf16> to vector<64x384xbf16>
    %c1_83 = arith.constant 1 : index
    %c0_84 = arith.constant 0 : index
    %c0_85 = arith.constant 0 : index
    %100 = vector.load %arg4[%c1_83, %c0_84, %c0_85] : memref<3x384x128xbf16, #tpu.memory_space<vmem>>, vector<1x384x128xbf16>
    %101 = vector.shape_cast %100 : vector<1x384x128xbf16> to vector<384x128xbf16>
    %cst_86 = arith.constant dense<0.000000e+00> : vector<64x128xf32>
    %102 = tpu.matmul %99, %101, %cst_86 {dimension_numbers = #tpu.dot_dimension_numbers<[1], [0], [0], [1], [0, 0, 1, 1], [], []>} : vector<64x384xbf16>, vector<384x128xbf16>, vector<64x128xf32> -> vector<64x128xf32>
    %103 = arith.addf %97, %102 : vector<64x128xf32>
    %104 = vector.extract_strided_slice %89 {offsets = [2, 0, 0], sizes = [8, 8, 384], strides = [1, 1, 1]} : vector<10x8x384xbf16> to vector<8x8x384xbf16>
    %105 = vector.shape_cast %104 : vector<8x8x384xbf16> to vector<64x384xbf16>
    %c2_87 = arith.constant 2 : index
    %c0_88 = arith.constant 0 : index
    %c0_89 = arith.constant 0 : index
    %106 = vector.load %arg4[%c2_87, %c0_88, %c0_89] : memref<3x384x128xbf16, #tpu.memory_space<vmem>>, vector<1x384x128xbf16>
    %107 = vector.shape_cast %106 : vector<1x384x128xbf16> to vector<384x128xbf16>
    %cst_90 = arith.constant dense<0.000000e+00> : vector<64x128xf32>
    %108 = tpu.matmul %105, %107, %cst_90 {dimension_numbers = #tpu.dot_dimension_numbers<[1], [0], [0], [1], [0, 0, 1, 1], [], []>} : vector<64x384xbf16>, vector<384x128xbf16>, vector<64x128xf32> -> vector<64x128xf32>
    %109 = arith.addf %103, %108 : vector<64x128xf32>
    %110 = vector.shape_cast %109 : vector<64x128xf32> to vector<8x8x128xf32>
    %cst_91 = arith.constant 0.000000e+00 : f32
    %111 = vector.shape_cast %27 : vector<1x8x1xi1> to vector<1x8x1xi1>
    %112 = vector.broadcast %111 : vector<1x8x1xi1> to vector<8x8x128xi1>
    %113 = vector.broadcast %cst_91 : f32 to vector<8x8x128xf32>
    %114 = arith.select %112, %110, %113 : vector<8x8x128xi1>, vector<8x8x128xf32>
    %cst_92 = arith.constant dense<0.000000e+00> : vector<128xf32>
    %115 = vector.multi_reduction <add>, %114, %cst_92 [0, 1] : vector<8x8x128xf32> to vector<128xf32>
    %116 = vector.shape_cast %115 : vector<128xf32> to vector<1x1x128xf32>
    %cst_93 = arith.constant 6.400000e+01 : f32
    %117 = vector.broadcast %cst_93 : f32 to vector<1x1x128xf32>
    %118 = arith.divf %116, %117 : vector<1x1x128xf32>
    %119 = vector.broadcast %118 : vector<1x1x128xf32> to vector<8x8x128xf32>
    %120 = arith.subf %110, %119 : vector<8x8x128xf32>
    %cst_94 = arith.constant 0.000000e+00 : f32
    %121 = vector.shape_cast %27 : vector<1x8x1xi1> to vector<1x8x1xi1>
    %122 = vector.broadcast %121 : vector<1x8x1xi1> to vector<8x8x128xi1>
    %123 = vector.broadcast %cst_94 : f32 to vector<8x8x128xf32>
    %124 = arith.select %122, %120, %123 : vector<8x8x128xi1>, vector<8x8x128xf32>
    %125 = arith.mulf %124, %124 : vector<8x8x128xf32>
    %cst_95 = arith.constant dense<0.000000e+00> : vector<128xf32>
    %126 = vector.multi_reduction <add>, %125, %cst_95 [0, 1] : vector<8x8x128xf32> to vector<128xf32>
    %127 = vector.shape_cast %126 : vector<128xf32> to vector<1x1x128xf32>
    %cst_96 = arith.constant 6.400000e+01 : f32
    %128 = vector.broadcast %cst_96 : f32 to vector<1x1x128xf32>
    %129 = arith.divf %127, %128 : vector<1x1x128xf32>
    %130 = vector.broadcast %118 : vector<1x1x128xf32> to vector<8x8x128xf32>
    %131 = arith.subf %110, %130 : vector<8x8x128xf32>
    %cst_97 = arith.constant 9.99999974E-6 : f32
    %132 = vector.broadcast %cst_97 : f32 to vector<1x1x128xf32>
    %133 = arith.addf %129, %132 : vector<1x1x128xf32>
    %134 = math.rsqrt %133 : vector<1x1x128xf32>
    %135 = vector.broadcast %134 : vector<1x1x128xf32> to vector<8x8x128xf32>
    %136 = arith.mulf %131, %135 : vector<8x8x128xf32>
    %cst_98 = arith.constant 0.000000e+00 : f32
    %137 = vector.broadcast %cst_98 : f32 to vector<8x8x128xf32>
    %138 = arith.cmpf oge, %136, %137 : vector<8x8x128xf32>
    %cst_99 = arith.constant 0.00999999977 : f32
    %139 = vector.broadcast %cst_99 : f32 to vector<8x8x128xf32>
    %140 = arith.mulf %139, %136 : vector<8x8x128xf32>
    %141 = arith.select %138, %136, %140 : vector<8x8x128xi1>, vector<8x8x128xf32>
    %142 = vector.extract_strided_slice %29 {offsets = [1, 0, 0], sizes = [8, 8, 128], strides = [1, 1, 1]} : vector<10x8x128xbf16> to vector<8x8x128xbf16>
    %143 = vector.shape_cast %142 : vector<8x8x128xbf16> to vector<64x128xbf16>
    %c0_100 = arith.constant 0 : index
    %c0_101 = arith.constant 0 : index
    %144 = vector.load %arg6[%c0_100, %c0_101] : memref<128x128xbf16, #tpu.memory_space<vmem>>, vector<128x128xbf16>
    %cst_102 = arith.constant dense<0.000000e+00> : vector<64x128xf32>
    %145 = tpu.matmul %143, %144, %cst_102 {dimension_numbers = #tpu.dot_dimension_numbers<[1], [0], [0], [1], [0, 0, 1, 1], [], []>} : vector<64x128xbf16>, vector<128x128xbf16>, vector<64x128xf32> -> vector<64x128xf32>
    %c0_103 = arith.constant 0 : index
    %c0_104 = arith.constant 0 : index
    %146 = vector.load %arg7[%c0_103, %c0_104] : memref<1x128xf32, #tpu.memory_space<vmem>>, vector<1x128xf32>
    %147 = vector.broadcast %146 : vector<1x128xf32> to vector<64x128xf32>
    %148 = arith.addf %145, %147 : vector<64x128xf32>
    %149 = vector.shape_cast %148 : vector<64x128xf32> to vector<8x8x128xf32>
    %150 = arith.addf %141, %149 : vector<8x8x128xf32>
    %c0_105 = arith.constant 0 : index
    %c0_106 = arith.constant 0 : index
    %c0_107 = arith.constant 0 : index
    %c0_108 = arith.constant 0 : index
    %151 = vector.load %arg8[%c0_105, %c0_106, %c0_107, %c0_108] : memref<1x8x8x128xf32, #tpu.memory_space<vmem>>, vector<1x8x8x128xf32>
    %152 = vector.shape_cast %151 : vector<1x8x8x128xf32> to vector<8x8x128xf32>
    %153 = vector.shape_cast %150 : vector<8x8x128xf32> to vector<1x8x8x128xf32>
    tpu.vector_store %arg8[%c0_105, %c0_106, %c0_107, %c0_108], %153 {strides = array<i32>} : memref<1x8x8x128xf32, #tpu.memory_space<vmem>>, vector<1x8x8x128xf32>,
    return
  }
  func.func @transform_0(%arg0: i32) -> (i32, i32, i32, i32, i32) {
    %c0_i32 = arith.constant 0 : i32
    %c0_i32_0 = arith.constant 0 : i32
    %c0_i32_1 = arith.constant 0 : i32
    %c0_i32_2 = arith.constant 0 : i32
    %c0_i32_3 = arith.constant 0 : i32
    return %arg0, %c0_i32, %c0_i32_0, %c0_i32_1, %c0_i32_2 : i32, i32, i32, i32, i32
  }
  func.func @transform_1(%arg0: i32) -> (i32, i32, i32) {
    %c0_i32 = arith.constant 0 : i32
    %c0_i32_0 = arith.constant 0 : i32
    %c0_i32_1 = arith.constant 0 : i32
    %c0_i32_2 = arith.constant 0 : i32
    return %c0_i32, %c0_i32_0, %c0_i32_1 : i32, i32, i32
  }
  func.func @transform_2(%arg0: i32) -> (i32, i32) {
    %c0_i32 = arith.constant 0 : i32
    %c0_i32_0 = arith.constant 0 : i32
    %c0_i32_1 = arith.constant 0 : i32
    return %c0_i32, %c0_i32_0 : i32, i32
  }
  func.func @transform_3(%arg0: i32) -> (i32, i32, i32) {
    %c0_i32 = arith.constant 0 : i32
    %c0_i32_0 = arith.constant 0 : i32
    %c0_i32_1 = arith.constant 0 : i32
    %c0_i32_2 = arith.constant 0 : i32
    return %c0_i32, %c0_i32_0, %c0_i32_1 : i32, i32, i32
  }
  func.func @transform_4(%arg0: i32) -> (i32, i32) {
    %c0_i32 = arith.constant 0 : i32
    %c0_i32_0 = arith.constant 0 : i32
    %c0_i32_1 = arith.constant 0 : i32
    return %c0_i32, %c0_i32_0 : i32, i32
  }
  func.func @transform_5(%arg0: i32) -> (i32, i32) {
    %c0_i32 = arith.constant 0 : i32
    %c0_i32_0 = arith.constant 0 : i32
    %c0_i32_1 = arith.constant 0 : i32
    return %c0_i32, %c0_i32_0 : i32, i32
  }
  func.func @transform_6(%arg0: i32) -> (i32, i32) {
    %c0_i32 = arith.constant 0 : i32
    %c0_i32_0 = arith.constant 0 : i32
    %c0_i32_1 = arith.constant 0 : i32
    return %c0_i32, %c0_i32_0 : i32, i32
  }
  func.func @transform_7(%arg0: i32) -> (i32, i32, i32, i32) {
    %c0_i32 = arith.constant 0 : i32
    %c0_i32_0 = arith.constant 0 : i32
    %c0_i32_1 = arith.constant 0 : i32
    %c0_i32_2 = arith.constant 0 : i32
    return %arg0, %c0_i32, %c0_i32_0, %c0_i32_1 : i32, i32, i32, i32
  }
}

</mosaic_0001>

<llo_original>
// kernel: nnunet_down_block.1
$region0: #{nnunet_down_block.1}
  #allocation0 [shape = 'u32[]', space=smem, size = 0x4, offset = 0x4, fixed_abs, tag = 'smem constant byte address 0x4 - core index']
  #allocation1 [shape = 'u32[144,128]{1,0:T(1,128)}', space=vmem, size = 0x12000, scoped, tag = 'internal scratch']
  #allocation2 [shape = 'bf16[10,10,128]{2,1,0:T(8,128)(2,1)}', space=vmem, size = 0xa000, scoped, tag = 'scratch operand']
  #allocation3 [shape = 'bf16[10,10,128]{2,1,0:T(8,128)(2,1)}', space=vmem, size = 0xa000, scoped, tag = 'scratch operand']
  %s0 = inlined_call_operand.hbm [shape: bf16[2,8,2,8,256], index: 0, kind: input, shape index: {}]
  %s1 = inlined_call_operand.hbm [shape: bf16[3,384,128], index: 1, kind: input, shape index: {}]
  %s2 = inlined_call_operand.hbm [shape: f32[1,128], index: 2, kind: input, shape index: {}]
  %s3 = inlined_call_operand.hbm [shape: bf16[3,384,128], index: 3, kind: input, shape index: {}]
  %s4 = inlined_call_operand.hbm [shape: f32[1,128], index: 4, kind: input, shape index: {}]
  %s5 = inlined_call_operand.hbm [shape: bf16[128,128], index: 5, kind: input, shape index: {}]
  %s6 = inlined_call_operand.hbm [shape: f32[1,128], index: 6, kind: input, shape index: {}]
  %s7 = inlined_call_operand.hbm [shape: f32[2,8,8,128], index: 7, kind: output, shape index: {}]
  %s8 = sld [smem:[#allocation0]]
  $region89: #{nnunet_down_block.1} parent=0
    _
  %s10 = ssub.s32 1, %s8
  %s11 = scalar_select 0, %s10, %s8
  $region1: #{nnunet_down_block.1} parent=0
    #allocation4 [shape = 'u8[131072]{0}', space=vmem, size = 0x20000, scoped, tag = 'input window, operand 0']
    #allocation5 [shape = 's32[2]{0}', space=sflag, size = 0x8, scoped, tag = 'scoped memory for nnunet_down_block.1']
    #allocation6 [shape = 's32[2]{0}', space=sflag, size = 0x8, scoped, tag = 'scoped memory for nnunet_down_block.1']
    #allocation7 [shape = 'u8[294912]{0}', space=vmem, size = 0x48000, scoped, tag = 'input window, operand 1, single buffered']
    #allocation8 [shape = 's32[1]{0}', space=sflag, size = 0x4, scoped, tag = 'scoped memory for nnunet_down_block.1']
    #allocation9 [shape = 'u8[512]{0}', space=vmem, size = 0x400, scoped, tag = 'input window, operand 2, single buffered']
    #allocation10 [shape = 'u8[294912]{0}', space=vmem, size = 0x48000, scoped, tag = 'input window, operand 3, single buffered']
    #allocation11 [shape = 's32[1]{0}', space=sflag, size = 0x4, scoped, tag = 'scoped memory for nnunet_down_block.1']
    #allocation12 [shape = 'u8[512]{0}', space=vmem, size = 0x400, scoped, tag = 'input window, operand 4, single buffered']
    #allocation13 [shape = 'u8[32768]{0}', space=vmem, size = 0x8000, scoped, tag = 'input window, operand 5, single buffered']
    #allocation14 [shape = 's32[1]{0}', space=sflag, size = 0x4, scoped, tag = 'scoped memory for nnunet_down_block.1']
    #allocation15 [shape = 'u8[512]{0}', space=vmem, size = 0x400, scoped, tag = 'input window, operand 6, single buffered']
    #allocation16 [shape = 'u8[65536]{0}', space=vmem, size = 0x10000, scoped, tag = 'output window, operand 0']
    %12 = vsyncpa [#allocation5], 0
    %s13 = scalar_lea.sflag [#allocation5], 1
    %14 = vsyncpa %s13, 0
    %15 = vsyncpa [#allocation8], 0
    %16 = vsyncpa [#allocation11], 0
    %17 = vsyncpa [#allocation14], 0
    %18 = vsyncpa [#allocation6], 0
    %s19 = scalar_lea.sflag [#allocation6], 1
    %20 = vsyncpa %s19, 0
    loop: start=0, step=1, limit=4
    $region2: #{nnunet_down_block.1} parent=1 // loop_pre_header
      _
    $region3: #{nnunet_down_block.1} parent=1 // loop_header
      %s22 = sphi 0, %s26
      %p23 = scmp.ge.s32.totalorder %s22, 4
      %s32 = sphi 0, %s34
      %s35 = sphi 0, %s32
      %s36 = sphi 0, %s35
      %s52 = sphi 0, %s36
      %s56 = sphi 0, %s56
      %s58 = sphi 0, %s56
      %s59 = sphi 0, %s58
      %s73 = sphi 0, %s59
      %s77 = sphi 0, %s77
      %s79 = sphi 0, %s77
      %s80 = sphi 0, %s79
      %s94 = sphi 0, %s80
      %s98 = sphi 0, %s98
      %s100 = sphi 0, %s98
      %s101 = sphi 0, %s100
      %s115 = sphi 0, %s101
      %s119 = sphi 0, %s119
      %s121 = sphi 0, %s119
      %s122 = sphi 0, %s121
      %s136 = sphi 0, %s122
      %s140 = sphi 0, %s140
      %s142 = sphi 0, %s140
      %s143 = sphi 0, %s142
      %s157 = sphi 0, %s143
      %s161 = sphi 0, %s161
      %s163 = sphi 0, %s161
      %s164 = sphi 0, %s163
      %s178 = sphi 0, %s164
      %s184 = sphi 0, %s186
      %s187 = sphi 0, %s184
      %s188 = sphi 0, %s187
      %s204 = sphi 0, %s188
    $region4: #{nnunet_down_block.1} parent=1 // loop_header_branch
      %25 = sbr.rel (%p23) target = $region8
    $region5: #{nnunet_down_block.1} parent=1 // loop_body
      %s27 = ssub.s32 %s22, 1
      %s28 = ssub.s32 %s22, 2
      %s29 = sadd.s32 %s22, 1
      %s30 = ssub.s32 %s22, %s29
      %p31 = scmp.eq.s32.totalorder %s30, 0
      %s33 = sadd.s32 %s32, 1
      %s34 = scalar_select %p31, %s32, %s33
      %p37 = pneg %p31
      %p38 = scmp.eq.s32.totalorder %s22, 1
      %p39 = por %p37, %p38
      %p40 = scmp.ne.s32.totalorder %s32, %s35
      %p41 = scmp.eq.s32.totalorder %s22, 0
      %p42 = por %p40, %p41
      %p43 = scmp.ne.s32.totalorder %s32, %s35
      %p44 = scmp.eq.s32.totalorder %s27, 1
      %p45 = por %p43, %p44
      %p46 = scmp.ne.s32.totalorder %s35, %s36
      %p47 = scmp.eq.s32.totalorder %s27, 0
      %p48 = por %p46, %p47
      %p49 = scmp.ne.s32.totalorder %s35, %s36
      %p50 = scmp.eq.s32.totalorder %s28, 1
      %p51 = por %p49, %p50
      %p53 = scmp.ne.s32.totalorder %s36, %s52
      %p54 = scmp.eq.s32.totalorder %s28, 0
      %p55 = por %p53, %p54
      %s57 = sadd.s32 %s56, 1
      %p60 = scmp.eq.s32.totalorder %s22, 1
      %p61 = scmp.ne.s32.totalorder %s56, %s58
      %p62 = scmp.eq.s32.totalorder %s22, 0
      %p63 = por %p61, %p62
      %p64 = scmp.ne.s32.totalorder %s56, %s58
      %p65 = scmp.eq.s32.totalorder %s27, 1
      %p66 = por %p64, %p65
      %p67 = scmp.ne.s32.totalorder %s58, %s59
      %p68 = scmp.eq.s32.totalorder %s27, 0
      %p69 = por %p67, %p68
      %p70 = scmp.ne.s32.totalorder %s58, %s59
      %p71 = scmp.eq.s32.totalorder %s28, 1
      %p72 = por %p70, %p71
      %p74 = scmp.ne.s32.totalorder %s59, %s73
      %p75 = scmp.eq.s32.totalorder %s28, 0
      %p76 = por %p74, %p75
      %s78 = sadd.s32 %s77, 1
      %p81 = scmp.eq.s32.totalorder %s22, 1
      %p82 = scmp.ne.s32.totalorder %s77, %s79
      %p83 = scmp.eq.s32.totalorder %s22, 0
      %p84 = por %p82, %p83
      %p85 = scmp.ne.s32.totalorder %s77, %s79
      %p86 = scmp.eq.s32.totalorder %s27, 1
      %p87 = por %p85, %p86
      %p88 = scmp.ne.s32.totalorder %s79, %s80
      %p89 = scmp.eq.s32.totalorder %s27, 0
      %p90 = por %p88, %p89
      %p91 = scmp.ne.s32.totalorder %s79, %s80
      %p92 = scmp.eq.s32.totalorder %s28, 1
      %p93 = por %p91, %p92
      %p95 = scmp.ne.s32.totalorder %s80, %s94
      %p96 = scmp.eq.s32.totalorder %s28, 0
      %p97 = por %p95, %p96
      %s99 = sadd.s32 %s98, 1
      %p102 = scmp.eq.s32.totalorder %s22, 1
      %p103 = scmp.ne.s32.totalorder %s98, %s100
      %p104 = scmp.eq.s32.totalorder %s22, 0
      %p105 = por %p103, %p104
      %p106 = scmp.ne.s32.totalorder %s98, %s100
      %p107 = scmp.eq.s32.totalorder %s27, 1
      %p108 = por %p106, %p107
      %p109 = scmp.ne.s32.totalorder %s100, %s101
      %p110 = scmp.eq.s32.totalorder %s27, 0
      %p111 = por %p109, %p110
      %p112 = scmp.ne.s32.totalorder %s100, %s101
      %p113 = scmp.eq.s32.totalorder %s28, 1
      %p114 = por %p112, %p113
      %p116 = scmp.ne.s32.totalorder %s101, %s115
      %p117 = scmp.eq.s32.totalorder %s28, 0
      %p118 = por %p116, %p117
      %s120 = sadd.s32 %s119, 1
      %p123 = scmp.eq.s32.totalorder %s22, 1
      %p124 = scmp.ne.s32.totalorder %s119, %s121
      %p125 = scmp.eq.s32.totalorder %s22, 0
      %p126 = por %p124, %p125
      %p127 = scmp.ne.s32.totalorder %s119, %s121
      %p128 = scmp.eq.s32.totalorder %s27, 1
      %p129 = por %p127, %p128
      %p130 = scmp.ne.s32.totalorder %s121, %s122
      %p131 = scmp.eq.s32.totalorder %s27, 0
      %p132 = por %p130, %p131
      %p133 = scmp.ne.s32.totalorder %s121, %s122
      %p134 = scmp.eq.s32.totalorder %s28, 1
      %p135 = por %p133, %p134
      %p137 = scmp.ne.s32.totalorder %s122, %s136
      %p138 = scmp.eq.s32.totalorder %s28, 0
      %p139 = por %p137, %p138
      %s141 = sadd.s32 %s140, 1
      %p144 = scmp.eq.s32.totalorder %s22, 1
      %p145 = scmp.ne.s32.totalorder %s140, %s142
      %p146 = scmp.eq.s32.totalorder %s22, 0
      %p147 = por %p145, %p146
      %p148 = scmp.ne.s32.totalorder %s140, %s142
      %p149 = scmp.eq.s32.totalorder %s27, 1
      %p150 = por %p148, %p149
      %p151 = scmp.ne.s32.totalorder %s142, %s143
      %p152 = scmp.eq.s32.totalorder %s27, 0
      %p153 = por %p151, %p152
      %p154 = scmp.ne.s32.totalorder %s142, %s143
      %p155 = scmp.eq.s32.totalorder %s28, 1
      %p156 = por %p154, %p155
      %p158 = scmp.ne.s32.totalorder %s143, %s157
      %p159 = scmp.eq.s32.totalorder %s28, 0
      %p160 = por %p158, %p159
      %s162 = sadd.s32 %s161, 1
      %p165 = scmp.eq.s32.totalorder %s22, 1
      %p166 = scmp.ne.s32.totalorder %s161, %s163
      %p167 = scmp.eq.s32.totalorder %s22, 0
      %p168 = por %p166, %p167
      %p169 = scmp.ne.s32.totalorder %s161, %s163
      %p170 = scmp.eq.s32.totalorder %s27, 1
      %p171 = por %p169, %p170
      %p172 = scmp.ne.s32.totalorder %s163, %s164
      %p173 = scmp.eq.s32.totalorder %s27, 0
      %p174 = por %p172, %p173
      %p175 = scmp.ne.s32.totalorder %s163, %s164
      %p176 = scmp.eq.s32.totalorder %s28, 1
      %p177 = por %p175, %p176
      %p179 = scmp.ne.s32.totalorder %s164, %s178
      %p180 = scmp.eq.s32.totalorder %s28, 0
      %p181 = por %p179, %p180
      %s182 = ssub.s32 %s22, %s29
      %p183 = scmp.eq.s32.totalorder %s182, 0
      %s185 = sadd.s32 %s184, 1
      %s186 = scalar_select %p183, %s184, %s185
      %p189 = pneg %p183
      %p190 = scmp.eq.s32.totalorder %s22, 1
      %p191 = por %p189, %p190
      %p192 = scmp.ne.s32.totalorder %s184, %s187
      %p193 = scmp.eq.s32.totalorder %s22, 0
      %p194 = por %p192, %p193
      %p195 = scmp.ne.s32.totalorder %s184, %s187
      %p196 = scmp.eq.s32.totalorder %s27, 1
      %p197 = por %p195, %p196
      %p198 = scmp.ne.s32.totalorder %s187, %s188
      %p199 = scmp.eq.s32.totalorder %s27, 0
      %p200 = por %p198, %p199
      %p201 = scmp.ne.s32.totalorder %s187, %s188
      %p202 = scmp.eq.s32.totalorder %s28, 1
      %p203 = por %p201, %p202
      %p205 = scmp.ne.s32.totalorder %s188, %s204
      %p206 = scmp.eq.s32.totalorder %s28, 0
      %p207 = por %p205, %p206
      %p208 = scmp.le.s32.totalorder 1, %s22
      %p209 = scmp.lt.s32.totalorder %s22, 3
      %p210 = pnand %p208, %p209
      %p211 = pneg %p210
      // Predicated region
      $region9: #{nnunet_down_block.1} parent=5 // pred_check
        _
      $region10: #{nnunet_down_block.1} parent=5 // pred_check_branch
        %213 = sbr.rel (%p210) target = $region12
      $region11: #{nnunet_down_block.1} parent=5 // pred_region
        %s214 = ssub.s32 %s22, 1
        // Predicated region
        $region13: #{nnunet_down_block.1} parent=11 // pred_check
          %p215 = pneg %p69
        $region14: #{nnunet_down_block.1} parent=11 // pred_check_branch
          %217 = sbr.rel (%p215) target = $region16
        $region15: #{nnunet_down_block.1} parent=11 // pred_region
          %s219 = ssub.s32 9216, 9216
          %220 = vsyncadd [#allocation8], %s219
          %s221 = sshll.u32 [#allocation7], 4
          %s222 = int_to_ptr.vmem [resolvable:$true] %s221
          %227 = dma.hbm_to_vmem [thread:$0]  %s1, 9216, %s222, [#allocation8], 64, 64, 4
        $region16: #{nnunet_down_block.1} parent=11 // pred_fallthru
          _
        // Predicated region
        $region17: #{nnunet_down_block.1} parent=11 // pred_check
          %p228 = pneg %p90
        $region18: #{nnunet_down_block.1} parent=11 // pred_check_branch
          %230 = sbr.rel (%p228) target = $region20
        $region19: #{nnunet_down_block.1} parent=11 // pred_region
          %s232 = ssub.s32 16, 16
          %233 = vsyncadd [#allocation8], %s232
          %s235 = sshll.u32 [#allocation9], 4
          %s236 = int_to_ptr.vmem [resolvable:$true] %s235
          %238 = dma.hbm_to_vmem [thread:$0]  %s2, 16, %s236, [#allocation8]
        $region20: #{nnunet_down_block.1} parent=11 // pred_fallthru
          _
        // Predicated region
        $region21: #{nnunet_down_block.1} parent=11 // pred_check
          %p239 = pneg %p111
        $region22: #{nnunet_down_block.1} parent=11 // pred_check_branch
          %241 = sbr.rel (%p239) target = $region24
        $region23: #{nnunet_down_block.1} parent=11 // pred_region
          %s243 = ssub.s32 9216, 9216
          %244 = vsyncadd [#allocation11], %s243
          %s245 = sshll.u32 [#allocation10], 4
          %s246 = int_to_ptr.vmem [resolvable:$true] %s245
          %251 = dma.hbm_to_vmem [thread:$0]  %s3, 9216, %s246, [#allocation11], 64, 64, 4
        $region24: #{nnunet_down_block.1} parent=11 // pred_fallthru
          _
        // Predicated region
        $region25: #{nnunet_down_block.1} parent=11 // pred_check
          %p252 = pneg %p132
        $region26: #{nnunet_down_block.1} parent=11 // pred_check_branch
          %254 = sbr.rel (%p252) target = $region28
        $region27: #{nnunet_down_block.1} parent=11 // pred_region
          %s256 = ssub.s32 16, 16
          %257 = vsyncadd [#allocation11], %s256
          %s259 = sshll.u32 [#allocation12], 4
          %s260 = int_to_ptr.vmem [resolvable:$true] %s259
          %262 = dma.hbm_to_vmem [thread:$0]  %s4, 16, %s260, [#allocation11]
        $region28: #{nnunet_down_block.1} parent=11 // pred_fallthru
          _
        // Predicated region
        $region29: #{nnunet_down_block.1} parent=11 // pred_check
          %p263 = pneg %p153
        $region30: #{nnunet_down_block.1} parent=11 // pred_check_branch
          %265 = sbr.rel (%p263) target = $region32
        $region31: #{nnunet_down_block.1} parent=11 // pred_region
          %s267 = ssub.s32 1024, 1024
          %268 = vsyncadd [#allocation14], %s267
          %s269 = sshll.u32 [#allocation13], 4
          %s270 = int_to_ptr.vmem [resolvable:$true] %s269
          %275 = dma.hbm_to_vmem [thread:$0]  %s5, 1024, %s270, [#allocation14], 64, 64, 4
        $region32: #{nnunet_down_block.1} parent=11 // pred_fallthru
          _
        // Predicated region
        $region33: #{nnunet_down_block.1} parent=11 // pred_check
          %p276 = pneg %p174
        $region34: #{nnunet_down_block.1} parent=11 // pred_check_branch
          %278 = sbr.rel (%p276) target = $region36
        $region35: #{nnunet_down_block.1} parent=11 // pred_region
          %s280 = ssub.s32 16, 16
          %281 = vsyncadd [#allocation14], %s280
          %s283 = sshll.u32 [#allocation15], 4
          %s284 = int_to_ptr.vmem [resolvable:$true] %s283
          %286 = dma.hbm_to_vmem [thread:$0]  %s6, 16, %s284, [#allocation14]
        $region36: #{nnunet_down_block.1} parent=11 // pred_fallthru
          _
      $region12: #{nnunet_down_block.1} parent=5 // pred_fallthru
        _
      %p287 = scmp.lt.s32.totalorder %s22, 2
      // Predicated region
      $region37: #{nnunet_down_block.1} parent=5 // pred_check
        %p288 = pneg %p287
      $region38: #{nnunet_down_block.1} parent=5 // pred_check_branch
        %290 = sbr.rel (%p288) target = $region40
      $region39: #{nnunet_down_block.1} parent=5 // pred_region
        // Predicated region
        $region41: #{nnunet_down_block.1} parent=39 // pred_check
          %p291 = pneg %p42
        $region42: #{nnunet_down_block.1} parent=39 // pred_check_branch
          %293 = sbr.rel (%p291) target = $region44
        $region43: #{nnunet_down_block.1} parent=39 // pred_region
          %s294 = sand.u32 %s32, 1
          %s295 = scalar_lea.sflag [#allocation5], %s294
          %s296 = sand.u32 %s32, 1
          %s297 = smul.addr %s296, 128
          %s298 = scalar_lea.vmem [#allocation4], %s297
          %s300 = ssub.s32 2048, 2048
          %301 = vsyncadd %s295, %s300
          %s302 = smul.addr %s22, 32
          %s303 = smul.addr %s302, 64
          %s304 = scalar_lea.hbm %s0, %s303
          %s305 = sshll.u32 %s298, 4
          %s306 = int_to_ptr.vmem [resolvable:$true] %s305
          %311 = dma.hbm_to_vmem [thread:$0]  %s304, 2048, %s306, %s295, 128, 128, 8
        $region44: #{nnunet_down_block.1} parent=39 // pred_fallthru
          _
      $region40: #{nnunet_down_block.1} parent=5 // pred_fallthru
        _
      %p312 = scmp.le.s32.totalorder 1, %s22
      %p313 = scmp.lt.s32.totalorder %s22, 3
      %p314 = pnand %p312, %p313
      %p315 = pneg %p314
      // Predicated region
      $region45: #{nnunet_down_block.1} parent=5 // pred_check
        _
      $region46: #{nnunet_down_block.1} parent=5 // pred_check_branch
        %317 = sbr.rel (%p314) target = $region48
      $region47: #{nnunet_down_block.1} parent=5 // pred_region
        %s318 = ssub.s32 %s22, 1
        %s319 = sand.u32 %s35, 1
        %s320 = scalar_lea.sflag [#allocation5], %s319
        %s321 = sand.u32 %s35, 1
        %s322 = smul.addr %s321, 128
        %s323 = scalar_lea.vmem [#allocation4], %s322
        // Predicated region
        $region49: #{nnunet_down_block.1} parent=47 // pred_check
          %p324 = pneg %p48
        $region50: #{nnunet_down_block.1} parent=47 // pred_check_branch
          %326 = sbr.rel (%p324) target = $region52
        $region51: #{nnunet_down_block.1} parent=47 // pred_region
          %327 = dma.done %s320, 2048
        $region52: #{nnunet_down_block.1} parent=47 // pred_fallthru
          _
        // Predicated region
        $region53: #{nnunet_down_block.1} parent=47 // pred_check
          %p328 = pneg %p69
        $region54: #{nnunet_down_block.1} parent=47 // pred_check_branch
          %330 = sbr.rel (%p328) target = $region56
        $region55: #{nnunet_down_block.1} parent=47 // pred_region
          %331 = dma.done [#allocation8], 9216
        $region56: #{nnunet_down_block.1} parent=47 // pred_fallthru
          _
        // Predicated region
        $region57: #{nnunet_down_block.1} parent=47 // pred_check
          %p332 = pneg %p90
        $region58: #{nnunet_down_block.1} parent=47 // pred_check_branch
          %334 = sbr.rel (%p332) target = $region60
        $region59: #{nnunet_down_block.1} parent=47 // pred_region
          %335 = dma.done [#allocation8], 16
        $region60: #{nnunet_down_block.1} parent=47 // pred_fallthru
          _
        // Predicated region
        $region61: #{nnunet_down_block.1} parent=47 // pred_check
          %p336 = pneg %p111
        $region62: #{nnunet_down_block.1} parent=47 // pred_check_branch
          %338 = sbr.rel (%p336) target = $region64
        $region63: #{nnunet_down_block.1} parent=47 // pred_region
          %339 = dma.done [#allocation11], 9216
        $region64: #{nnunet_down_block.1} parent=47 // pred_fallthru
          _
        // Predicated region
        $region65: #{nnunet_down_block.1} parent=47 // pred_check
          %p340 = pneg %p132
        $region66: #{nnunet_down_block.1} parent=47 // pred_check_branch
          %342 = sbr.rel (%p340) target = $region68
        $region67: #{nnunet_down_block.1} parent=47 // pred_region
          %343 = dma.done [#allocation11], 16
        $region68: #{nnunet_down_block.1} parent=47 // pred_fallthru
          _
        // Predicated region
        $region69: #{nnunet_down_block.1} parent=47 // pred_check
          %p344 = pneg %p153
        $region70: #{nnunet_down_block.1} parent=47 // pred_check_branch
          %346 = sbr.rel (%p344) target = $region72
        $region71: #{nnunet_down_block.1} parent=47 // pred_region
          %347 = dma.done [#allocation14], 1024
        $region72: #{nnunet_down_block.1} parent=47 // pred_fallthru
          _
        // Predicated region
        $region73: #{nnunet_down_block.1} parent=47 // pred_check
          %p348 = pneg %p174
        $region74: #{nnunet_down_block.1} parent=47 // pred_check_branch
          %350 = sbr.rel (%p348) target = $region76
        $region75: #{nnunet_down_block.1} parent=47 // pred_region
          %351 = dma.done [#allocation14], 16
        $region76: #{nnunet_down_block.1} parent=47 // pred_fallthru
          _
        %s352 = sand.u32 %s35, 1
        %s353 = scalar_lea.sflag [#allocation5], %s352
        %s354 = sand.u32 %s35, 1
        %s355 = smul.addr %s354, 128
        %s356 = scalar_lea.vmem [#allocation4], %s355
        %p357 = pneg %p48
        %p358 = pneg %p45
        %p359 = pneg %p69
        %p360 = pneg %p66
        %p361 = pneg %p90
        %p362 = pneg %p87
        %p363 = pneg %p111
        %p364 = pneg %p108
        %p365 = pneg %p132
        %p366 = pneg %p129
        %p367 = pneg %p153
        %p368 = pneg %p150
        %p369 = pneg %p174
        %p370 = pneg %p171
        %p371 = pneg %p200
        %p372 = pneg %p197
        %s373 = sand.u32 %s187, 1
        %s374 = scalar_lea.sflag [#allocation6], %s373
        %s375 = sand.u32 %s187, 1
        %s376 = smul.addr %s375, 64
        %s377 = scalar_lea.vmem [#allocation16], %s376
        %379 = vst [vmem:[#allocation2] sm:$0xf] 0
        %380 = vst [vmem:[#allocation2 + $0x4] sm:$0x1] 0
        %s381 = scalar_lea.vmem [#allocation2], 72
        %382 = vst [vmem:[%s381] sm:$0xf] 0
        %383 = vst [vmem:[%s381 + $0x4] sm:$0x1] 0
        %vm384 = vcmask 1040384
        %vm385 = vsmask.f32 256
        %vm386 = vmand %vm384, %vm385
        %v387 = vld [vmem:[#allocation2] sm:$0x1]
        %v388 = vsel %vm386, 0, %v387
        %389 = vst [vmem:[#allocation2] sm:$0x1] %v388
        %v390 = vld [vmem:[#allocation2 + $0x8] sm:$0x1]
        %v391 = vsel %vm386, 0, %v390
        %392 = vst [vmem:[#allocation2 + $0x8] sm:$0x1] %v391
        %v393 = vld [vmem:[#allocation2 + $0x10] sm:$0x1]
        %v394 = vsel %vm386, 0, %v393
        %395 = vst [vmem:[#allocation2 + $0x10] sm:$0x1] %v394
        %v396 = vld [vmem:[#allocation2 + $0x18] sm:$0x1]
        %v397 = vsel %vm386, 0, %v396
        %398 = vst [vmem:[#allocation2 + $0x18] sm:$0x1] %v397
        %v399 = vld [vmem:[#allocation2 + $0x20] sm:$0x1]
        %v400 = vsel %vm386, 0, %v399
        %401 = vst [vmem:[#allocation2 + $0x20] sm:$0x1] %v400
        %v402 = vld [vmem:[#allocation2 + $0x28] sm:$0x1]
        %v403 = vsel %vm386, 0, %v402
        %404 = vst [vmem:[#allocation2 + $0x28] sm:$0x1] %v403
        %v405 = vld [vmem:[#allocation2 + $0x30] sm:$0x1]
        %v406 = vsel %vm386, 0, %v405
        %407 = vst [vmem:[#allocation2 + $0x30] sm:$0x1] %v406
        %v408 = vld [vmem:[#allocation2 + $0x38] sm:$0x1]
        %v409 = vsel %vm386, 0, %v408
        %410 = vst [vmem:[#allocation2 + $0x38] sm:$0x1] %v409
        %v411 = vld [vmem:[#allocation2 + $0x40] sm:$0x1]
        %v412 = vsel %vm386, 0, %v411
        %413 = vst [vmem:[#allocation2 + $0x40] sm:$0x1] %v412
        %v414 = vld [vmem:[#allocation2 + $0x48] sm:$0x1]
        %v415 = vsel %vm386, 0, %v414
        %416 = vst [vmem:[#allocation2 + $0x48] sm:$0x1] %v415
        %vm417 = vsmask.f32 7938
        %vm418 = vmand %vm384, %vm417
        %v419 = vld [vmem:[#allocation2 + $0x4] sm:$0x1]
        %v420 = vsel %vm418, 0, %v419
        %421 = vst [vmem:[#allocation2 + $0x4] sm:$0x1] %v420
        %v422 = vld [vmem:[#allocation2 + $0xc] sm:$0x1]
        %v423 = vsel %vm418, 0, %v422
        %424 = vst [vmem:[#allocation2 + $0xc] sm:$0x1] %v423
        %v425 = vld [vmem:[#allocation2 + $0x14] sm:$0x1]
        %v426 = vsel %vm418, 0, %v425
        %427 = vst [vmem:[#allocation2 + $0x14] sm:$0x1] %v426
        %v428 = vld [vmem:[#allocation2 + $0x1c] sm:$0x1]
        %v429 = vsel %vm418, 0, %v428
        %430 = vst [vmem:[#allocation2 + $0x1c] sm:$0x1] %v429
        %v431 = vld [vmem:[#allocation2 + $0x24] sm:$0x1]
        %v432 = vsel %vm418, 0, %v431
        %433 = vst [vmem:[#allocation2 + $0x24] sm:$0x1] %v432
        %v434 = vld [vmem:[#allocation2 + $0x2c] sm:$0x1]
        %v435 = vsel %vm418, 0, %v434
        %436 = vst [vmem:[#allocation2 + $0x2c] sm:$0x1] %v435
        %v437 = vld [vmem:[#allocation2 + $0x34] sm:$0x1]
        %v438 = vsel %vm418, 0, %v437
        %439 = vst [vmem:[#allocation2 + $0x34] sm:$0x1] %v438
        %v440 = vld [vmem:[#allocation2 + $0x3c] sm:$0x1]
        %v441 = vsel %vm418, 0, %v440
        %442 = vst [vmem:[#allocation2 + $0x3c] sm:$0x1] %v441
        %v443 = vld [vmem:[#allocation2 + $0x44] sm:$0x1]
        %v444 = vsel %vm418, 0, %v443
        %445 = vst [vmem:[#allocation2 + $0x44] sm:$0x1] %v444
        %v446 = vld [vmem:[#allocation2 + $0x4c] sm:$0x1]
        %v447 = vsel %vm418, 0, %v446
        %448 = vst [vmem:[#allocation2 + $0x4c] sm:$0x1] %v447
        %449 = vst [vmem:[#allocation3] sm:$0xf] 0
        %450 = vst [vmem:[#allocation3 + $0x4] sm:$0x1] 0
        %s451 = scalar_lea.vmem [#allocation3], 72
        %452 = vst [vmem:[%s451] sm:$0xf] 0
        %453 = vst [vmem:[%s451 + $0x4] sm:$0x1] 0
        %v454 = vld [vmem:[#allocation3] sm:$0x1]
        %v455 = vsel %vm386, 0, %v454
        %456 = vst [vmem:[#allocation3] sm:$0x1] %v455
        %v457 = vld [vmem:[#allocation3 + $0x8] sm:$0x1]
        %v458 = vsel %vm386, 0, %v457
        %459 = vst [vmem:[#allocation3 + $0x8] sm:$0x1] %v458
        %v460 = vld [vmem:[#allocation3 + $0x10] sm:$0x1]
        %v461 = vsel %vm386, 0, %v460
        %462 = vst [vmem:[#allocation3 + $0x10] sm:$0x1] %v461
        %v463 = vld [vmem:[#allocation3 + $0x18] sm:$0x1]
        %v464 = vsel %vm386, 0, %v463
        %465 = vst [vmem:[#allocation3 + $0x18] sm:$0x1] %v464
        %v466 = vld [vmem:[#allocation3 + $0x20] sm:$0x1]
        %v467 = vsel %vm386, 0, %v466
        %468 = vst [vmem:[#allocation3 + $0x20] sm:$0x1] %v467
        %v469 = vld [vmem:[#allocation3 + $0x28] sm:$0x1]
        %v470 = vsel %vm386, 0, %v469
        %471 = vst [vmem:[#allocation3 + $0x28] sm:$0x1] %v470
        %v472 = vld [vmem:[#allocation3 + $0x30] sm:$0x1]
        %v473 = vsel %vm386, 0, %v472
        %474 = vst [vmem:[#allocation3 + $0x30] sm:$0x1] %v473
        %v475 = vld [vmem:[#allocation3 + $0x38] sm:$0x1]
        %v476 = vsel %vm386, 0, %v475
        %477 = vst [vmem:[#allocation3 + $0x38] sm:$0x1] %v476
        %v478 = vld [vmem:[#allocation3 + $0x40] sm:$0x1]
        %v479 = vsel %vm386, 0, %v478
        %480 = vst [vmem:[#allocation3 + $0x40] sm:$0x1] %v479
        %v481 = vld [vmem:[#allocation3 + $0x48] sm:$0x1]
        %v482 = vsel %vm386, 0, %v481
        %483 = vst [vmem:[#allocation3 + $0x48] sm:$0x1] %v482
        %v484 = vld [vmem:[#allocation3 + $0x4] sm:$0x1]
        %v485 = vsel %vm418, 0, %v484
        %486 = vst [vmem:[#allocation3 + $0x4] sm:$0x1] %v485
        %v487 = vld [vmem:[#allocation3 + $0xc] sm:$0x1]
        %v488 = vsel %vm418, 0, %v487
        %489 = vst [vmem:[#allocation3 + $0xc] sm:$0x1] %v488
        %v490 = vld [vmem:[#allocation3 + $0x14] sm:$0x1]
        %v491 = vsel %vm418, 0, %v490
        %492 = vst [vmem:[#allocation3 + $0x14] sm:$0x1] %v491
        %v493 = vld [vmem:[#allocation3 + $0x1c] sm:$0x1]
        %v494 = vsel %vm418, 0, %v493
        %495 = vst [vmem:[#allocation3 + $0x1c] sm:$0x1] %v494
        %v496 = vld [vmem:[#allocation3 + $0x24] sm:$0x1]
        %v497 = vsel %vm418, 0, %v496
        %498 = vst [vmem:[#allocation3 + $0x24] sm:$0x1] %v497
        %v499 = vld [vmem:[#allocation3 + $0x2c] sm:$0x1]
        %v500 = vsel %vm418, 0, %v499
        %501 = vst [vmem:[#allocation3 + $0x2c] sm:$0x1] %v500
        %v502 = vld [vmem:[#allocation3 + $0x34] sm:$0x1]
        %v503 = vsel %vm418, 0, %v502
        %504 = vst [vmem:[#allocation3 + $0x34] sm:$0x1] %v503
        %v505 = vld [vmem:[#allocation3 + $0x3c] sm:$0x1]
        %v506 = vsel %vm418, 0, %v505
        %507 = vst [vmem:[#allocation3 + $0x3c] sm:$0x1] %v506
        %v508 = vld [vmem:[#allocation3 + $0x44] sm:$0x1]
        %v509 = vsel %vm418, 0, %v508
        %510 = vst [vmem:[#allocation3 + $0x44] sm:$0x1] %v509
        %v511 = vld [vmem:[#allocation3 + $0x4c] sm:$0x1]
        %v512 = vsel %vm418, 0, %v511
        %513 = vst [vmem:[#allocation3 + $0x4c] sm:$0x1] %v512
        %v514 = vld [vmem:[%s323] sm:$0xff]
        %v515 = vld [vmem:[%s323 + $0x8] sm:$0xff]
        %v516 = vld [vmem:[%s323 + $0x10] sm:$0xff]
        %v517 = vld [vmem:[%s323 + $0x18] sm:$0xff]
        %v518 = vld [vmem:[%s323 + $0x20] sm:$0xff]
        %v519 = vld [vmem:[%s323 + $0x28] sm:$0xff]
        %v520 = vld [vmem:[%s323 + $0x30] sm:$0xff]
        %v521 = vld [vmem:[%s323 + $0x38] sm:$0xff]
        %v522 = vld [vmem:[%s323 + $0x40] sm:$0xff]
        %v523 = vld [vmem:[%s323 + $0x48] sm:$0xff]
        %v524 = vld [vmem:[%s323 + $0x50] sm:$0xff]
        %v525 = vld [vmem:[%s323 + $0x58] sm:$0xff]
        %v526 = vld [vmem:[%s323 + $0x60] sm:$0xff]
        %v527 = vld [vmem:[%s323 + $0x68] sm:$0xff]
        %v528 = vld [vmem:[%s323 + $0x70] sm:$0xff]
        %v529 = vld [vmem:[%s323 + $0x78] sm:$0xff]
        %v530 = vmax.bf16 %v514, %v515
        %v531 = vmax.bf16 %v516, %v517
        %v532 = vmax.bf16 %v518, %v519
        %v533 = vmax.bf16 %v520, %v521
        %v534 = vmax.bf16 %v522, %v523
        %v535 = vmax.bf16 %v524, %v525
        %v536 = vmax.bf16 %v526, %v527
        %v537 = vmax.bf16 %v528, %v529
        %v546 = vrot.slane %v530, 4
        %v547 = vrot.slane %v531, 4
        %v548 = vrot.slane %v532, 4
        %v549 = vrot.slane %v533, 4
        %v550 = vrot.slane %v534, 4
        %v551 = vrot.slane %v535, 4
        %v552 = vrot.slane %v536, 4
        %v553 = vrot.slane %v537, 4
        %v562 = vmax.bf16 %v530, %v546
        %v563 = vmax.bf16 %v531, %v547
        %v564 = vmax.bf16 %v532, %v548
        %v565 = vmax.bf16 %v533, %v549
        %v566 = vmax.bf16 %v534, %v550
        %v567 = vmax.bf16 %v535, %v551
        %v568 = vmax.bf16 %v536, %v552
        %v569 = vmax.bf16 %v537, %v553
        %v571 = vshrl.u32 %v562, 16
        %v573 = vrot.slane %v571, 7
        %v574 = vshll.u32 %v562, 16
        %v576 = vor.u32 %v573, %v574
        %v577 = vrot.slane %v573, 4
        %v579 = vshrl.u32 %v563, 16
        %v581 = vrot.slane %v579, 7
        %v582 = vshll.u32 %v563, 16
        %v584 = vor.u32 %v581, %v582
        %v585 = vrot.slane %v581, 4
        %v587 = vshrl.u32 %v564, 16
        %v589 = vrot.slane %v587, 7
        %v590 = vshll.u32 %v564, 16
        %v592 = vor.u32 %v589, %v590
        %v593 = vrot.slane %v589, 4
        %v595 = vshrl.u32 %v565, 16
        %v597 = vrot.slane %v595, 7
        %v598 = vshll.u32 %v565, 16
        %v600 = vor.u32 %v597, %v598
        %v601 = vrot.slane %v597, 4
        %v603 = vshrl.u32 %v566, 16
        %v605 = vrot.slane %v603, 7
        %v606 = vshll.u32 %v566, 16
        %v608 = vor.u32 %v605, %v606
        %v609 = vrot.slane %v605, 4
        %v611 = vshrl.u32 %v567, 16
        %v613 = vrot.slane %v611, 7
        %v614 = vshll.u32 %v567, 16
        %v616 = vor.u32 %v613, %v614
        %v617 = vrot.slane %v613, 4
        %v619 = vshrl.u32 %v568, 16
        %v621 = vrot.slane %v619, 7
        %v622 = vshll.u32 %v568, 16
        %v624 = vor.u32 %v621, %v622
        %v625 = vrot.slane %v621, 4
        %v627 = vshrl.u32 %v569, 16
        %v629 = vrot.slane %v627, 7
        %v630 = vshll.u32 %v569, 16
        %v632 = vor.u32 %v629, %v630
        %v633 = vrot.slane %v629, 4
        %s650 = scalar_lea.vmem [#allocation2], 8
        %vm651 = vcmask 1043456
        %vm652 = vmand %vm651, %vm417
        %v653 = vld [vmem:[%s650] sm:$0xf]
        %v654 = vsel %vm652, %v576, %v653
        %655 = vst [vmem:[%s650] sm:$0xf] %v654
        %v656 = vld [vmem:[%s650 + $0x4] sm:$0x1]
        %v657 = vsel %vm386, %v577, %v656
        %658 = vst [vmem:[%s650 + $0x4] sm:$0x1] %v657
        %v659 = vld [vmem:[%s650 + $0x8] sm:$0xf]
        %v660 = vsel %vm652, %v584, %v659
        %661 = vst [vmem:[%s650 + $0x8] sm:$0xf] %v660
        %v662 = vld [vmem:[%s650 + $0xc] sm:$0x1]
        %v663 = vsel %vm386, %v585, %v662
        %664 = vst [vmem:[%s650 + $0xc] sm:$0x1] %v663
        %v665 = vld [vmem:[%s650 + $0x10] sm:$0xf]
        %v666 = vsel %vm652, %v592, %v665
        %667 = vst [vmem:[%s650 + $0x10] sm:$0xf] %v666
        %v668 = vld [vmem:[%s650 + $0x14] sm:$0x1]
        %v669 = vsel %vm386, %v593, %v668
        %670 = vst [vmem:[%s650 + $0x14] sm:$0x1] %v669
        %v671 = vld [vmem:[%s650 + $0x18] sm:$0xf]
        %v672 = vsel %vm652, %v600, %v671
        %673 = vst [vmem:[%s650 + $0x18] sm:$0xf] %v672
        %v674 = vld [vmem:[%s650 + $0x1c] sm:$0x1]
        %v675 = vsel %vm386, %v601, %v674
        %676 = vst [vmem:[%s650 + $0x1c] sm:$0x1] %v675
        %v677 = vld [vmem:[%s650 + $0x20] sm:$0xf]
        %v678 = vsel %vm652, %v608, %v677
        %679 = vst [vmem:[%s650 + $0x20] sm:$0xf] %v678
        %v680 = vld [vmem:[%s650 + $0x24] sm:$0x1]
        %v681 = vsel %vm386, %v609, %v680
        %682 = vst [vmem:[%s650 + $0x24] sm:$0x1] %v681
        %v683 = vld [vmem:[%s650 + $0x28] sm:$0xf]
        %v684 = vsel %vm652, %v616, %v683
        %685 = vst [vmem:[%s650 + $0x28] sm:$0xf] %v684
        %v686 = vld [vmem:[%s650 + $0x2c] sm:$0x1]
        %v687 = vsel %vm386, %v617, %v686
        %688 = vst [vmem:[%s650 + $0x2c] sm:$0x1] %v687
        %v689 = vld [vmem:[%s650 + $0x30] sm:$0xf]
        %v690 = vsel %vm652, %v624, %v689
        %691 = vst [vmem:[%s650 + $0x30] sm:$0xf] %v690
        %v692 = vld [vmem:[%s650 + $0x34] sm:$0x1]
        %v693 = vsel %vm386, %v625, %v692
        %694 = vst [vmem:[%s650 + $0x34] sm:$0x1] %v693
        %v695 = vld [vmem:[%s650 + $0x38] sm:$0xf]
        %v696 = vsel %vm652, %v632, %v695
        %697 = vst [vmem:[%s650 + $0x38] sm:$0xf] %v696
        %v698 = vld [vmem:[%s650 + $0x3c] sm:$0x1]
        %v699 = vsel %vm386, %v633, %v698
        %700 = vst [vmem:[%s650 + $0x3c] sm:$0x1] %v699
        %v701 = vlaneseq
        %v702 = vshrl.u32 %v701, 7
        %vm703 = vcmp.lt.s32.totalorder %v702, 8
        %v704 = vld [vmem:[#allocation2] sm:$0xf]
        %v705 = vld [vmem:[#allocation2 + $0x8] sm:$0xf]
        %v706 = vld [vmem:[#allocation2 + $0x10] sm:$0xf]
        %v707 = vld [vmem:[#allocation2 + $0x18] sm:$0xf]
        %v708 = vld [vmem:[#allocation2 + $0x20] sm:$0xf]
        %v709 = vld [vmem:[#allocation2 + $0x28] sm:$0xf]
        %v710 = vld [vmem:[#allocation2 + $0x30] sm:$0xf]
        %v711 = vld [vmem:[#allocation2 + $0x38] sm:$0xf]
        %v712 = vld [vmem:[#allocation2 + $0x40] sm:$0xf]
        %v713 = vld [vmem:[#allocation2 + $0x48] sm:$0xf]
        %v714 = vld [vmem:[#allocation2 + $0x4] sm:$0x1]
        %v715 = vld [vmem:[#allocation2 + $0xc] sm:$0x1]
        %v716 = vld [vmem:[#allocation2 + $0x14] sm:$0x1]
        %v717 = vld [vmem:[#allocation2 + $0x1c] sm:$0x1]
        %v718 = vld [vmem:[#allocation2 + $0x24] sm:$0x1]
        %v719 = vld [vmem:[#allocation2 + $0x2c] sm:$0x1]
        %v720 = vld [vmem:[#allocation2 + $0x34] sm:$0x1]
        %v721 = vld [vmem:[#allocation2 + $0x3c] sm:$0x1]
        %v722 = vld [vmem:[#allocation2 + $0x44] sm:$0x1]
        %v723 = vld [vmem:[#allocation2 + $0x4c] sm:$0x1]
        %v724 = vld [vmem:[#allocation2] sm:$0xe]
        %v725 = vld [vmem:[#allocation2 + $0x8] sm:$0xe]
        %v726 = vld [vmem:[#allocation2 + $0x10] sm:$0xe]
        %v727 = vld [vmem:[#allocation2 + $0x18] sm:$0xe]
        %v728 = vld [vmem:[#allocation2 + $0x20] sm:$0xe]
        %v729 = vld [vmem:[#allocation2 + $0x28] sm:$0xe]
        %v730 = vld [vmem:[#allocation2 + $0x30] sm:$0xe]
        %v731 = vld [vmem:[#allocation2 + $0x38] sm:$0xe]
        %v732 = vld [vmem:[#allocation2 + $0x40] sm:$0xe]
        %v733 = vld [vmem:[#allocation2 + $0x48] sm:$0xe]
        %v754 = vunpack.c.l.b16 %v704
        %v755 = vunpack.c.l.b16 %v714
        %v756 = vunpack.c.l.b16 %v705
        %v757 = vunpack.c.l.b16 %v715
        %v758 = vunpack.c.l.b16 %v706
        %v759 = vunpack.c.l.b16 %v716
        %v760 = vunpack.c.l.b16 %v707
        %v761 = vunpack.c.l.b16 %v717
        %v762 = vunpack.c.l.b16 %v708
        %v763 = vunpack.c.l.b16 %v718
        %v764 = vunpack.c.l.b16 %v709
        %v765 = vunpack.c.l.b16 %v719
        %v766 = vunpack.c.l.b16 %v710
        %v767 = vunpack.c.l.b16 %v720
        %v768 = vunpack.c.l.b16 %v711
        %v769 = vunpack.c.l.b16 %v721
        %v770 = vunpack.c.l.b16 %v712
        %v771 = vunpack.c.l.b16 %v722
        %v772 = vunpack.c.l.b16 %v713
        %v773 = vunpack.c.l.b16 %v723
        %v774 = vpack.c.b16 %v755, %v754
        %v775 = vpack.c.b16 %v757, %v756
        %v776 = vpack.c.b16 %v759, %v758
        %v777 = vpack.c.b16 %v761, %v760
        %v778 = vpack.c.b16 %v763, %v762
        %v779 = vpack.c.b16 %v765, %v764
        %v780 = vpack.c.b16 %v767, %v766
        %v781 = vpack.c.b16 %v769, %v768
        %v782 = vpack.c.b16 %v771, %v770
        %v783 = vpack.c.b16 %v773, %v772
        %v785 = vshrl.u32 %v774, 16
        %v787 = vshll.u32 %v774, 16
        %v789 = vrot.slane %v787, 1
        %v790 = vor.u32 %v785, %v789
        %v792 = vshrl.u32 %v775, 16
        %v794 = vshll.u32 %v775, 16
        %v796 = vrot.slane %v794, 1
        %v797 = vor.u32 %v792, %v796
        %v799 = vshrl.u32 %v776, 16
        %v801 = vshll.u32 %v776, 16
        %v803 = vrot.slane %v801, 1
        %v804 = vor.u32 %v799, %v803
        %v806 = vshrl.u32 %v777, 16
        %v808 = vshll.u32 %v777, 16
        %v810 = vrot.slane %v808, 1
        %v811 = vor.u32 %v806, %v810
        %v813 = vshrl.u32 %v778, 16
        %v815 = vshll.u32 %v778, 16
        %v817 = vrot.slane %v815, 1
        %v818 = vor.u32 %v813, %v817
        %v820 = vshrl.u32 %v779, 16
        %v822 = vshll.u32 %v779, 16
        %v824 = vrot.slane %v822, 1
        %v825 = vor.u32 %v820, %v824
        %v827 = vshrl.u32 %v780, 16
        %v829 = vshll.u32 %v780, 16
        %v831 = vrot.slane %v829, 1
        %v832 = vor.u32 %v827, %v831
        %v834 = vshrl.u32 %v781, 16
        %v836 = vshll.u32 %v781, 16
        %v838 = vrot.slane %v836, 1
        %v839 = vor.u32 %v834, %v838
        %v841 = vshrl.u32 %v782, 16
        %v843 = vshll.u32 %v782, 16
        %v845 = vrot.slane %v843, 1
        %v846 = vor.u32 %v841, %v845
        %v848 = vshrl.u32 %v783, 16
        %v850 = vshll.u32 %v783, 16
        %v852 = vrot.slane %v850, 1
        %v853 = vor.u32 %v848, %v852
        %v864 = vunpack.c.l.b16 %v724
        %v865 = vunpack.c.l.b16 %v725
        %v866 = vunpack.c.l.b16 %v726
        %v867 = vunpack.c.l.b16 %v727
        %v868 = vunpack.c.l.b16 %v728
        %v869 = vunpack.c.l.b16 %v729
        %v870 = vunpack.c.l.b16 %v730
        %v871 = vunpack.c.l.b16 %v731
        %v872 = vunpack.c.l.b16 %v732
        %v873 = vunpack.c.l.b16 %v733
        %v874 = vpack.c.b16 %v755, %v864
        %v875 = vpack.c.b16 %v757, %v865
        %v876 = vpack.c.b16 %v759, %v866
        %v877 = vpack.c.b16 %v761, %v867
        %v878 = vpack.c.b16 %v763, %v868
        %v879 = vpack.c.b16 %v765, %v869
        %v880 = vpack.c.b16 %v767, %v870
        %v881 = vpack.c.b16 %v769, %v871
        %v882 = vpack.c.b16 %v771, %v872
        %v883 = vpack.c.b16 %v773, %v873
        %v884 = vrot.slane %v874, 1
        %v885 = vrot.slane %v875, 1
        %v886 = vrot.slane %v876, 1
        %v887 = vrot.slane %v877, 1
        %v888 = vrot.slane %v878, 1
        %v889 = vrot.slane %v879, 1
        %v890 = vrot.slane %v880, 1
        %v891 = vrot.slane %v881, 1
        %v892 = vrot.slane %v882, 1
        %v893 = vrot.slane %v883, 1
        %v894 = vld [vmem:[#allocation9] sm:$0x1]
        %v895 = vunpack.c.l.b16 %v790
        %v896 = vunpack.c.l.b16 %v884
        %v897 = vunpack.c.l.b16 %v797
        %v898 = vunpack.c.l.b16 %v885
        %v899 = vunpack.c.l.b16 %v804
        %v900 = vunpack.c.l.b16 %v886
        %v901 = vunpack.c.l.b16 %v811
        %v902 = vunpack.c.l.b16 %v887
        %v903 = vunpack.c.l.b16 %v818
        %v904 = vunpack.c.l.b16 %v888
        %v905 = vunpack.c.l.b16 %v825
        %v906 = vunpack.c.l.b16 %v889
        %v907 = vunpack.c.l.b16 %v832
        %v908 = vunpack.c.l.b16 %v890
        %v909 = vunpack.c.l.b16 %v839
        %v910 = vunpack.c.l.b16 %v891
        %v911 = vld [vmem:[#allocation7] sm:$0xf]
        %v912 = vld [vmem:[#allocation7 + $0x4] sm:$0xf]
        %v913 = vld [vmem:[#allocation7 + $0x8] sm:$0xf]
        %v914 = vld [vmem:[#allocation7 + $0xc] sm:$0xf]
        %v915 = vld [vmem:[#allocation7 + $0x10] sm:$0xf]
        %v916 = vld [vmem:[#allocation7 + $0x14] sm:$0xf]
        %v917 = vld [vmem:[#allocation7 + $0x18] sm:$0xf]
        %v918 = vld [vmem:[#allocation7 + $0x1c] sm:$0xf]
        %v919 = vld [vmem:[#allocation7 + $0x20] sm:$0xf]
        %v920 = vld [vmem:[#allocation7 + $0x24] sm:$0xf]
        %v921 = vld [vmem:[#allocation7 + $0x28] sm:$0xf]
        %v922 = vld [vmem:[#allocation7 + $0x2c] sm:$0xf]
        %v923 = vld [vmem:[#allocation7 + $0x30] sm:$0xf]
        %v924 = vld [vmem:[#allocation7 + $0x34] sm:$0xf]
        %v925 = vld [vmem:[#allocation7 + $0x38] sm:$0xf]
        %v926 = vld [vmem:[#allocation7 + $0x3c] sm:$0xf]
        %v927 = vld [vmem:[#allocation7 + $0x40] sm:$0xf]
        %v928 = vld [vmem:[#allocation7 + $0x44] sm:$0xf]
        %v929 = vld [vmem:[#allocation7 + $0x48] sm:$0xf]
        %v930 = vld [vmem:[#allocation7 + $0x4c] sm:$0xf]
        %v931 = vld [vmem:[#allocation7 + $0x50] sm:$0xf]
        %v932 = vld [vmem:[#allocation7 + $0x54] sm:$0xf]
        %v933 = vld [vmem:[#allocation7 + $0x58] sm:$0xf]
        %v934 = vld [vmem:[#allocation7 + $0x5c] sm:$0xf]
        %v935 = vld [vmem:[#allocation7 + $0x60] sm:$0xf]
        %v936 = vld [vmem:[#allocation7 + $0x64] sm:$0xf]
        %v937 = vld [vmem:[#allocation7 + $0x68] sm:$0xf]
        %v938 = vld [vmem:[#allocation7 + $0x6c] sm:$0xf]
        %v939 = vld [vmem:[#allocation7 + $0x70] sm:$0xf]
        %v940 = vld [vmem:[#allocation7 + $0x74] sm:$0xf]
        %v941 = vld [vmem:[#allocation7 + $0x78] sm:$0xf]
        %v942 = vld [vmem:[#allocation7 + $0x7c] sm:$0xf]
        %v943 = vld [vmem:[#allocation7 + $0x80] sm:$0xf]
        %v944 = vld [vmem:[#allocation7 + $0x84] sm:$0xf]
        %v945 = vld [vmem:[#allocation7 + $0x88] sm:$0xf]
        %v946 = vld [vmem:[#allocation7 + $0x8c] sm:$0xf]
        %v947 = vld [vmem:[#allocation7 + $0x90] sm:$0xf]
        %v948 = vld [vmem:[#allocation7 + $0x94] sm:$0xf]
        %v949 = vld [vmem:[#allocation7 + $0x98] sm:$0xf]
        %v950 = vld [vmem:[#allocation7 + $0x9c] sm:$0xf]
        %v951 = vld [vmem:[#allocation7 + $0xa0] sm:$0xf]
        %v952 = vld [vmem:[#allocation7 + $0xa4] sm:$0xf]
        %v953 = vld [vmem:[#allocation7 + $0xa8] sm:$0xf]
        %v954 = vld [vmem:[#allocation7 + $0xac] sm:$0xf]
        %v955 = vld [vmem:[#allocation7 + $0xb0] sm:$0xf]
        %v956 = vld [vmem:[#allocation7 + $0xb4] sm:$0xf]
        %v957 = vld [vmem:[#allocation7 + $0xb8] sm:$0xf]
        %v958 = vld [vmem:[#allocation7 + $0xbc] sm:$0xf]
        %v959 = vpack.c.b16 %v756, %v754
        %v960 = vpack.c.b16 %v897, %v895
        %v961 = vpack.c.b16 %v898, %v896
        %v962 = vpack.c.b16 %v760, %v758
        %v963 = vpack.c.b16 %v901, %v899
        %v964 = vpack.c.b16 %v902, %v900
        %v965 = vpack.c.b16 %v764, %v762
        %v966 = vpack.c.b16 %v905, %v903
        %v967 = vpack.c.b16 %v906, %v904
        %v968 = vpack.c.b16 %v768, %v766
        %v969 = vpack.c.b16 %v909, %v907
        %v970 = vpack.c.b16 %v910, %v908
        %v1031 = vunpack.c.l.b16 %v911
        %v1032 = vunpack.c.l.b16 %v912
        %v1033 = vunpack.c.l.b16 %v913
        %v1034 = vunpack.c.l.b16 %v914
        %v1035 = vunpack.c.l.b16 %v915
        %v1036 = vunpack.c.l.b16 %v916
        %v1037 = vunpack.c.l.b16 %v917
        %v1038 = vunpack.c.l.b16 %v918
        %v1039 = vunpack.c.l.b16 %v919
        %v1040 = vunpack.c.l.b16 %v920
        %v1041 = vunpack.c.l.b16 %v921
        %v1042 = vunpack.c.l.b16 %v922
        %v1043 = vunpack.c.l.b16 %v923
        %v1044 = vunpack.c.l.b16 %v924
        %v1045 = vunpack.c.l.b16 %v925
        %v1046 = vunpack.c.l.b16 %v926
        %v1047 = vunpack.c.l.b16 %v927
        %v1048 = vunpack.c.l.b16 %v928
        %v1049 = vunpack.c.l.b16 %v929
        %v1050 = vunpack.c.l.b16 %v930
        %v1051 = vunpack.c.l.b16 %v931
        %v1052 = vunpack.c.l.b16 %v932
        %v1053 = vunpack.c.l.b16 %v933
        %v1054 = vunpack.c.l.b16 %v934
        %v1055 = vunpack.c.l.b16 %v935
        %v1056 = vunpack.c.l.b16 %v936
        %v1057 = vunpack.c.l.b16 %v937
        %v1058 = vunpack.c.l.b16 %v938
        %v1059 = vunpack.c.l.b16 %v939
        %v1060 = vunpack.c.l.b16 %v940
        %v1061 = vunpack.c.l.b16 %v941
        %v1062 = vunpack.c.l.b16 %v942
        %v1063 = vunpack.c.l.b16 %v943
        %v1064 = vunpack.c.l.b16 %v944
        %v1065 = vunpack.c.l.b16 %v945
        %v1066 = vunpack.c.l.b16 %v946
        %v1067 = vunpack.c.l.b16 %v947
        %v1068 = vunpack.c.l.b16 %v948
        %v1069 = vunpack.c.l.b16 %v949
        %v1070 = vunpack.c.l.b16 %v950
        %v1071 = vunpack.c.l.b16 %v951
        %v1072 = vunpack.c.l.b16 %v952
        %v1073 = vunpack.c.l.b16 %v953
        %v1074 = vunpack.c.l.b16 %v954
        %v1075 = vunpack.c.l.b16 %v955
        %v1076 = vunpack.c.l.b16 %v956
        %v1077 = vunpack.c.l.b16 %v957
        %v1078 = vunpack.c.l.b16 %v958
        %v1079 = vpack.c.b16 %v1032, %v1031
        %v1080 = vpack.c.b16 %v1034, %v1033
        %v1081 = vpack.c.b16 %v1036, %v1035
        %v1082 = vpack.c.b16 %v1038, %v1037
        %v1083 = vpack.c.b16 %v1040, %v1039
        %v1084 = vpack.c.b16 %v1042, %v1041
        %v1085 = vpack.c.b16 %v1044, %v1043
        %v1086 = vpack.c.b16 %v1046, %v1045
        %v1087 = vpack.c.b16 %v1048, %v1047
        %v1088 = vpack.c.b16 %v1050, %v1049
        %v1089 = vpack.c.b16 %v1052, %v1051
        %v1090 = vpack.c.b16 %v1054, %v1053
        %v1091 = vpack.c.b16 %v1056, %v1055
        %v1092 = vpack.c.b16 %v1058, %v1057
        %v1093 = vpack.c.b16 %v1060, %v1059
        %v1094 = vpack.c.b16 %v1062, %v1061
        %v1095 = vpack.c.b16 %v1064, %v1063
        %v1096 = vpack.c.b16 %v1066, %v1065
        %v1097 = vpack.c.b16 %v1068, %v1067
        %v1098 = vpack.c.b16 %v1070, %v1069
        %v1099 = vpack.c.b16 %v1072, %v1071
        %v1100 = vpack.c.b16 %v1074, %v1073
        %v1101 = vpack.c.b16 %v1076, %v1075
        %v1102 = vpack.c.b16 %v1078, %v1077
        %1127 = vmatprep.subr.bf16.mxu0 0
        %1128 = vmatpush1.bf16.msra.mxu0 %v1079
        %1129 = vmatprep.subr.bf16.mxu0 0
        %1130 = vmatpush1.bf16.msra.mxu0 %v1080
        %1131 = vmatprep.subr.bf16.mxu0 0
        %1132 = vmatpush1.bf16.msra.mxu0 %v1081
        %1133 = vmatprep.subr.bf16.mxu0 0
        %1134 = vmatpush1.bf16.msra.mxu0 %v1082
        %1135 = vmatprep.subr.bf16.mxu0 0
        %1136 = vmatpush1.bf16.msra.mxu0 %v1083
        %1137 = vmatprep.subr.bf16.mxu0 0
        %1138 = vmatpush1.bf16.msra.mxu0 %v1084
        %1139 = vmatprep.subr.bf16.mxu0 0
        %1140 = vmatpush1.bf16.msra.mxu0 %v1085
        %1141 = vmatprep.subr.bf16.mxu0 0
        %1142 = vmatpush1.bf16.msra.mxu0 %v1086
        %1143 = vmatprep.subr.bf16.mxu0 0
        %1144 = vmatpush1.bf16.msra.mxu0 %v1087
        %1145 = vmatprep.subr.bf16.mxu0 0
        %1146 = vmatpush1.bf16.msra.mxu0 %v1088
        %1147 = vmatprep.subr.bf16.mxu0 0
        %1148 = vmatpush1.bf16.msra.mxu0 %v1089
        %1149 = vmatprep.subr.bf16.mxu0 0
        %1150 = vmatpush1.bf16.msra.mxu0 %v1090
        %1151 = vmatprep.subr.bf16.mxu0 0
        %1152 = vmatpush1.bf16.msra.mxu0 %v1091
        %1153 = vmatprep.subr.bf16.mxu0 0
        %1154 = vmatpush1.bf16.msra.mxu0 %v1092
        %1155 = vmatprep.subr.bf16.mxu0 0
        %1156 = vmatpush1.bf16.msra.mxu0 %v1093
        %1157 = vmatprep.subr.bf16.mxu0 0
        %1158 = vmatpush1.bf16.msra.mxu0 %v1094
        %1159 = vmatprep.mubr.bf16.mxu0 %v960
        %1160 = vmatmul.mubr.bf16.gmra.mrb[0].mxu0 %v959
        %v1161 = vpop.f32.mrb[0].mxu0
        %v1162 = vadd.f32 0.0, %v1161
        %v1163 = vpop.f32.mrb[0].mxu0
        %v1164 = vpop.f32.mrb[0].mxu0
        %v1165 = vadd.f32 0.0, %v1164
        %v1166 = vpop.f32.mrb[0].mxu0
        %1167 = vmatprep.mubr.bf16.mxu0 %v963
        %1168 = vmatmul.mubr.bf16.gmra.mrb[0].mxu0 %v962
        %v1169 = vpop.f32.mrb[0].mxu0
        %v1170 = vadd.f32 0.0, %v1169
        %v1171 = vpop.f32.mrb[0].mxu0
        %v1172 = vpop.f32.mrb[0].mxu0
        %v1173 = vadd.f32 0.0, %v1172
        %v1174 = vpop.f32.mrb[0].mxu0
        %1175 = vmatprep.mubr.bf16.mxu0 %v966
        %1176 = vmatmul.mubr.bf16.gmra.mrb[0].mxu0 %v965
        %v1177 = vpop.f32.mrb[0].mxu0
        %v1178 = vadd.f32 0.0, %v1177
        %v1179 = vpop.f32.mrb[0].mxu0
        %v1180 = vpop.f32.mrb[0].mxu0
        %v1181 = vadd.f32 0.0, %v1180
        %v1182 = vpop.f32.mrb[0].mxu0
        %1183 = vmatprep.mubr.bf16.mxu0 %v969
        %1184 = vmatmul.mubr.bf16.gmra.mrb[0].mxu0 %v968
        %v1185 = vpop.f32.mrb[0].mxu0
        %v1186 = vadd.f32 0.0, %v1185
        %v1187 = vpop.f32.mrb[0].mxu0
        %v1188 = vpop.f32.mrb[0].mxu0
        %v1189 = vadd.f32 0.0, %v1188
        %v1190 = vpop.f32.mrb[0].mxu0
        %1191 = vdwg.mxu0
        %1192 = vmatprep.subr.bf16.mxu0 0
        %1193 = vmatpush1.bf16.msra.mxu0 %v1095
        %1194 = vmatprep.subr.bf16.mxu0 0
        %1195 = vmatpush1.bf16.msra.mxu0 %v1096
        %1196 = vmatprep.subr.bf16.mxu0 0
        %1197 = vmatpush1.bf16.msra.mxu0 %v1097
        %1198 = vmatprep.subr.bf16.mxu0 0
        %1199 = vmatpush1.bf16.msra.mxu0 %v1098
        %1200 = vmatprep.subr.bf16.mxu0 0
        %1201 = vmatpush1.bf16.msra.mxu0 %v1099
        %1202 = vmatprep.subr.bf16.mxu0 0
        %1203 = vmatpush1.bf16.msra.mxu0 %v1100
        %1204 = vmatprep.subr.bf16.mxu0 0
        %1205 = vmatpush1.bf16.msra.mxu0 %v1101
        %1206 = vmatprep.subr.bf16.mxu0 0
        %1207 = vmatpush1.bf16.msra.mxu0 %v1102
        %1208 = vmatprep.subr.bf16.mxu0 0
        %1209 = vmatpush1.bf16.msra.mxu0 0
        %1210 = vmatprep.subr.bf16.mxu0 0
        %1211 = vmatpush1.bf16.msra.mxu0 0
        %1212 = vmatprep.subr.bf16.mxu0 0
        %1213 = vmatpush1.bf16.msra.mxu0 0
        %1214 = vmatprep.subr.bf16.mxu0 0
        %1215 = vmatpush1.bf16.msra.mxu0 0
        %1216 = vmatprep.subr.bf16.mxu0 0
        %1217 = vmatpush1.bf16.msra.mxu0 0
        %1218 = vmatprep.subr.bf16.mxu0 0
        %1219 = vmatpush1.bf16.msra.mxu0 0
        %1220 = vmatprep.subr.bf16.mxu0 0
        %1221 = vmatpush1.bf16.msra.mxu0 0
        %1222 = vmatprep.subr.bf16.mxu0 0
        %1223 = vmatpush1.bf16.msra.mxu0 0
        %1224 = vmatprep.mubr.bf16.mxu0 0
        %1225 = vmatmul.mubr.bf16.gmra.mrb[0].mxu0 %v961
        %v1226 = vpop.f32.mrb[0].mxu0
        %v1227 = vadd.f32 %v1162, %v1226
        %v1228 = vpop.f32.mrb[0].mxu0
        %v1229 = vpop.f32.mrb[0].mxu0
        %v1230 = vadd.f32 %v1165, %v1229
        %v1231 = vpop.f32.mrb[0].mxu0
        %1232 = vmatprep.mubr.bf16.mxu0 0
        %1233 = vmatmul.mubr.bf16.gmra.mrb[0].mxu0 %v964
        %v1234 = vpop.f32.mrb[0].mxu0
        %v1235 = vadd.f32 %v1170, %v1234
        %v1236 = vpop.f32.mrb[0].mxu0
        %v1237 = vpop.f32.mrb[0].mxu0
        %v1238 = vadd.f32 %v1173, %v1237
        %v1239 = vpop.f32.mrb[0].mxu0
        %1240 = vmatprep.mubr.bf16.mxu0 0
        %1241 = vmatmul.mubr.bf16.gmra.mrb[0].mxu0 %v967
        %v1242 = vpop.f32.mrb[0].mxu0
        %v1243 = vadd.f32 %v1178, %v1242
        %v1244 = vpop.f32.mrb[0].mxu0
        %v1245 = vpop.f32.mrb[0].mxu0
        %v1246 = vadd.f32 %v1181, %v1245
        %v1247 = vpop.f32.mrb[0].mxu0
        %1248 = vmatprep.mubr.bf16.mxu0 0
        %1249 = vmatmul.mubr.bf16.gmra.mrb[0].mxu0 %v970
        %v1250 = vpop.f32.mrb[0].mxu0
        %v1251 = vadd.f32 %v1186, %v1250
        %v1252 = vpop.f32.mrb[0].mxu0
        %v1253 = vpop.f32.mrb[0].mxu0
        %v1254 = vadd.f32 %v1189, %v1253
        %v1255 = vpop.f32.mrb[0].mxu0
        %1256 = vdwg.mxu0
        %v1258 = vlaneseq
        %v1259 = vshrl.u32 %v1258, 7
        %v1260 = vsub.s32 0, %v1259
        %v1261 = vrot.slane %v894, %v1260
        %v1263 = vadd.f32 %v1261, %v1227
        %v1264 = vadd.f32 %v1261, %v1230
        %v1265 = vadd.f32 %v1261, %v1235
        %v1266 = vadd.f32 %v1261, %v1238
        %v1267 = vadd.f32 %v1261, %v1243
        %v1268 = vadd.f32 %v1261, %v1246
        %v1269 = vadd.f32 %v1261, %v1251
        %v1270 = vadd.f32 %v1261, %v1254
        %v1271 = vunpack.c.l.b16 %v846
        %v1272 = vunpack.c.l.b16 %v892
        %s1273 = scalar_lea.vmem [#allocation7], 192
        %v1274 = vld [vmem:[%s1273] sm:$0xf]
        %v1275 = vld [vmem:[%s1273 + $0x4] sm:$0xf]
        %v1276 = vld [vmem:[%s1273 + $0x8] sm:$0xf]
        %v1277 = vld [vmem:[%s1273 + $0xc] sm:$0xf]
        %v1278 = vld [vmem:[%s1273 + $0x10] sm:$0xf]
        %v1279 = vld [vmem:[%s1273 + $0x14] sm:$0xf]
        %v1280 = vld [vmem:[%s1273 + $0x18] sm:$0xf]
        %v1281 = vld [vmem:[%s1273 + $0x1c] sm:$0xf]
        %v1282 = vld [vmem:[%s1273 + $0x20] sm:$0xf]
        %v1283 = vld [vmem:[%s1273 + $0x24] sm:$0xf]
        %v1284 = vld [vmem:[%s1273 + $0x28] sm:$0xf]
        %v1285 = vld [vmem:[%s1273 + $0x2c] sm:$0xf]
        %v1286 = vld [vmem:[%s1273 + $0x30] sm:$0xf]
        %v1287 = vld [vmem:[%s1273 + $0x34] sm:$0xf]
        %v1288 = vld [vmem:[%s1273 + $0x38] sm:$0xf]
        %v1289 = vld [vmem:[%s1273 + $0x3c] sm:$0xf]
        %v1290 = vld [vmem:[%s1273 + $0x40] sm:$0xf]
        %v1291 = vld [vmem:[%s1273 + $0x44] sm:$0xf]
        %v1292 = vld [vmem:[%s1273 + $0x48] sm:$0xf]
        %v1293 = vld [vmem:[%s1273 + $0x4c] sm:$0xf]
        %v1294 = vld [vmem:[%s1273 + $0x50] sm:$0xf]
        %v1295 = vld [vmem:[%s1273 + $0x54] sm:$0xf]
        %v1296 = vld [vmem:[%s1273 + $0x58] sm:$0xf]
        %v1297 = vld [vmem:[%s1273 + $0x5c] sm:$0xf]
        %v1298 = vld [vmem:[%s1273 + $0x60] sm:$0xf]
        %v1299 = vld [vmem:[%s1273 + $0x64] sm:$0xf]
        %v1300 = vld [vmem:[%s1273 + $0x68] sm:$0xf]
        %v1301 = vld [vmem:[%s1273 + $0x6c] sm:$0xf]
        %v1302 = vld [vmem:[%s1273 + $0x70] sm:$0xf]
        %v1303 = vld [vmem:[%s1273 + $0x74] sm:$0xf]
        %v1304 = vld [vmem:[%s1273 + $0x78] sm:$0xf]
        %v1305 = vld [vmem:[%s1273 + $0x7c] sm:$0xf]
        %v1306 = vld [vmem:[%s1273 + $0x80] sm:$0xf]
        %v1307 = vld [vmem:[%s1273 + $0x84] sm:$0xf]
        %v1308 = vld [vmem:[%s1273 + $0x88] sm:$0xf]
        %v1309 = vld [vmem:[%s1273 + $0x8c] sm:$0xf]
        %v1310 = vld [vmem:[%s1273 + $0x90] sm:$0xf]
        %v1311 = vld [vmem:[%s1273 + $0x94] sm:$0xf]
        %v1312 = vld [vmem:[%s1273 + $0x98] sm:$0xf]
        %v1313 = vld [vmem:[%s1273 + $0x9c] sm:$0xf]
        %v1314 = vld [vmem:[%s1273 + $0xa0] sm:$0xf]
        %v1315 = vld [vmem:[%s1273 + $0xa4] sm:$0xf]
        %v1316 = vld [vmem:[%s1273 + $0xa8] sm:$0xf]
        %v1317 = vld [vmem:[%s1273 + $0xac] sm:$0xf]
        %v1318 = vld [vmem:[%s1273 + $0xb0] sm:$0xf]
        %v1319 = vld [vmem:[%s1273 + $0xb4] sm:$0xf]
        %v1320 = vld [vmem:[%s1273 + $0xb8] sm:$0xf]
        %v1321 = vld [vmem:[%s1273 + $0xbc] sm:$0xf]
        %v1322 = vpack.c.b16 %v758, %v756
        %v1323 = vpack.c.b16 %v899, %v897
        %v1324 = vpack.c.b16 %v900, %v898
        %v1325 = vpack.c.b16 %v762, %v760
        %v1326 = vpack.c.b16 %v903, %v901
        %v1327 = vpack.c.b16 %v904, %v902
        %v1328 = vpack.c.b16 %v766, %v764
        %v1329 = vpack.c.b16 %v907, %v905
        %v1330 = vpack.c.b16 %v908, %v906
        %v1331 = vpack.c.b16 %v770, %v768
        %v1332 = vpack.c.b16 %v1271, %v909
        %v1333 = vpack.c.b16 %v1272, %v910
        %v1394 = vunpack.c.l.b16 %v1274
        %v1395 = vunpack.c.l.b16 %v1275
        %v1396 = vunpack.c.l.b16 %v1276
        %v1397 = vunpack.c.l.b16 %v1277
        %v1398 = vunpack.c.l.b16 %v1278
        %v1399 = vunpack.c.l.b16 %v1279
        %v1400 = vunpack.c.l.b16 %v1280
        %v1401 = vunpack.c.l.b16 %v1281
        %v1402 = vunpack.c.l.b16 %v1282
        %v1403 = vunpack.c.l.b16 %v1283
        %v1404 = vunpack.c.l.b16 %v1284
        %v1405 = vunpack.c.l.b16 %v1285
        %v1406 = vunpack.c.l.b16 %v1286
        %v1407 = vunpack.c.l.b16 %v1287
        %v1408 = vunpack.c.l.b16 %v1288
        %v1409 = vunpack.c.l.b16 %v1289
        %v1410 = vunpack.c.l.b16 %v1290
        %v1411 = vunpack.c.l.b16 %v1291
        %v1412 = vunpack.c.l.b16 %v1292
        %v1413 = vunpack.c.l.b16 %v1293
        %v1414 = vunpack.c.l.b16 %v1294
        %v1415 = vunpack.c.l.b16 %v1295
        %v1416 = vunpack.c.l.b16 %v1296
        %v1417 = vunpack.c.l.b16 %v1297
        %v1418 = vunpack.c.l.b16 %v1298
        %v1419 = vunpack.c.l.b16 %v1299
        %v1420 = vunpack.c.l.b16 %v1300
        %v1421 = vunpack.c.l.b16 %v1301
        %v1422 = vunpack.c.l.b16 %v1302
        %v1423 = vunpack.c.l.b16 %v1303
        %v1424 = vunpack.c.l.b16 %v1304
        %v1425 = vunpack.c.l.b16 %v1305
        %v1426 = vunpack.c.l.b16 %v1306
        %v1427 = vunpack.c.l.b16 %v1307
        %v1428 = vunpack.c.l.b16 %v1308
        %v1429 = vunpack.c.l.b16 %v1309
        %v1430 = vunpack.c.l.b16 %v1310
        %v1431 = vunpack.c.l.b16 %v1311
        %v1432 = vunpack.c.l.b16 %v1312
        %v1433 = vunpack.c.l.b16 %v1313
        %v1434 = vunpack.c.l.b16 %v1314
        %v1435 = vunpack.c.l.b16 %v1315
        %v1436 = vunpack.c.l.b16 %v1316
        %v1437 = vunpack.c.l.b16 %v1317
        %v1438 = vunpack.c.l.b16 %v1318
        %v1439 = vunpack.c.l.b16 %v1319
        %v1440 = vunpack.c.l.b16 %v1320
        %v1441 = vunpack.c.l.b16 %v1321
        %v1442 = vpack.c.b16 %v1395, %v1394
        %v1443 = vpack.c.b16 %v1397, %v1396
        %v1444 = vpack.c.b16 %v1399, %v1398
        %v1445 = vpack.c.b16 %v1401, %v1400
        %v1446 = vpack.c.b16 %v1403, %v1402
        %v1447 = vpack.c.b16 %v1405, %v1404
        %v1448 = vpack.c.b16 %v1407, %v1406
        %v1449 = vpack.c.b16 %v1409, %v1408
        %v1450 = vpack.c.b16 %v1411, %v1410
        %v1451 = vpack.c.b16 %v1413, %v1412
        %v1452 = vpack.c.b16 %v1415, %v1414
        %v1453 = vpack.c.b16 %v1417, %v1416
        %v1454 = vpack.c.b16 %v1419, %v1418
        %v1455 = vpack.c.b16 %v1421, %v1420
        %v1456 = vpack.c.b16 %v1423, %v1422
        %v1457 = vpack.c.b16 %v1425, %v1424
        %v1458 = vpack.c.b16 %v1427, %v1426
        %v1459 = vpack.c.b16 %v1429, %v1428
        %v1460 = vpack.c.b16 %v1431, %v1430
        %v1461 = vpack.c.b16 %v1433, %v1432
        %v1462 = vpack.c.b16 %v1435, %v1434
        %v1463 = vpack.c.b16 %v1437, %v1436
        %v1464 = vpack.c.b16 %v1439, %v1438
        %v1465 = vpack.c.b16 %v1441, %v1440
        %1490 = vmatprep.subr.bf16.mxu0 0
        %1491 = vmatpush1.bf16.msra.mxu0 %v1442
        %1492 = vmatprep.subr.bf16.mxu0 0
        %1493 = vmatpush1.bf16.msra.mxu0 %v1443
        %1494 = vmatprep.subr.bf16.mxu0 0
        %1495 = vmatpush1.bf16.msra.mxu0 %v1444
        %1496 = vmatprep.subr.bf16.mxu0 0
        %1497 = vmatpush1.bf16.msra.mxu0 %v1445
        %1498 = vmatprep.subr.bf16.mxu0 0
        %1499 = vmatpush1.bf16.msra.mxu0 %v1446
        %1500 = vmatprep.subr.bf16.mxu0 0
        %1501 = vmatpush1.bf16.msra.mxu0 %v1447
        %1502 = vmatprep.subr.bf16.mxu0 0
        %1503 = vmatpush1.bf16.msra.mxu0 %v1448
        %1504 = vmatprep.subr.bf16.mxu0 0
        %1505 = vmatpush1.bf16.msra.mxu0 %v1449
        %1506 = vmatprep.subr.bf16.mxu0 0
        %1507 = vmatpush1.bf16.msra.mxu0 %v1450
        %1508 = vmatprep.subr.bf16.mxu0 0
        %1509 = vmatpush1.bf16.msra.mxu0 %v1451
        %1510 = vmatprep.subr.bf16.mxu0 0
        %1511 = vmatpush1.bf16.msra.mxu0 %v1452
        %1512 = vmatprep.subr.bf16.mxu0 0
        %1513 = vmatpush1.bf16.msra.mxu0 %v1453
        %1514 = vmatprep.subr.bf16.mxu0 0
        %1515 = vmatpush1.bf16.msra.mxu0 %v1454
        %1516 = vmatprep.subr.bf16.mxu0 0
        %1517 = vmatpush1.bf16.msra.mxu0 %v1455
        %1518 = vmatprep.subr.bf16.mxu0 0
        %1519 = vmatpush1.bf16.msra.mxu0 %v1456
        %1520 = vmatprep.subr.bf16.mxu0 0
        %1521 = vmatpush1.bf16.msra.mxu0 %v1457
        %1522 = vmatprep.mubr.bf16.mxu0 %v1323
        %1523 = vmatmul.mubr.bf16.gmra.mrb[0].mxu0 %v1322
        %v1524 = vpop.f32.mrb[0].mxu0
        %v1525 = vadd.f32 0.0, %v1524
        %v1526 = vpop.f32.mrb[0].mxu0
        %v1527 = vpop.f32.mrb[0].mxu0
        %v1528 = vadd.f32 0.0, %v1527
        %v1529 = vpop.f32.mrb[0].mxu0
        %1530 = vmatprep.mubr.bf16.mxu0 %v1326
        %1531 = vmatmul.mubr.bf16.gmra.mrb[0].mxu0 %v1325
        %v1532 = vpop.f32.mrb[0].mxu0
        %v1533 = vadd.f32 0.0, %v1532
        %v1534 = vpop.f32.mrb[0].mxu0
        %v1535 = vpop.f32.mrb[0].mxu0
        %v1536 = vadd.f32 0.0, %v1535
        %v1537 = vpop.f32.mrb[0].mxu0
        %1538 = vmatprep.mubr.bf16.mxu0 %v1329
        %1539 = vmatmul.mubr.bf16.gmra.mrb[0].mxu0 %v1328
        %v1540 = vpop.f32.mrb[0].mxu0
        %v1541 = vadd.f32 0.0, %v1540
        %v1542 = vpop.f32.mrb[0].mxu0
        %v1543 = vpop.f32.mrb[0].mxu0
        %v1544 = vadd.f32 0.0, %v1543
        %v1545 = vpop.f32.mrb[0].mxu0
        %1546 = vmatprep.mubr.bf16.mxu0 %v1332
        %1547 = vmatmul.mubr.bf16.gmra.mrb[0].mxu0 %v1331
        %v1548 = vpop.f32.mrb[0].mxu0
        %v1549 = vadd.f32 0.0, %v1548
        %v1550 = vpop.f32.mrb[0].mxu0
        %v1551 = vpop.f32.mrb[0].mxu0
        %v1552 = vadd.f32 0.0, %v1551
        %v1553 = vpop.f32.mrb[0].mxu0
        %1554 = vdwg.mxu0
        %1555 = vmatprep.subr.bf16.mxu0 0
        %1556 = vmatpush1.bf16.msra.mxu0 %v1458
        %1557 = vmatprep.subr.bf16.mxu0 0
        %1558 = vmatpush1.bf16.msra.mxu0 %v1459
        %1559 = vmatprep.subr.bf16.mxu0 0
        %1560 = vmatpush1.bf16.msra.mxu0 %v1460
        %1561 = vmatprep.subr.bf16.mxu0 0
        %1562 = vmatpush1.bf16.msra.mxu0 %v1461
        %1563 = vmatprep.subr.bf16.mxu0 0
        %1564 = vmatpush1.bf16.msra.mxu0 %v1462
        %1565 = vmatprep.subr.bf16.mxu0 0
        %1566 = vmatpush1.bf16.msra.mxu0 %v1463
        %1567 = vmatprep.subr.bf16.mxu0 0
        %1568 = vmatpush1.bf16.msra.mxu0 %v1464
        %1569 = vmatprep.subr.bf16.mxu0 0
        %1570 = vmatpush1.bf16.msra.mxu0 %v1465
        %1571 = vmatprep.subr.bf16.mxu0 0
        %1572 = vmatpush1.bf16.msra.mxu0 0
        %1573 = vmatprep.subr.bf16.mxu0 0
        %1574 = vmatpush1.bf16.msra.mxu0 0
        %1575 = vmatprep.subr.bf16.mxu0 0
        %1576 = vmatpush1.bf16.msra.mxu0 0
        %1577 = vmatprep.subr.bf16.mxu0 0
        %1578 = vmatpush1.bf16.msra.mxu0 0
        %1579 = vmatprep.subr.bf16.mxu0 0
        %1580 = vmatpush1.bf16.msra.mxu0 0
        %1581 = vmatprep.subr.bf16.mxu0 0
        %1582 = vmatpush1.bf16.msra.mxu0 0
        %1583 = vmatprep.subr.bf16.mxu0 0
        %1584 = vmatpush1.bf16.msra.mxu0 0
        %1585 = vmatprep.subr.bf16.mxu0 0
        %1586 = vmatpush1.bf16.msra.mxu0 0
        %1587 = vmatprep.mubr.bf16.mxu0 0
        %1588 = vmatmul.mubr.bf16.gmra.mrb[0].mxu0 %v1324
        %v1589 = vpop.f32.mrb[0].mxu0
        %v1590 = vadd.f32 %v1525, %v1589
        %v1591 = vpop.f32.mrb[0].mxu0
        %v1592 = vpop.f32.mrb[0].mxu0
        %v1593 = vadd.f32 %v1528, %v1592
        %v1594 = vpop.f32.mrb[0].mxu0
        %1595 = vmatprep.mubr.bf16.mxu0 0
        %1596 = vmatmul.mubr.bf16.gmra.mrb[0].mxu0 %v1327
        %v1597 = vpop.f32.mrb[0].mxu0
        %v1598 = vadd.f32 %v1533, %v1597
        %v1599 = vpop.f32.mrb[0].mxu0
        %v1600 = vpop.f32.mrb[0].mxu0
        %v1601 = vadd.f32 %v1536, %v1600
        %v1602 = vpop.f32.mrb[0].mxu0
        %1603 = vmatprep.mubr.bf16.mxu0 0
        %1604 = vmatmul.mubr.bf16.gmra.mrb[0].mxu0 %v1330
        %v1605 = vpop.f32.mrb[0].mxu0
        %v1606 = vadd.f32 %v1541, %v1605
        %v1607 = vpop.f32.mrb[0].mxu0
        %v1608 = vpop.f32.mrb[0].mxu0
        %v1609 = vadd.f32 %v1544, %v1608
        %v1610 = vpop.f32.mrb[0].mxu0
        %1611 = vmatprep.mubr.bf16.mxu0 0
        %1612 = vmatmul.mubr.bf16.gmra.mrb[0].mxu0 %v1333
        %v1613 = vpop.f32.mrb[0].mxu0
        %v1614 = vadd.f32 %v1549, %v1613
        %v1615 = vpop.f32.mrb[0].mxu0
        %v1616 = vpop.f32.mrb[0].mxu0
        %v1617 = vadd.f32 %v1552, %v1616
        %v1618 = vpop.f32.mrb[0].mxu0
        %1619 = vdwg.mxu0
        %v1620 = vadd.f32 %v1263, %v1590
        %v1621 = vadd.f32 %v1264, %v1593
        %v1622 = vadd.f32 %v1265, %v1598
        %v1623 = vadd.f32 %v1266, %v1601
        %v1624 = vadd.f32 %v1267, %v1606
        %v1625 = vadd.f32 %v1268, %v1609
        %v1626 = vadd.f32 %v1269, %v1614
        %v1627 = vadd.f32 %v1270, %v1617
        %v1628 = vunpack.c.l.b16 %v853
        %v1629 = vunpack.c.l.b16 %v893
        %s1630 = scalar_lea.vmem [#allocation7], 384
        %v1631 = vld [vmem:[%s1630] sm:$0xf]
        %v1632 = vld [vmem:[%s1630 + $0x4] sm:$0xf]
        %v1633 = vld [vmem:[%s1630 + $0x8] sm:$0xf]
        %v1634 = vld [vmem:[%s1630 + $0xc] sm:$0xf]
        %v1635 = vld [vmem:[%s1630 + $0x10] sm:$0xf]
        %v1636 = vld [vmem:[%s1630 + $0x14] sm:$0xf]
        %v1637 = vld [vmem:[%s1630 + $0x18] sm:$0xf]
        %v1638 = vld [vmem:[%s1630 + $0x1c] sm:$0xf]
        %v1639 = vld [vmem:[%s1630 + $0x20] sm:$0xf]
        %v1640 = vld [vmem:[%s1630 + $0x24] sm:$0xf]
        %v1641 = vld [vmem:[%s1630 + $0x28] sm:$0xf]
        %v1642 = vld [vmem:[%s1630 + $0x2c] sm:$0xf]
        %v1643 = vld [vmem:[%s1630 + $0x30] sm:$0xf]
        %v1644 = vld [vmem:[%s1630 + $0x34] sm:$0xf]
        %v1645 = vld [vmem:[%s1630 + $0x38] sm:$0xf]
        %v1646 = vld [vmem:[%s1630 + $0x3c] sm:$0xf]
        %v1647 = vld [vmem:[%s1630 + $0x40] sm:$0xf]
        %v1648 = vld [vmem:[%s1630 + $0x44] sm:$0xf]
        %v1649 = vld [vmem:[%s1630 + $0x48] sm:$0xf]
        %v1650 = vld [vmem:[%s1630 + $0x4c] sm:$0xf]
        %v1651 = vld [vmem:[%s1630 + $0x50] sm:$0xf]
        %v1652 = vld [vmem:[%s1630 + $0x54] sm:$0xf]
        %v1653 = vld [vmem:[%s1630 + $0x58] sm:$0xf]
        %v1654 = vld [vmem:[%s1630 + $0x5c] sm:$0xf]
        %v1655 = vld [vmem:[%s1630 + $0x60] sm:$0xf]
        %v1656 = vld [vmem:[%s1630 + $0x64] sm:$0xf]
        %v1657 = vld [vmem:[%s1630 + $0x68] sm:$0xf]
        %v1658 = vld [vmem:[%s1630 + $0x6c] sm:$0xf]
        %v1659 = vld [vmem:[%s1630 + $0x70] sm:$0xf]
        %v1660 = vld [vmem:[%s1630 + $0x74] sm:$0xf]
        %v1661 = vld [vmem:[%s1630 + $0x78] sm:$0xf]
        %v1662 = vld [vmem:[%s1630 + $0x7c] sm:$0xf]
        %v1663 = vld [vmem:[%s1630 + $0x80] sm:$0xf]
        %v1664 = vld [vmem:[%s1630 + $0x84] sm:$0xf]
        %v1665 = vld [vmem:[%s1630 + $0x88] sm:$0xf]
        %v1666 = vld [vmem:[%s1630 + $0x8c] sm:$0xf]
        %v1667 = vld [vmem:[%s1630 + $0x90] sm:$0xf]
        %v1668 = vld [vmem:[%s1630 + $0x94] sm:$0xf]
        %v1669 = vld [vmem:[%s1630 + $0x98] sm:$0xf]
        %v1670 = vld [vmem:[%s1630 + $0x9c] sm:$0xf]
        %v1671 = vld [vmem:[%s1630 + $0xa0] sm:$0xf]
        %v1672 = vld [vmem:[%s1630 + $0xa4] sm:$0xf]
        %v1673 = vld [vmem:[%s1630 + $0xa8] sm:$0xf]
        %v1674 = vld [vmem:[%s1630 + $0xac] sm:$0xf]
        %v1675 = vld [vmem:[%s1630 + $0xb0] sm:$0xf]
        %v1676 = vld [vmem:[%s1630 + $0xb4] sm:$0xf]
        %v1677 = vld [vmem:[%s1630 + $0xb8] sm:$0xf]
        %v1678 = vld [vmem:[%s1630 + $0xbc] sm:$0xf]
        %v1679 = vpack.c.b16 %v772, %v770
        %v1680 = vpack.c.b16 %v1628, %v1271
        %v1681 = vpack.c.b16 %v1629, %v1272
        %v1733 = vunpack.c.l.b16 %v1631
        %v1734 = vunpack.c.l.b16 %v1632
        %v1735 = vunpack.c.l.b16 %v1633
        %v1736 = vunpack.c.l.b16 %v1634
        %v1737 = vunpack.c.l.b16 %v1635
        %v1738 = vunpack.c.l.b16 %v1636
        %v1739 = vunpack.c.l.b16 %v1637
        %v1740 = vunpack.c.l.b16 %v1638
        %v1741 = vunpack.c.l.b16 %v1639
        %v1742 = vunpack.c.l.b16 %v1640
        %v1743 = vunpack.c.l.b16 %v1641
        %v1744 = vunpack.c.l.b16 %v1642
        %v1745 = vunpack.c.l.b16 %v1643
        %v1746 = vunpack.c.l.b16 %v1644
        %v1747 = vunpack.c.l.b16 %v1645
        %v1748 = vunpack.c.l.b16 %v1646
        %v1749 = vunpack.c.l.b16 %v1647
        %v1750 = vunpack.c.l.b16 %v1648
        %v1751 = vunpack.c.l.b16 %v1649
        %v1752 = vunpack.c.l.b16 %v1650
        %v1753 = vunpack.c.l.b16 %v1651
        %v1754 = vunpack.c.l.b16 %v1652
        %v1755 = vunpack.c.l.b16 %v1653
        %v1756 = vunpack.c.l.b16 %v1654
        %v1757 = vunpack.c.l.b16 %v1655
        %v1758 = vunpack.c.l.b16 %v1656
        %v1759 = vunpack.c.l.b16 %v1657
        %v1760 = vunpack.c.l.b16 %v1658
        %v1761 = vunpack.c.l.b16 %v1659
        %v1762 = vunpack.c.l.b16 %v1660
        %v1763 = vunpack.c.l.b16 %v1661
        %v1764 = vunpack.c.l.b16 %v1662
        %v1765 = vunpack.c.l.b16 %v1663
        %v1766 = vunpack.c.l.b16 %v1664
        %v1767 = vunpack.c.l.b16 %v1665
        %v1768 = vunpack.c.l.b16 %v1666
        %v1769 = vunpack.c.l.b16 %v1667
        %v1770 = vunpack.c.l.b16 %v1668
        %v1771 = vunpack.c.l.b16 %v1669
        %v1772 = vunpack.c.l.b16 %v1670
        %v1773 = vunpack.c.l.b16 %v1671
        %v1774 = vunpack.c.l.b16 %v1672
        %v1775 = vunpack.c.l.b16 %v1673
        %v1776 = vunpack.c.l.b16 %v1674
        %v1777 = vunpack.c.l.b16 %v1675
        %v1778 = vunpack.c.l.b16 %v1676
        %v1779 = vunpack.c.l.b16 %v1677
        %v1780 = vunpack.c.l.b16 %v1678
        %v1781 = vpack.c.b16 %v1734, %v1733
        %v1782 = vpack.c.b16 %v1736, %v1735
        %v1783 = vpack.c.b16 %v1738, %v1737
        %v1784 = vpack.c.b16 %v1740, %v1739
        %v1785 = vpack.c.b16 %v1742, %v1741
        %v1786 = vpack.c.b16 %v1744, %v1743
        %v1787 = vpack.c.b16 %v1746, %v1745
        %v1788 = vpack.c.b16 %v1748, %v1747
        %v1789 = vpack.c.b16 %v1750, %v1749
        %v1790 = vpack.c.b16 %v1752, %v1751
        %v1791 = vpack.c.b16 %v1754, %v1753
        %v1792 = vpack.c.b16 %v1756, %v1755
        %v1793 = vpack.c.b16 %v1758, %v1757
        %v1794 = vpack.c.b16 %v1760, %v1759
        %v1795 = vpack.c.b16 %v1762, %v1761
        %v1796 = vpack.c.b16 %v1764, %v1763
        %v1797 = vpack.c.b16 %v1766, %v1765
        %v1798 = vpack.c.b16 %v1768, %v1767
        %v1799 = vpack.c.b16 %v1770, %v1769
        %v1800 = vpack.c.b16 %v1772, %v1771
        %v1801 = vpack.c.b16 %v1774, %v1773
        %v1802 = vpack.c.b16 %v1776, %v1775
        %v1803 = vpack.c.b16 %v1778, %v1777
        %v1804 = vpack.c.b16 %v1780, %v1779
        %1829 = vmatprep.subr.bf16.mxu0 0
        %1830 = vmatpush1.bf16.msra.mxu0 %v1781
        %1831 = vmatprep.subr.bf16.mxu0 0
        %1832 = vmatpush1.bf16.msra.mxu0 %v1782
        %1833 = vmatprep.subr.bf16.mxu0 0
        %1834 = vmatpush1.bf16.msra.mxu0 %v1783
        %1835 = vmatprep.subr.bf16.mxu0 0
        %1836 = vmatpush1.bf16.msra.mxu0 %v1784
        %1837 = vmatprep.subr.bf16.mxu0 0
        %1838 = vmatpush1.bf16.msra.mxu0 %v1785
        %1839 = vmatprep.subr.bf16.mxu0 0
        %1840 = vmatpush1.bf16.msra.mxu0 %v1786
        %1841 = vmatprep.subr.bf16.mxu0 0
        %1842 = vmatpush1.bf16.msra.mxu0 %v1787
        %1843 = vmatprep.subr.bf16.mxu0 0
        %1844 = vmatpush1.bf16.msra.mxu0 %v1788
        %1845 = vmatprep.subr.bf16.mxu0 0
        %1846 = vmatpush1.bf16.msra.mxu0 %v1789
        %1847 = vmatprep.subr.bf16.mxu0 0
        %1848 = vmatpush1.bf16.msra.mxu0 %v1790
        %1849 = vmatprep.subr.bf16.mxu0 0
        %1850 = vmatpush1.bf16.msra.mxu0 %v1791
        %1851 = vmatprep.subr.bf16.mxu0 0
        %1852 = vmatpush1.bf16.msra.mxu0 %v1792
        %1853 = vmatprep.subr.bf16.mxu0 0
        %1854 = vmatpush1.bf16.msra.mxu0 %v1793
        %1855 = vmatprep.subr.bf16.mxu0 0
        %1856 = vmatpush1.bf16.msra.mxu0 %v1794
        %1857 = vmatprep.subr.bf16.mxu0 0
        %1858 = vmatpush1.bf16.msra.mxu0 %v1795
        %1859 = vmatprep.subr.bf16.mxu0 0
        %1860 = vmatpush1.bf16.msra.mxu0 %v1796
        %1861 = vmatprep.mubr.bf16.mxu0 %v963
        %1862 = vmatmul.mubr.bf16.gmra.mrb[0].mxu0 %v962
        %v1863 = vpop.f32.mrb[0].mxu0
        %v1864 = vadd.f32 0.0, %v1863
        %v1865 = vpop.f32.mrb[0].mxu0
        %v1866 = vpop.f32.mrb[0].mxu0
        %v1867 = vadd.f32 0.0, %v1866
        %v1868 = vpop.f32.mrb[0].mxu0
        %1869 = vmatprep.mubr.bf16.mxu0 %v966
        %1870 = vmatmul.mubr.bf16.gmra.mrb[0].mxu0 %v965
        %v1871 = vpop.f32.mrb[0].mxu0
        %v1872 = vadd.f32 0.0, %v1871
        %v1873 = vpop.f32.mrb[0].mxu0
        %v1874 = vpop.f32.mrb[0].mxu0
        %v1875 = vadd.f32 0.0, %v1874
        %v1876 = vpop.f32.mrb[0].mxu0
        %1877 = vmatprep.mubr.bf16.mxu0 %v969
        %1878 = vmatmul.mubr.bf16.gmra.mrb[0].mxu0 %v968
        %v1879 = vpop.f32.mrb[0].mxu0
        %v1880 = vadd.f32 0.0, %v1879
        %v1881 = vpop.f32.mrb[0].mxu0
        %v1882 = vpop.f32.mrb[0].mxu0
        %v1883 = vadd.f32 0.0, %v1882
        %v1884 = vpop.f32.mrb[0].mxu0
        %1885 = vmatprep.mubr.bf16.mxu0 %v1680
        %1886 = vmatmul.mubr.bf16.gmra.mrb[0].mxu0 %v1679
        %v1887 = vpop.f32.mrb[0].mxu0
        %v1888 = vadd.f32 0.0, %v1887
        %v1889 = vpop.f32.mrb[0].mxu0
        %v1890 = vpop.f32.mrb[0].mxu0
        %v1891 = vadd.f32 0.0, %v1890
        %v1892 = vpop.f32.mrb[0].mxu0
        %1893 = vdwg.mxu0
        %1894 = vmatprep.subr.bf16.mxu0 0
        %1895 = vmatpush1.bf16.msra.mxu0 %v1797
        %1896 = vmatprep.subr.bf16.mxu0 0
        %1897 = vmatpush1.bf16.msra.mxu0 %v1798
        %1898 = vmatprep.subr.bf16.mxu0 0
        %1899 = vmatpush1.bf16.msra.mxu0 %v1799
        %1900 = vmatprep.subr.bf16.mxu0 0
        %1901 = vmatpush1.bf16.msra.mxu0 %v1800
        %1902 = vmatprep.subr.bf16.mxu0 0
        %1903 = vmatpush1.bf16.msra.mxu0 %v1801
        %1904 = vmatprep.subr.bf16.mxu0 0
        %1905 = vmatpush1.bf16.msra.mxu0 %v1802
        %1906 = vmatprep.subr.bf16.mxu0 0
        %1907 = vmatpush1.bf16.msra.mxu0 %v1803
        %1908 = vmatprep.subr.bf16.mxu0 0
        %1909 = vmatpush1.bf16.msra.mxu0 %v1804
        %1910 = vmatprep.subr.bf16.mxu0 0
        %1911 = vmatpush1.bf16.msra.mxu0 0
        %1912 = vmatprep.subr.bf16.mxu0 0
        %1913 = vmatpush1.bf16.msra.mxu0 0
        %1914 = vmatprep.subr.bf16.mxu0 0
        %1915 = vmatpush1.bf16.msra.mxu0 0
        %1916 = vmatprep.subr.bf16.mxu0 0
        %1917 = vmatpush1.bf16.msra.mxu0 0
        %1918 = vmatprep.subr.bf16.mxu0 0
        %1919 = vmatpush1.bf16.msra.mxu0 0
        %1920 = vmatprep.subr.bf16.mxu0 0
        %1921 = vmatpush1.bf16.msra.mxu0 0
        %1922 = vmatprep.subr.bf16.mxu0 0
        %1923 = vmatpush1.bf16.msra.mxu0 0
        %1924 = vmatprep.subr.bf16.mxu0 0
        %1925 = vmatpush1.bf16.msra.mxu0 0
        %1926 = vmatprep.mubr.bf16.mxu0 0
        %1927 = vmatmul.mubr.bf16.gmra.mrb[0].mxu0 %v964
        %v1928 = vpop.f32.mrb[0].mxu0
        %v1929 = vadd.f32 %v1864, %v1928
        %v1930 = vpop.f32.mrb[0].mxu0
        %v1931 = vpop.f32.mrb[0].mxu0
        %v1932 = vadd.f32 %v1867, %v1931
        %v1933 = vpop.f32.mrb[0].mxu0
        %1934 = vmatprep.mubr.bf16.mxu0 0
        %1935 = vmatmul.mubr.bf16.gmra.mrb[0].mxu0 %v967
        %v1936 = vpop.f32.mrb[0].mxu0
        %v1937 = vadd.f32 %v1872, %v1936
        %v1938 = vpop.f32.mrb[0].mxu0
        %v1939 = vpop.f32.mrb[0].mxu0
        %v1940 = vadd.f32 %v1875, %v1939
        %v1941 = vpop.f32.mrb[0].mxu0
        %1942 = vmatprep.mubr.bf16.mxu0 0
        %1943 = vmatmul.mubr.bf16.gmra.mrb[0].mxu0 %v970
        %v1944 = vpop.f32.mrb[0].mxu0
        %v1945 = vadd.f32 %v1880, %v1944
        %v1946 = vpop.f32.mrb[0].mxu0
        %v1947 = vpop.f32.mrb[0].mxu0
        %v1948 = vadd.f32 %v1883, %v1947
        %v1949 = vpop.f32.mrb[0].mxu0
        %1950 = vmatprep.mubr.bf16.mxu0 0
        %1951 = vmatmul.mubr.bf16.gmra.mrb[0].mxu0 %v1681
        %v1952 = vpop.f32.mrb[0].mxu0
        %v1953 = vadd.f32 %v1888, %v1952
        %v1954 = vpop.f32.mrb[0].mxu0
        %v1955 = vpop.f32.mrb[0].mxu0
        %v1956 = vadd.f32 %v1891, %v1955
        %v1957 = vpop.f32.mrb[0].mxu0
        %1958 = vdwg.mxu0
        %v1959 = vadd.f32 %v1620, %v1929
        %v1960 = vadd.f32 %v1621, %v1932
        %v1961 = vadd.f32 %v1622, %v1937
        %v1962 = vadd.f32 %v1623, %v1940
        %v1963 = vadd.f32 %v1624, %v1945
        %v1964 = vadd.f32 %v1625, %v1948
        %v1965 = vadd.f32 %v1626, %v1953
        %v1966 = vadd.f32 %v1627, %v1956
        %v1967 = vsel %vm703, 1, 0
        %vm1968 = vcmp.eq.s32.totalorder %v1967, 1
        %v1969 = vsel %vm1968, %v1959, 0.0
        %v1970 = vsel %vm1968, %v1960, 0.0
        %v1971 = vsel %vm1968, %v1961, 0.0
        %v1972 = vsel %vm1968, %v1962, 0.0
        %v1973 = vsel %vm1968, %v1963, 0.0
        %v1974 = vsel %vm1968, %v1964, 0.0
        %v1975 = vsel %vm1968, %v1965, 0.0
        %v1976 = vsel %vm1968, %v1966, 0.0
        %v1977 = vadd.f32 %v1969, %v1970
        %v1978 = vadd.f32 %v1977, %v1971
        %v1979 = vadd.f32 %v1978, %v1972
        %v1980 = vadd.f32 %v1979, %v1973
        %v1981 = vadd.f32 %v1980, %v1974
        %v1982 = vadd.f32 %v1981, %v1975
        %v1983 = vadd.f32 %v1982, %v1976
        %v1984 = vrot.slane %v1983, 4
        %v1985 = vadd.f32 %v1983, %v1984
        %v1986 = vrot.slane %v1985, 2
        %v1987 = vadd.f32 %v1985, %v1986
        %v1988 = vrot.slane %v1987, 1
        %v1989 = vadd.f32 %v1987, %v1988
        %v1990 = vrcp.pop 64.0
        %v1991 = vmul.f32 %v1989, %v1990
        %v1992 = vsub.f32 %v1959, %v1991
        %v1993 = vsub.f32 %v1960, %v1991
        %v1994 = vsub.f32 %v1961, %v1991
        %v1995 = vsub.f32 %v1962, %v1991
        %v1996 = vsub.f32 %v1963, %v1991
        %v1997 = vsub.f32 %v1964, %v1991
        %v1998 = vsub.f32 %v1965, %v1991
        %v1999 = vsub.f32 %v1966, %v1991
        %v2000 = vsel %vm1968, %v1992, 0.0
        %v2001 = vsel %vm1968, %v1993, 0.0
        %v2002 = vsel %vm1968, %v1994, 0.0
        %v2003 = vsel %vm1968, %v1995, 0.0
        %v2004 = vsel %vm1968, %v1996, 0.0
        %v2005 = vsel %vm1968, %v1997, 0.0
        %v2006 = vsel %vm1968, %v1998, 0.0
        %v2007 = vsel %vm1968, %v1999, 0.0
        %v2008 = vmul.f32 %v2000, %v2000
        %v2009 = vmul.f32 %v2001, %v2001
        %v2010 = vmul.f32 %v2002, %v2002
        %v2011 = vmul.f32 %v2003, %v2003
        %v2012 = vmul.f32 %v2004, %v2004
        %v2013 = vmul.f32 %v2005, %v2005
        %v2014 = vmul.f32 %v2006, %v2006
        %v2015 = vmul.f32 %v2007, %v2007
        %v2016 = vadd.f32 %v2008, %v2009
        %v2017 = vadd.f32 %v2016, %v2010
        %v2018 = vadd.f32 %v2017, %v2011
        %v2019 = vadd.f32 %v2018, %v2012
        %v2020 = vadd.f32 %v2019, %v2013
        %v2021 = vadd.f32 %v2020, %v2014
        %v2022 = vadd.f32 %v2021, %v2015
        %v2023 = vrot.slane %v2022, 4
        %v2024 = vadd.f32 %v2022, %v2023
        %v2025 = vrot.slane %v2024, 2
        %v2026 = vadd.f32 %v2024, %v2025
        %v2027 = vrot.slane %v2026, 1
        %v2028 = vadd.f32 %v2026, %v2027
        %v2029 = vmul.f32 %v2028, %v1990
        %v2030 = vadd.f32 %v2029, 1e-05
        %v2031 = vrsqrt.pop %v2030
        %v2032 = vmul.f32 %v1992, %v2031
        %v2033 = vmul.f32 %v1993, %v2031
        %v2034 = vmul.f32 %v1994, %v2031
        %v2035 = vmul.f32 %v1995, %v2031
        %v2036 = vmul.f32 %v1996, %v2031
        %v2037 = vmul.f32 %v1997, %v2031
        %v2038 = vmul.f32 %v1998, %v2031
        %v2039 = vmul.f32 %v1999, %v2031
        %vm2040 = vcmp.ge.f32.partialorder %v2032, 0.0
        %vm2041 = vcmp.ge.f32.partialorder %v2033, 0.0
        %vm2042 = vcmp.ge.f32.partialorder %v2034, 0.0
        %vm2043 = vcmp.ge.f32.partialorder %v2035, 0.0
        %vm2044 = vcmp.ge.f32.partialorder %v2036, 0.0
        %vm2045 = vcmp.ge.f32.partialorder %v2037, 0.0
        %vm2046 = vcmp.ge.f32.partialorder %v2038, 0.0
        %vm2047 = vcmp.ge.f32.partialorder %v2039, 0.0
        %v2048 = vmul.f32 %v2032, 0.01
        %v2049 = vmul.f32 %v2033, 0.01
        %v2050 = vmul.f32 %v2034, 0.01
        %v2051 = vmul.f32 %v2035, 0.01
        %v2052 = vmul.f32 %v2036, 0.01
        %v2053 = vmul.f32 %v2037, 0.01
        %v2054 = vmul.f32 %v2038, 0.01
        %v2055 = vmul.f32 %v2039, 0.01
        %v2056 = vsel %vm2040, %v2032, %v2048
        %v2057 = vsel %vm2041, %v2033, %v2049
        %v2058 = vsel %vm2042, %v2034, %v2050
        %v2059 = vsel %vm2043, %v2035, %v2051
        %v2060 = vsel %vm2044, %v2036, %v2052
        %v2061 = vsel %vm2045, %v2037, %v2053
        %v2062 = vsel %vm2046, %v2038, %v2054
        %v2063 = vsel %vm2047, %v2039, %v2055
        %v2064 = vpack.c.bf16 %v2056, %v2056
        %v2065 = vpack.c.bf16 %v2057, %v2057
        %v2066 = vpack.c.bf16 %v2058, %v2058
        %v2067 = vpack.c.bf16 %v2059, %v2059
        %v2068 = vpack.c.bf16 %v2060, %v2060
        %v2069 = vpack.c.bf16 %v2061, %v2061
        %v2070 = vpack.c.bf16 %v2062, %v2062
        %v2071 = vpack.c.bf16 %v2063, %v2063
        %v2080 = vunpack.c.l.b16 %v2064
        %v2081 = vunpack.c.l.b16 %v2065
        %v2082 = vunpack.c.l.b16 %v2066
        %v2083 = vunpack.c.l.b16 %v2067
        %v2084 = vunpack.c.l.b16 %v2068
        %v2085 = vunpack.c.l.b16 %v2069
        %v2086 = vunpack.c.l.b16 %v2070
        %v2087 = vunpack.c.l.b16 %v2071
        %v2088 = vpack.c.b16 %v2080, %v2080
        %v2089 = vpack.c.b16 %v2081, %v2081
        %v2090 = vpack.c.b16 %v2082, %v2082
        %v2091 = vpack.c.b16 %v2083, %v2083
        %v2092 = vpack.c.b16 %v2084, %v2084
        %v2093 = vpack.c.b16 %v2085, %v2085
        %v2094 = vpack.c.b16 %v2086, %v2086
        %v2095 = vpack.c.b16 %v2087, %v2087
        %v2097 = vshrl.u32 %v2088, 16
        %v2099 = vrot.slane %v2097, 7
        %v2100 = vshll.u32 %v2088, 16
        %v2102 = vor.u32 %v2099, %v2100
        %v2103 = vrot.slane %v2099, 4
        %v2105 = vshrl.u32 %v2089, 16
        %v2107 = vrot.slane %v2105, 7
        %v2108 = vshll.u32 %v2089, 16
        %v2110 = vor.u32 %v2107, %v2108
        %v2111 = vrot.slane %v2107, 4
        %v2113 = vshrl.u32 %v2090, 16
        %v2115 = vrot.slane %v2113, 7
        %v2116 = vshll.u32 %v2090, 16
        %v2118 = vor.u32 %v2115, %v2116
        %v2119 = vrot.slane %v2115, 4
        %v2121 = vshrl.u32 %v2091, 16
        %v2123 = vrot.slane %v2121, 7
        %v2124 = vshll.u32 %v2091, 16
        %v2126 = vor.u32 %v2123, %v2124
        %v2127 = vrot.slane %v2123, 4
        %v2129 = vshrl.u32 %v2092, 16
        %v2131 = vrot.slane %v2129, 7
        %v2132 = vshll.u32 %v2092, 16
        %v2134 = vor.u32 %v2131, %v2132
        %v2135 = vrot.slane %v2131, 4
        %v2137 = vshrl.u32 %v2093, 16
        %v2139 = vrot.slane %v2137, 7
        %v2140 = vshll.u32 %v2093, 16
        %v2142 = vor.u32 %v2139, %v2140
        %v2143 = vrot.slane %v2139, 4
        %v2145 = vshrl.u32 %v2094, 16
        %v2147 = vrot.slane %v2145, 7
        %v2148 = vshll.u32 %v2094, 16
        %v2150 = vor.u32 %v2147, %v2148
        %v2151 = vrot.slane %v2147, 4
        %v2153 = vshrl.u32 %v2095, 16
        %v2155 = vrot.slane %v2153, 7
        %v2156 = vshll.u32 %v2095, 16
        %v2158 = vor.u32 %v2155, %v2156
        %v2159 = vrot.slane %v2155, 4
        %s2176 = scalar_lea.vmem [#allocation3], 8
        %v2177 = vld [vmem:[%s2176] sm:$0xf]
        %v2178 = vsel %vm652, %v2102, %v2177
        %2179 = vst [vmem:[%s2176] sm:$0xf] %v2178
        %v2180 = vld [vmem:[%s2176 + $0x4] sm:$0x1]
        %v2181 = vsel %vm386, %v2103, %v2180
        %2182 = vst [vmem:[%s2176 + $0x4] sm:$0x1] %v2181
        %v2183 = vld [vmem:[%s2176 + $0x8] sm:$0xf]
        %v2184 = vsel %vm652, %v2110, %v2183
        %2185 = vst [vmem:[%s2176 + $0x8] sm:$0xf] %v2184
        %v2186 = vld [vmem:[%s2176 + $0xc] sm:$0x1]
        %v2187 = vsel %vm386, %v2111, %v2186
        %2188 = vst [vmem:[%s2176 + $0xc] sm:$0x1] %v2187
        %v2189 = vld [vmem:[%s2176 + $0x10] sm:$0xf]
        %v2190 = vsel %vm652, %v2118, %v2189
        %2191 = vst [vmem:[%s2176 + $0x10] sm:$0xf] %v2190
        %v2192 = vld [vmem:[%s2176 + $0x14] sm:$0x1]
        %v2193 = vsel %vm386, %v2119, %v2192
        %2194 = vst [vmem:[%s2176 + $0x14] sm:$0x1] %v2193
        %v2195 = vld [vmem:[%s2176 + $0x18] sm:$0xf]
        %v2196 = vsel %vm652, %v2126, %v2195
        %2197 = vst [vmem:[%s2176 + $0x18] sm:$0xf] %v2196
        %v2198 = vld [vmem:[%s2176 + $0x1c] sm:$0x1]
        %v2199 = vsel %vm386, %v2127, %v2198
        %2200 = vst [vmem:[%s2176 + $0x1c] sm:$0x1] %v2199
        %v2201 = vld [vmem:[%s2176 + $0x20] sm:$0xf]
        %v2202 = vsel %vm652, %v2134, %v2201
        %2203 = vst [vmem:[%s2176 + $0x20] sm:$0xf] %v2202
        %v2204 = vld [vmem:[%s2176 + $0x24] sm:$0x1]
        %v2205 = vsel %vm386, %v2135, %v2204
        %2206 = vst [vmem:[%s2176 + $0x24] sm:$0x1] %v2205
        %v2207 = vld [vmem:[%s2176 + $0x28] sm:$0xf]
        %v2208 = vsel %vm652, %v2142, %v2207
        %2209 = vst [vmem:[%s2176 + $0x28] sm:$0xf] %v2208
        %v2210 = vld [vmem:[%s2176 + $0x2c] sm:$0x1]
        %v2211 = vsel %vm386, %v2143, %v2210
        %2212 = vst [vmem:[%s2176 + $0x2c] sm:$0x1] %v2211
        %v2213 = vld [vmem:[%s2176 + $0x30] sm:$0xf]
        %v2214 = vsel %vm652, %v2150, %v2213
        %2215 = vst [vmem:[%s2176 + $0x30] sm:$0xf] %v2214
        %v2216 = vld [vmem:[%s2176 + $0x34] sm:$0x1]
        %v2217 = vsel %vm386, %v2151, %v2216
        %2218 = vst [vmem:[%s2176 + $0x34] sm:$0x1] %v2217
        %v2219 = vld [vmem:[%s2176 + $0x38] sm:$0xf]
        %v2220 = vsel %vm652, %v2158, %v2219
        %2221 = vst [vmem:[%s2176 + $0x38] sm:$0xf] %v2220
        %v2222 = vld [vmem:[%s2176 + $0x3c] sm:$0x1]
        %v2223 = vsel %vm386, %v2159, %v2222
        %2224 = vst [vmem:[%s2176 + $0x3c] sm:$0x1] %v2223
        %v2225 = vld [vmem:[#allocation3] sm:$0xf]
        %v2226 = vld [vmem:[#allocation3 + $0x8] sm:$0xf]
        %v2227 = vld [vmem:[#allocation3 + $0x10] sm:$0xf]
        %v2228 = vld [vmem:[#allocation3 + $0x18] sm:$0xf]
        %v2229 = vld [vmem:[#allocation3 + $0x20] sm:$0xf]
        %v2230 = vld [vmem:[#allocation3 + $0x28] sm:$0xf]
        %v2231 = vld [vmem:[#allocation3 + $0x30] sm:$0xf]
        %v2232 = vld [vmem:[#allocation3 + $0x38] sm:$0xf]
        %v2233 = vld [vmem:[#allocation3 + $0x40] sm:$0xf]
        %v2234 = vld [vmem:[#allocation3 + $0x48] sm:$0xf]
        %v2235 = vld [vmem:[#allocation3 + $0x4] sm:$0x1]
        %v2236 = vld [vmem:[#allocation3 + $0xc] sm:$0x1]
        %v2237 = vld [vmem:[#allocation3 + $0x14] sm:$0x1]
        %v2238 = vld [vmem:[#allocation3 + $0x1c] sm:$0x1]
        %v2239 = vld [vmem:[#allocation3 + $0x24] sm:$0x1]
        %v2240 = vld [vmem:[#allocation3 + $0x2c] sm:$0x1]
        %v2241 = vld [vmem:[#allocation3 + $0x34] sm:$0x1]
        %v2242 = vld [vmem:[#allocation3 + $0x3c] sm:$0x1]
        %v2243 = vld [vmem:[#allocation3 + $0x44] sm:$0x1]
        %v2244 = vld [vmem:[#allocation3 + $0x4c] sm:$0x1]
        %v2245 = vld [vmem:[#allocation3] sm:$0xe]
        %v2246 = vld [vmem:[#allocation3 + $0x8] sm:$0xe]
        %v2247 = vld [vmem:[#allocation3 + $0x10] sm:$0xe]
        %v2248 = vld [vmem:[#allocation3 + $0x18] sm:$0xe]
        %v2249 = vld [vmem:[#allocation3 + $0x20] sm:$0xe]
        %v2250 = vld [vmem:[#allocation3 + $0x28] sm:$0xe]
        %v2251 = vld [vmem:[#allocation3 + $0x30] sm:$0xe]
        %v2252 = vld [vmem:[#allocation3 + $0x38] sm:$0xe]
        %v2253 = vld [vmem:[#allocation3 + $0x40] sm:$0xe]
        %v2254 = vld [vmem:[#allocation3 + $0x48] sm:$0xe]
        %v2275 = vunpack.c.l.b16 %v2225
        %v2276 = vunpack.c.l.b16 %v2235
        %v2277 = vunpack.c.l.b16 %v2226
        %v2278 = vunpack.c.l.b16 %v2236
        %v2279 = vunpack.c.l.b16 %v2227
        %v2280 = vunpack.c.l.b16 %v2237
        %v2281 = vunpack.c.l.b16 %v2228
        %v2282 = vunpack.c.l.b16 %v2238
        %v2283 = vunpack.c.l.b16 %v2229
        %v2284 = vunpack.c.l.b16 %v2239
        %v2285 = vunpack.c.l.b16 %v2230
        %v2286 = vunpack.c.l.b16 %v2240
        %v2287 = vunpack.c.l.b16 %v2231
        %v2288 = vunpack.c.l.b16 %v2241
        %v2289 = vunpack.c.l.b16 %v2232
        %v2290 = vunpack.c.l.b16 %v2242
        %v2291 = vunpack.c.l.b16 %v2233
        %v2292 = vunpack.c.l.b16 %v2243
        %v2293 = vunpack.c.l.b16 %v2234
        %v2294 = vunpack.c.l.b16 %v2244
        %v2295 = vpack.c.b16 %v2276, %v2275
        %v2296 = vpack.c.b16 %v2278, %v2277
        %v2297 = vpack.c.b16 %v2280, %v2279
        %v2298 = vpack.c.b16 %v2282, %v2281
        %v2299 = vpack.c.b16 %v2284, %v2283
        %v2300 = vpack.c.b16 %v2286, %v2285
        %v2301 = vpack.c.b16 %v2288, %v2287
        %v2302 = vpack.c.b16 %v2290, %v2289
        %v2303 = vpack.c.b16 %v2292, %v2291
        %v2304 = vpack.c.b16 %v2294, %v2293
        %v2306 = vshrl.u32 %v2295, 16
        %v2308 = vshll.u32 %v2295, 16
        %v2310 = vrot.slane %v2308, 1
        %v2311 = vor.u32 %v2306, %v2310
        %v2313 = vshrl.u32 %v2296, 16
        %v2315 = vshll.u32 %v2296, 16
        %v2317 = vrot.slane %v2315, 1
        %v2318 = vor.u32 %v2313, %v2317
        %v2320 = vshrl.u32 %v2297, 16
        %v2322 = vshll.u32 %v2297, 16
        %v2324 = vrot.slane %v2322, 1
        %v2325 = vor.u32 %v2320, %v2324
        %v2327 = vshrl.u32 %v2298, 16
        %v2329 = vshll.u32 %v2298, 16
        %v2331 = vrot.slane %v2329, 1
        %v2332 = vor.u32 %v2327, %v2331
        %v2334 = vshrl.u32 %v2299, 16
        %v2336 = vshll.u32 %v2299, 16
        %v2338 = vrot.slane %v2336, 1
        %v2339 = vor.u32 %v2334, %v2338
        %v2341 = vshrl.u32 %v2300, 16
        %v2343 = vshll.u32 %v2300, 16
        %v2345 = vrot.slane %v2343, 1
        %v2346 = vor.u32 %v2341, %v2345
        %v2348 = vshrl.u32 %v2301, 16
        %v2350 = vshll.u32 %v2301, 16
        %v2352 = vrot.slane %v2350, 1
        %v2353 = vor.u32 %v2348, %v2352
        %v2355 = vshrl.u32 %v2302, 16
        %v2357 = vshll.u32 %v2302, 16
        %v2359 = vrot.slane %v2357, 1
        %v2360 = vor.u32 %v2355, %v2359
        %v2362 = vshrl.u32 %v2303, 16
        %v2364 = vshll.u32 %v2303, 16
        %v2366 = vrot.slane %v2364, 1
        %v2367 = vor.u32 %v2362, %v2366
        %v2369 = vshrl.u32 %v2304, 16
        %v2371 = vshll.u32 %v2304, 16
        %v2373 = vrot.slane %v2371, 1
        %v2374 = vor.u32 %v2369, %v2373
        %v2385 = vunpack.c.l.b16 %v2245
        %v2386 = vunpack.c.l.b16 %v2246
        %v2387 = vunpack.c.l.b16 %v2247
        %v2388 = vunpack.c.l.b16 %v2248
        %v2389 = vunpack.c.l.b16 %v2249
        %v2390 = vunpack.c.l.b16 %v2250
        %v2391 = vunpack.c.l.b16 %v2251
        %v2392 = vunpack.c.l.b16 %v2252
        %v2393 = vunpack.c.l.b16 %v2253
        %v2394 = vunpack.c.l.b16 %v2254
        %v2395 = vpack.c.b16 %v2276, %v2385
        %v2396 = vpack.c.b16 %v2278, %v2386
        %v2397 = vpack.c.b16 %v2280, %v2387
        %v2398 = vpack.c.b16 %v2282, %v2388
        %v2399 = vpack.c.b16 %v2284, %v2389
        %v2400 = vpack.c.b16 %v2286, %v2390
        %v2401 = vpack.c.b16 %v2288, %v2391
        %v2402 = vpack.c.b16 %v2290, %v2392
        %v2403 = vpack.c.b16 %v2292, %v2393
        %v2404 = vpack.c.b16 %v2294, %v2394
        %v2405 = vrot.slane %v2395, 1
        %v2406 = vrot.slane %v2396, 1
        %v2407 = vrot.slane %v2397, 1
        %v2408 = vrot.slane %v2398, 1
        %v2409 = vrot.slane %v2399, 1
        %v2410 = vrot.slane %v2400, 1
        %v2411 = vrot.slane %v2401, 1
        %v2412 = vrot.slane %v2402, 1
        %v2413 = vrot.slane %v2403, 1
        %v2414 = vrot.slane %v2404, 1
        %v2415 = vld [vmem:[#allocation12] sm:$0x1]
        %v2416 = vunpack.c.l.b16 %v2311
        %v2417 = vunpack.c.l.b16 %v2405
        %v2418 = vunpack.c.l.b16 %v2318
        %v2419 = vunpack.c.l.b16 %v2406
        %v2420 = vunpack.c.l.b16 %v2325
        %v2421 = vunpack.c.l.b16 %v2407
        %v2422 = vunpack.c.l.b16 %v2332
        %v2423 = vunpack.c.l.b16 %v2408
        %v2424 = vunpack.c.l.b16 %v2339
        %v2425 = vunpack.c.l.b16 %v2409
        %v2426 = vunpack.c.l.b16 %v2346
        %v2427 = vunpack.c.l.b16 %v2410
        %v2428 = vunpack.c.l.b16 %v2353
        %v2429 = vunpack.c.l.b16 %v2411
        %v2430 = vunpack.c.l.b16 %v2360
        %v2431 = vunpack.c.l.b16 %v2412
        %v2432 = vld [vmem:[#allocation10] sm:$0xf]
        %v2433 = vld [vmem:[#allocation10 + $0x4] sm:$0xf]
        %v2434 = vld [vmem:[#allocation10 + $0x8] sm:$0xf]
        %v2435 = vld [vmem:[#allocation10 + $0xc] sm:$0xf]
        %v2436 = vld [vmem:[#allocation10 + $0x10] sm:$0xf]
        %v2437 = vld [vmem:[#allocation10 + $0x14] sm:$0xf]
        %v2438 = vld [vmem:[#allocation10 + $0x18] sm:$0xf]
        %v2439 = vld [vmem:[#allocation10 + $0x1c] sm:$0xf]
        %v2440 = vld [vmem:[#allocation10 + $0x20] sm:$0xf]
        %v2441 = vld [vmem:[#allocation10 + $0x24] sm:$0xf]
        %v2442 = vld [vmem:[#allocation10 + $0x28] sm:$0xf]
        %v2443 = vld [vmem:[#allocation10 + $0x2c] sm:$0xf]
        %v2444 = vld [vmem:[#allocation10 + $0x30] sm:$0xf]
        %v2445 = vld [vmem:[#allocation10 + $0x34] sm:$0xf]
        %v2446 = vld [vmem:[#allocation10 + $0x38] sm:$0xf]
        %v2447 = vld [vmem:[#allocation10 + $0x3c] sm:$0xf]
        %v2448 = vld [vmem:[#allocation10 + $0x40] sm:$0xf]
        %v2449 = vld [vmem:[#allocation10 + $0x44] sm:$0xf]
        %v2450 = vld [vmem:[#allocation10 + $0x48] sm:$0xf]
        %v2451 = vld [vmem:[#allocation10 + $0x4c] sm:$0xf]
        %v2452 = vld [vmem:[#allocation10 + $0x50] sm:$0xf]
        %v2453 = vld [vmem:[#allocation10 + $0x54] sm:$0xf]
        %v2454 = vld [vmem:[#allocation10 + $0x58] sm:$0xf]
        %v2455 = vld [vmem:[#allocation10 + $0x5c] sm:$0xf]
        %v2456 = vld [vmem:[#allocation10 + $0x60] sm:$0xf]
        %v2457 = vld [vmem:[#allocation10 + $0x64] sm:$0xf]
        %v2458 = vld [vmem:[#allocation10 + $0x68] sm:$0xf]
        %v2459 = vld [vmem:[#allocation10 + $0x6c] sm:$0xf]
        %v2460 = vld [vmem:[#allocation10 + $0x70] sm:$0xf]
        %v2461 = vld [vmem:[#allocation10 + $0x74] sm:$0xf]
        %v2462 = vld [vmem:[#allocation10 + $0x78] sm:$0xf]
        %v2463 = vld [vmem:[#allocation10 + $0x7c] sm:$0xf]
        %v2464 = vld [vmem:[#allocation10 + $0x80] sm:$0xf]
        %v2465 = vld [vmem:[#allocation10 + $0x84] sm:$0xf]
        %v2466 = vld [vmem:[#allocation10 + $0x88] sm:$0xf]
        %v2467 = vld [vmem:[#allocation10 + $0x8c] sm:$0xf]
        %v2468 = vld [vmem:[#allocation10 + $0x90] sm:$0xf]
        %v2469 = vld [vmem:[#allocation10 + $0x94] sm:$0xf]
        %v2470 = vld [vmem:[#allocation10 + $0x98] sm:$0xf]
        %v2471 = vld [vmem:[#allocation10 + $0x9c] sm:$0xf]
        %v2472 = vld [vmem:[#allocation10 + $0xa0] sm:$0xf]
        %v2473 = vld [vmem:[#allocation10 + $0xa4] sm:$0xf]
        %v2474 = vld [vmem:[#allocation10 + $0xa8] sm:$0xf]
        %v2475 = vld [vmem:[#allocation10 + $0xac] sm:$0xf]
        %v2476 = vld [vmem:[#allocation10 + $0xb0] sm:$0xf]
        %v2477 = vld [vmem:[#allocation10 + $0xb4] sm:$0xf]
        %v2478 = vld [vmem:[#allocation10 + $0xb8] sm:$0xf]
        %v2479 = vld [vmem:[#allocation10 + $0xbc] sm:$0xf]
        %v2480 = vpack.c.b16 %v2277, %v2275
        %v2481 = vpack.c.b16 %v2418, %v2416
        %v2482 = vpack.c.b16 %v2419, %v2417
        %v2483 = vpack.c.b16 %v2281, %v2279
        %v2484 = vpack.c.b16 %v2422, %v2420
        %v2485 = vpack.c.b16 %v2423, %v2421
        %v2486 = vpack.c.b16 %v2285, %v2283
        %v2487 = vpack.c.b16 %v2426, %v2424
        %v2488 = vpack.c.b16 %v2427, %v2425
        %v2489 = vpack.c.b16 %v2289, %v2287
        %v2490 = vpack.c.b16 %v2430, %v2428
        %v2491 = vpack.c.b16 %v2431, %v2429
        %v2552 = vunpack.c.l.b16 %v2432
        %v2553 = vunpack.c.l.b16 %v2433
        %v2554 = vunpack.c.l.b16 %v2434
        %v2555 = vunpack.c.l.b16 %v2435
        %v2556 = vunpack.c.l.b16 %v2436
        %v2557 = vunpack.c.l.b16 %v2437
        %v2558 = vunpack.c.l.b16 %v2438
        %v2559 = vunpack.c.l.b16 %v2439
        %v2560 = vunpack.c.l.b16 %v2440
        %v2561 = vunpack.c.l.b16 %v2441
        %v2562 = vunpack.c.l.b16 %v2442
        %v2563 = vunpack.c.l.b16 %v2443
        %v2564 = vunpack.c.l.b16 %v2444
        %v2565 = vunpack.c.l.b16 %v2445
        %v2566 = vunpack.c.l.b16 %v2446
        %v2567 = vunpack.c.l.b16 %v2447
        %v2568 = vunpack.c.l.b16 %v2448
        %v2569 = vunpack.c.l.b16 %v2449
        %v2570 = vunpack.c.l.b16 %v2450
        %v2571 = vunpack.c.l.b16 %v2451
        %v2572 = vunpack.c.l.b16 %v2452
        %v2573 = vunpack.c.l.b16 %v2453
        %v2574 = vunpack.c.l.b16 %v2454
        %v2575 = vunpack.c.l.b16 %v2455
        %v2576 = vunpack.c.l.b16 %v2456
        %v2577 = vunpack.c.l.b16 %v2457
        %v2578 = vunpack.c.l.b16 %v2458
        %v2579 = vunpack.c.l.b16 %v2459
        %v2580 = vunpack.c.l.b16 %v2460
        %v2581 = vunpack.c.l.b16 %v2461
        %v2582 = vunpack.c.l.b16 %v2462
        %v2583 = vunpack.c.l.b16 %v2463
        %v2584 = vunpack.c.l.b16 %v2464
        %v2585 = vunpack.c.l.b16 %v2465
        %v2586 = vunpack.c.l.b16 %v2466
        %v2587 = vunpack.c.l.b16 %v2467
        %v2588 = vunpack.c.l.b16 %v2468
        %v2589 = vunpack.c.l.b16 %v2469
        %v2590 = vunpack.c.l.b16 %v2470
        %v2591 = vunpack.c.l.b16 %v2471
        %v2592 = vunpack.c.l.b16 %v2472
        %v2593 = vunpack.c.l.b16 %v2473
        %v2594 = vunpack.c.l.b16 %v2474
        %v2595 = vunpack.c.l.b16 %v2475
        %v2596 = vunpack.c.l.b16 %v2476
        %v2597 = vunpack.c.l.b16 %v2477
        %v2598 = vunpack.c.l.b16 %v2478
        %v2599 = vunpack.c.l.b16 %v2479
        %v2600 = vpack.c.b16 %v2553, %v2552
        %v2601 = vpack.c.b16 %v2555, %v2554
        %v2602 = vpack.c.b16 %v2557, %v2556
        %v2603 = vpack.c.b16 %v2559, %v2558
        %v2604 = vpack.c.b16 %v2561, %v2560
        %v2605 = vpack.c.b16 %v2563, %v2562
        %v2606 = vpack.c.b16 %v2565, %v2564
        %v2607 = vpack.c.b16 %v2567, %v2566
        %v2608 = vpack.c.b16 %v2569, %v2568
        %v2609 = vpack.c.b16 %v2571, %v2570
        %v2610 = vpack.c.b16 %v2573, %v2572
        %v2611 = vpack.c.b16 %v2575, %v2574
        %v2612 = vpack.c.b16 %v2577, %v2576
        %v2613 = vpack.c.b16 %v2579, %v2578
        %v2614 = vpack.c.b16 %v2581, %v2580
        %v2615 = vpack.c.b16 %v2583, %v2582
        %v2616 = vpack.c.b16 %v2585, %v2584
        %v2617 = vpack.c.b16 %v2587, %v2586
        %v2618 = vpack.c.b16 %v2589, %v2588
        %v2619 = vpack.c.b16 %v2591, %v2590
        %v2620 = vpack.c.b16 %v2593, %v2592
        %v2621 = vpack.c.b16 %v2595, %v2594
        %v2622 = vpack.c.b16 %v2597, %v2596
        %v2623 = vpack.c.b16 %v2599, %v2598
        %2648 = vmatprep.subr.bf16.mxu0 0
        %2649 = vmatpush1.bf16.msra.mxu0 %v2600
        %2650 = vmatprep.subr.bf16.mxu0 0
        %2651 = vmatpush1.bf16.msra.mxu0 %v2601
        %2652 = vmatprep.subr.bf16.mxu0 0
        %2653 = vmatpush1.bf16.msra.mxu0 %v2602
        %2654 = vmatprep.subr.bf16.mxu0 0
        %2655 = vmatpush1.bf16.msra.mxu0 %v2603
        %2656 = vmatprep.subr.bf16.mxu0 0
        %2657 = vmatpush1.bf16.msra.mxu0 %v2604
        %2658 = vmatprep.subr.bf16.mxu0 0
        %2659 = vmatpush1.bf16.msra.mxu0 %v2605
        %2660 = vmatprep.subr.bf16.mxu0 0
        %2661 = vmatpush1.bf16.msra.mxu0 %v2606
        %2662 = vmatprep.subr.bf16.mxu0 0
        %2663 = vmatpush1.bf16.msra.mxu0 %v2607
        %2664 = vmatprep.subr.bf16.mxu0 0
        %2665 = vmatpush1.bf16.msra.mxu0 %v2608
        %2666 = vmatprep.subr.bf16.mxu0 0
        %2667 = vmatpush1.bf16.msra.mxu0 %v2609
        %2668 = vmatprep.subr.bf16.mxu0 0
        %2669 = vmatpush1.bf16.msra.mxu0 %v2610
        %2670 = vmatprep.subr.bf16.mxu0 0
        %2671 = vmatpush1.bf16.msra.mxu0 %v2611
        %2672 = vmatprep.subr.bf16.mxu0 0
        %2673 = vmatpush1.bf16.msra.mxu0 %v2612
        %2674 = vmatprep.subr.bf16.mxu0 0
        %2675 = vmatpush1.bf16.msra.mxu0 %v2613
        %2676 = vmatprep.subr.bf16.mxu0 0
        %2677 = vmatpush1.bf16.msra.mxu0 %v2614
        %2678 = vmatprep.subr.bf16.mxu0 0
        %2679 = vmatpush1.bf16.msra.mxu0 %v2615
        %2680 = vmatprep.mubr.bf16.mxu0 %v2481
        %2681 = vmatmul.mubr.bf16.gmra.mrb[0].mxu0 %v2480
        %v2682 = vpop.f32.mrb[0].mxu0
        %v2683 = vadd.f32 0.0, %v2682
        %v2684 = vpop.f32.mrb[0].mxu0
        %v2685 = vpop.f32.mrb[0].mxu0
        %v2686 = vadd.f32 0.0, %v2685
        %v2687 = vpop.f32.mrb[0].mxu0
        %2688 = vmatprep.mubr.bf16.mxu0 %v2484
        %2689 = vmatmul.mubr.bf16.gmra.mrb[0].mxu0 %v2483
        %v2690 = vpop.f32.mrb[0].mxu0
        %v2691 = vadd.f32 0.0, %v2690
        %v2692 = vpop.f32.mrb[0].mxu0
        %v2693 = vpop.f32.mrb[0].mxu0
        %v2694 = vadd.f32 0.0, %v2693
        %v2695 = vpop.f32.mrb[0].mxu0
        %2696 = vmatprep.mubr.bf16.mxu0 %v2487
        %2697 = vmatmul.mubr.bf16.gmra.mrb[0].mxu0 %v2486
        %v2698 = vpop.f32.mrb[0].mxu0
        %v2699 = vadd.f32 0.0, %v2698
        %v2700 = vpop.f32.mrb[0].mxu0
        %v2701 = vpop.f32.mrb[0].mxu0
        %v2702 = vadd.f32 0.0, %v2701
        %v2703 = vpop.f32.mrb[0].mxu0
        %2704 = vmatprep.mubr.bf16.mxu0 %v2490
        %2705 = vmatmul.mubr.bf16.gmra.mrb[0].mxu0 %v2489
        %v2706 = vpop.f32.mrb[0].mxu0
        %v2707 = vadd.f32 0.0, %v2706
        %v2708 = vpop.f32.mrb[0].mxu0
        %v2709 = vpop.f32.mrb[0].mxu0
        %v2710 = vadd.f32 0.0, %v2709
        %v2711 = vpop.f32.mrb[0].mxu0
        %2712 = vdwg.mxu0
        %2713 = vmatprep.subr.bf16.mxu0 0
        %2714 = vmatpush1.bf16.msra.mxu0 %v2616
        %2715 = vmatprep.subr.bf16.mxu0 0
        %2716 = vmatpush1.bf16.msra.mxu0 %v2617
        %2717 = vmatprep.subr.bf16.mxu0 0
        %2718 = vmatpush1.bf16.msra.mxu0 %v2618
        %2719 = vmatprep.subr.bf16.mxu0 0
        %2720 = vmatpush1.bf16.msra.mxu0 %v2619
        %2721 = vmatprep.subr.bf16.mxu0 0
        %2722 = vmatpush1.bf16.msra.mxu0 %v2620
        %2723 = vmatprep.subr.bf16.mxu0 0
        %2724 = vmatpush1.bf16.msra.mxu0 %v2621
        %2725 = vmatprep.subr.bf16.mxu0 0
        %2726 = vmatpush1.bf16.msra.mxu0 %v2622
        %2727 = vmatprep.subr.bf16.mxu0 0
        %2728 = vmatpush1.bf16.msra.mxu0 %v2623
        %2729 = vmatprep.subr.bf16.mxu0 0
        %2730 = vmatpush1.bf16.msra.mxu0 0
        %2731 = vmatprep.subr.bf16.mxu0 0
        %2732 = vmatpush1.bf16.msra.mxu0 0
        %2733 = vmatprep.subr.bf16.mxu0 0
        %2734 = vmatpush1.bf16.msra.mxu0 0
        %2735 = vmatprep.subr.bf16.mxu0 0
        %2736 = vmatpush1.bf16.msra.mxu0 0
        %2737 = vmatprep.subr.bf16.mxu0 0
        %2738 = vmatpush1.bf16.msra.mxu0 0
        %2739 = vmatprep.subr.bf16.mxu0 0
        %2740 = vmatpush1.bf16.msra.mxu0 0
        %2741 = vmatprep.subr.bf16.mxu0 0
        %2742 = vmatpush1.bf16.msra.mxu0 0
        %2743 = vmatprep.subr.bf16.mxu0 0
        %2744 = vmatpush1.bf16.msra.mxu0 0
        %2745 = vmatprep.mubr.bf16.mxu0 0
        %2746 = vmatmul.mubr.bf16.gmra.mrb[0].mxu0 %v2482
        %v2747 = vpop.f32.mrb[0].mxu0
        %v2748 = vadd.f32 %v2683, %v2747
        %v2749 = vpop.f32.mrb[0].mxu0
        %v2750 = vpop.f32.mrb[0].mxu0
        %v2751 = vadd.f32 %v2686, %v2750
        %v2752 = vpop.f32.mrb[0].mxu0
        %2753 = vmatprep.mubr.bf16.mxu0 0
        %2754 = vmatmul.mubr.bf16.gmra.mrb[0].mxu0 %v2485
        %v2755 = vpop.f32.mrb[0].mxu0
        %v2756 = vadd.f32 %v2691, %v2755
        %v2757 = vpop.f32.mrb[0].mxu0
        %v2758 = vpop.f32.mrb[0].mxu0
        %v2759 = vadd.f32 %v2694, %v2758
        %v2760 = vpop.f32.mrb[0].mxu0
        %2761 = vmatprep.mubr.bf16.mxu0 0
        %2762 = vmatmul.mubr.bf16.gmra.mrb[0].mxu0 %v2488
        %v2763 = vpop.f32.mrb[0].mxu0
        %v2764 = vadd.f32 %v2699, %v2763
        %v2765 = vpop.f32.mrb[0].mxu0
        %v2766 = vpop.f32.mrb[0].mxu0
        %v2767 = vadd.f32 %v2702, %v2766
        %v2768 = vpop.f32.mrb[0].mxu0
        %2769 = vmatprep.mubr.bf16.mxu0 0
        %2770 = vmatmul.mubr.bf16.gmra.mrb[0].mxu0 %v2491
        %v2771 = vpop.f32.mrb[0].mxu0
        %v2772 = vadd.f32 %v2707, %v2771
        %v2773 = vpop.f32.mrb[0].mxu0
        %v2774 = vpop.f32.mrb[0].mxu0
        %v2775 = vadd.f32 %v2710, %v2774
        %v2776 = vpop.f32.mrb[0].mxu0
        %2777 = vdwg.mxu0
        %v2779 = vlaneseq
        %v2780 = vshrl.u32 %v2779, 7
        %v2781 = vsub.s32 0, %v2780
        %v2782 = vrot.slane %v2415, %v2781
        %v2784 = vadd.f32 %v2782, %v2748
        %v2785 = vadd.f32 %v2782, %v2751
        %v2786 = vadd.f32 %v2782, %v2756
        %v2787 = vadd.f32 %v2782, %v2759
        %v2788 = vadd.f32 %v2782, %v2764
        %v2789 = vadd.f32 %v2782, %v2767
        %v2790 = vadd.f32 %v2782, %v2772
        %v2791 = vadd.f32 %v2782, %v2775
        %v2792 = vunpack.c.l.b16 %v2367
        %v2793 = vunpack.c.l.b16 %v2413
        %s2794 = scalar_lea.vmem [#allocation10], 192
        %v2795 = vld [vmem:[%s2794] sm:$0xf]
        %v2796 = vld [vmem:[%s2794 + $0x4] sm:$0xf]
        %v2797 = vld [vmem:[%s2794 + $0x8] sm:$0xf]
        %v2798 = vld [vmem:[%s2794 + $0xc] sm:$0xf]
        %v2799 = vld [vmem:[%s2794 + $0x10] sm:$0xf]
        %v2800 = vld [vmem:[%s2794 + $0x14] sm:$0xf]
        %v2801 = vld [vmem:[%s2794 + $0x18] sm:$0xf]
        %v2802 = vld [vmem:[%s2794 + $0x1c] sm:$0xf]
        %v2803 = vld [vmem:[%s2794 + $0x20] sm:$0xf]
        %v2804 = vld [vmem:[%s2794 + $0x24] sm:$0xf]
        %v2805 = vld [vmem:[%s2794 + $0x28] sm:$0xf]
        %v2806 = vld [vmem:[%s2794 + $0x2c] sm:$0xf]
        %v2807 = vld [vmem:[%s2794 + $0x30] sm:$0xf]
        %v2808 = vld [vmem:[%s2794 + $0x34] sm:$0xf]
        %v2809 = vld [vmem:[%s2794 + $0x38] sm:$0xf]
        %v2810 = vld [vmem:[%s2794 + $0x3c] sm:$0xf]
        %v2811 = vld [vmem:[%s2794 + $0x40] sm:$0xf]
        %v2812 = vld [vmem:[%s2794 + $0x44] sm:$0xf]
        %v2813 = vld [vmem:[%s2794 + $0x48] sm:$0xf]
        %v2814 = vld [vmem:[%s2794 + $0x4c] sm:$0xf]
        %v2815 = vld [vmem:[%s2794 + $0x50] sm:$0xf]
        %v2816 = vld [vmem:[%s2794 + $0x54] sm:$0xf]
        %v2817 = vld [vmem:[%s2794 + $0x58] sm:$0xf]
        %v2818 = vld [vmem:[%s2794 + $0x5c] sm:$0xf]
        %v2819 = vld [vmem:[%s2794 + $0x60] sm:$0xf]
        %v2820 = vld [vmem:[%s2794 + $0x64] sm:$0xf]
        %v2821 = vld [vmem:[%s2794 + $0x68] sm:$0xf]
        %v2822 = vld [vmem:[%s2794 + $0x6c] sm:$0xf]
        %v2823 = vld [vmem:[%s2794 + $0x70] sm:$0xf]
        %v2824 = vld [vmem:[%s2794 + $0x74] sm:$0xf]
        %v2825 = vld [vmem:[%s2794 + $0x78] sm:$0xf]
        %v2826 = vld [vmem:[%s2794 + $0x7c] sm:$0xf]
        %v2827 = vld [vmem:[%s2794 + $0x80] sm:$0xf]
        %v2828 = vld [vmem:[%s2794 + $0x84] sm:$0xf]
        %v2829 = vld [vmem:[%s2794 + $0x88] sm:$0xf]
        %v2830 = vld [vmem:[%s2794 + $0x8c] sm:$0xf]
        %v2831 = vld [vmem:[%s2794 + $0x90] sm:$0xf]
        %v2832 = vld [vmem:[%s2794 + $0x94] sm:$0xf]
        %v2833 = vld [vmem:[%s2794 + $0x98] sm:$0xf]
        %v2834 = vld [vmem:[%s2794 + $0x9c] sm:$0xf]
        %v2835 = vld [vmem:[%s2794 + $0xa0] sm:$0xf]
        %v2836 = vld [vmem:[%s2794 + $0xa4] sm:$0xf]
        %v2837 = vld [vmem:[%s2794 + $0xa8] sm:$0xf]
        %v2838 = vld [vmem:[%s2794 + $0xac] sm:$0xf]
        %v2839 = vld [vmem:[%s2794 + $0xb0] sm:$0xf]
        %v2840 = vld [vmem:[%s2794 + $0xb4] sm:$0xf]
        %v2841 = vld [vmem:[%s2794 + $0xb8] sm:$0xf]
        %v2842 = vld [vmem:[%s2794 + $0xbc] sm:$0xf]
        %v2843 = vpack.c.b16 %v2279, %v2277
        %v2844 = vpack.c.b16 %v2420, %v2418
        %v2845 = vpack.c.b16 %v2421, %v2419
        %v2846 = vpack.c.b16 %v2283, %v2281
        %v2847 = vpack.c.b16 %v2424, %v2422
        %v2848 = vpack.c.b16 %v2425, %v2423
        %v2849 = vpack.c.b16 %v2287, %v2285
        %v2850 = vpack.c.b16 %v2428, %v2426
        %v2851 = vpack.c.b16 %v2429, %v2427
        %v2852 = vpack.c.b16 %v2291, %v2289
        %v2853 = vpack.c.b16 %v2792, %v2430
        %v2854 = vpack.c.b16 %v2793, %v2431
        %v2915 = vunpack.c.l.b16 %v2795
        %v2916 = vunpack.c.l.b16 %v2796
        %v2917 = vunpack.c.l.b16 %v2797
        %v2918 = vunpack.c.l.b16 %v2798
        %v2919 = vunpack.c.l.b16 %v2799
        %v2920 = vunpack.c.l.b16 %v2800
        %v2921 = vunpack.c.l.b16 %v2801
        %v2922 = vunpack.c.l.b16 %v2802
        %v2923 = vunpack.c.l.b16 %v2803
        %v2924 = vunpack.c.l.b16 %v2804
        %v2925 = vunpack.c.l.b16 %v2805
        %v2926 = vunpack.c.l.b16 %v2806
        %v2927 = vunpack.c.l.b16 %v2807
        %v2928 = vunpack.c.l.b16 %v2808
        %v2929 = vunpack.c.l.b16 %v2809
        %v2930 = vunpack.c.l.b16 %v2810
        %v2931 = vunpack.c.l.b16 %v2811
        %v2932 = vunpack.c.l.b16 %v2812
        %v2933 = vunpack.c.l.b16 %v2813
        %v2934 = vunpack.c.l.b16 %v2814
        %v2935 = vunpack.c.l.b16 %v2815
        %v2936 = vunpack.c.l.b16 %v2816
        %v2937 = vunpack.c.l.b16 %v2817
        %v2938 = vunpack.c.l.b16 %v2818
        %v2939 = vunpack.c.l.b16 %v2819
        %v2940 = vunpack.c.l.b16 %v2820
        %v2941 = vunpack.c.l.b16 %v2821
        %v2942 = vunpack.c.l.b16 %v2822
        %v2943 = vunpack.c.l.b16 %v2823
        %v2944 = vunpack.c.l.b16 %v2824
        %v2945 = vunpack.c.l.b16 %v2825
        %v2946 = vunpack.c.l.b16 %v2826
        %v2947 = vunpack.c.l.b16 %v2827
        %v2948 = vunpack.c.l.b16 %v2828
        %v2949 = vunpack.c.l.b16 %v2829
        %v2950 = vunpack.c.l.b16 %v2830
        %v2951 = vunpack.c.l.b16 %v2831
        %v2952 = vunpack.c.l.b16 %v2832
        %v2953 = vunpack.c.l.b16 %v2833
        %v2954 = vunpack.c.l.b16 %v2834
        %v2955 = vunpack.c.l.b16 %v2835
        %v2956 = vunpack.c.l.b16 %v2836
        %v2957 = vunpack.c.l.b16 %v2837
        %v2958 = vunpack.c.l.b16 %v2838
        %v2959 = vunpack.c.l.b16 %v2839
        %v2960 = vunpack.c.l.b16 %v2840
        %v2961 = vunpack.c.l.b16 %v2841
        %v2962 = vunpack.c.l.b16 %v2842
        %v2963 = vpack.c.b16 %v2916, %v2915
        %v2964 = vpack.c.b16 %v2918, %v2917
        %v2965 = vpack.c.b16 %v2920, %v2919
        %v2966 = vpack.c.b16 %v2922, %v2921
        %v2967 = vpack.c.b16 %v2924, %v2923
        %v2968 = vpack.c.b16 %v2926, %v2925
        %v2969 = vpack.c.b16 %v2928, %v2927
        %v2970 = vpack.c.b16 %v2930, %v2929
        %v2971 = vpack.c.b16 %v2932, %v2931
        %v2972 = vpack.c.b16 %v2934, %v2933
        %v2973 = vpack.c.b16 %v2936, %v2935
        %v2974 = vpack.c.b16 %v2938, %v2937
        %v2975 = vpack.c.b16 %v2940, %v2939
        %v2976 = vpack.c.b16 %v2942, %v2941
        %v2977 = vpack.c.b16 %v2944, %v2943
        %v2978 = vpack.c.b16 %v2946, %v2945
        %v2979 = vpack.c.b16 %v2948, %v2947
        %v2980 = vpack.c.b16 %v2950, %v2949
        %v2981 = vpack.c.b16 %v2952, %v2951
        %v2982 = vpack.c.b16 %v2954, %v2953
        %v2983 = vpack.c.b16 %v2956, %v2955
        %v2984 = vpack.c.b16 %v2958, %v2957
        %v2985 = vpack.c.b16 %v2960, %v2959
        %v2986 = vpack.c.b16 %v2962, %v2961
        %3011 = vmatprep.subr.bf16.mxu0 0
        %3012 = vmatpush1.bf16.msra.mxu0 %v2963
        %3013 = vmatprep.subr.bf16.mxu0 0
        %3014 = vmatpush1.bf16.msra.mxu0 %v2964
        %3015 = vmatprep.subr.bf16.mxu0 0
        %3016 = vmatpush1.bf16.msra.mxu0 %v2965
        %3017 = vmatprep.subr.bf16.mxu0 0
        %3018 = vmatpush1.bf16.msra.mxu0 %v2966
        %3019 = vmatprep.subr.bf16.mxu0 0
        %3020 = vmatpush1.bf16.msra.mxu0 %v2967
        %3021 = vmatprep.subr.bf16.mxu0 0
        %3022 = vmatpush1.bf16.msra.mxu0 %v2968
        %3023 = vmatprep.subr.bf16.mxu0 0
        %3024 = vmatpush1.bf16.msra.mxu0 %v2969
        %3025 = vmatprep.subr.bf16.mxu0 0
        %3026 = vmatpush1.bf16.msra.mxu0 %v2970
        %3027 = vmatprep.subr.bf16.mxu0 0
        %3028 = vmatpush1.bf16.msra.mxu0 %v2971
        %3029 = vmatprep.subr.bf16.mxu0 0
        %3030 = vmatpush1.bf16.msra.mxu0 %v2972
        %3031 = vmatprep.subr.bf16.mxu0 0
        %3032 = vmatpush1.bf16.msra.mxu0 %v2973
        %3033 = vmatprep.subr.bf16.mxu0 0
        %3034 = vmatpush1.bf16.msra.mxu0 %v2974
        %3035 = vmatprep.subr.bf16.mxu0 0
        %3036 = vmatpush1.bf16.msra.mxu0 %v2975
        %3037 = vmatprep.subr.bf16.mxu0 0
        %3038 = vmatpush1.bf16.msra.mxu0 %v2976
        %3039 = vmatprep.subr.bf16.mxu0 0
        %3040 = vmatpush1.bf16.msra.mxu0 %v2977
        %3041 = vmatprep.subr.bf16.mxu0 0
        %3042 = vmatpush1.bf16.msra.mxu0 %v2978
        %3043 = vmatprep.mubr.bf16.mxu0 %v2844
        %3044 = vmatmul.mubr.bf16.gmra.mrb[0].mxu0 %v2843
        %v3045 = vpop.f32.mrb[0].mxu0
        %v3046 = vadd.f32 0.0, %v3045
        %v3047 = vpop.f32.mrb[0].mxu0
        %v3048 = vpop.f32.mrb[0].mxu0
        %v3049 = vadd.f32 0.0, %v3048
        %v3050 = vpop.f32.mrb[0].mxu0
        %3051 = vmatprep.mubr.bf16.mxu0 %v2847
        %3052 = vmatmul.mubr.bf16.gmra.mrb[0].mxu0 %v2846
        %v3053 = vpop.f32.mrb[0].mxu0
        %v3054 = vadd.f32 0.0, %v3053
        %v3055 = vpop.f32.mrb[0].mxu0
        %v3056 = vpop.f32.mrb[0].mxu0
        %v3057 = vadd.f32 0.0, %v3056
        %v3058 = vpop.f32.mrb[0].mxu0
        %3059 = vmatprep.mubr.bf16.mxu0 %v2850
        %3060 = vmatmul.mubr.bf16.gmra.mrb[0].mxu0 %v2849
        %v3061 = vpop.f32.mrb[0].mxu0
        %v3062 = vadd.f32 0.0, %v3061
        %v3063 = vpop.f32.mrb[0].mxu0
        %v3064 = vpop.f32.mrb[0].mxu0
        %v3065 = vadd.f32 0.0, %v3064
        %v3066 = vpop.f32.mrb[0].mxu0
        %3067 = vmatprep.mubr.bf16.mxu0 %v2853
        %3068 = vmatmul.mubr.bf16.gmra.mrb[0].mxu0 %v2852
        %v3069 = vpop.f32.mrb[0].mxu0
        %v3070 = vadd.f32 0.0, %v3069
        %v3071 = vpop.f32.mrb[0].mxu0
        %v3072 = vpop.f32.mrb[0].mxu0
        %v3073 = vadd.f32 0.0, %v3072
        %v3074 = vpop.f32.mrb[0].mxu0
        %3075 = vdwg.mxu0
        %3076 = vmatprep.subr.bf16.mxu0 0
        %3077 = vmatpush1.bf16.msra.mxu0 %v2979
        %3078 = vmatprep.subr.bf16.mxu0 0
        %3079 = vmatpush1.bf16.msra.mxu0 %v2980
        %3080 = vmatprep.subr.bf16.mxu0 0
        %3081 = vmatpush1.bf16.msra.mxu0 %v2981
        %3082 = vmatprep.subr.bf16.mxu0 0
        %3083 = vmatpush1.bf16.msra.mxu0 %v2982
        %3084 = vmatprep.subr.bf16.mxu0 0
        %3085 = vmatpush1.bf16.msra.mxu0 %v2983
        %3086 = vmatprep.subr.bf16.mxu0 0
        %3087 = vmatpush1.bf16.msra.mxu0 %v2984
        %3088 = vmatprep.subr.bf16.mxu0 0
        %3089 = vmatpush1.bf16.msra.mxu0 %v2985
        %3090 = vmatprep.subr.bf16.mxu0 0
        %3091 = vmatpush1.bf16.msra.mxu0 %v2986
        %3092 = vmatprep.subr.bf16.mxu0 0
        %3093 = vmatpush1.bf16.msra.mxu0 0
        %3094 = vmatprep.subr.bf16.mxu0 0
        %3095 = vmatpush1.bf16.msra.mxu0 0
        %3096 = vmatprep.subr.bf16.mxu0 0
        %3097 = vmatpush1.bf16.msra.mxu0 0
        %3098 = vmatprep.subr.bf16.mxu0 0
        %3099 = vmatpush1.bf16.msra.mxu0 0
        %3100 = vmatprep.subr.bf16.mxu0 0
        %3101 = vmatpush1.bf16.msra.mxu0 0
        %3102 = vmatprep.subr.bf16.mxu0 0
        %3103 = vmatpush1.bf16.msra.mxu0 0
        %3104 = vmatprep.subr.bf16.mxu0 0
        %3105 = vmatpush1.bf16.msra.mxu0 0
        %3106 = vmatprep.subr.bf16.mxu0 0
        %3107 = vmatpush1.bf16.msra.mxu0 0
        %3108 = vmatprep.mubr.bf16.mxu0 0
        %3109 = vmatmul.mubr.bf16.gmra.mrb[0].mxu0 %v2845
        %v3110 = vpop.f32.mrb[0].mxu0
        %v3111 = vadd.f32 %v3046, %v3110
        %v3112 = vpop.f32.mrb[0].mxu0
        %v3113 = vpop.f32.mrb[0].mxu0
        %v3114 = vadd.f32 %v3049, %v3113
        %v3115 = vpop.f32.mrb[0].mxu0
        %3116 = vmatprep.mubr.bf16.mxu0 0
        %3117 = vmatmul.mubr.bf16.gmra.mrb[0].mxu0 %v2848
        %v3118 = vpop.f32.mrb[0].mxu0
        %v3119 = vadd.f32 %v3054, %v3118
        %v3120 = vpop.f32.mrb[0].mxu0
        %v3121 = vpop.f32.mrb[0].mxu0
        %v3122 = vadd.f32 %v3057, %v3121
        %v3123 = vpop.f32.mrb[0].mxu0
        %3124 = vmatprep.mubr.bf16.mxu0 0
        %3125 = vmatmul.mubr.bf16.gmra.mrb[0].mxu0 %v2851
        %v3126 = vpop.f32.mrb[0].mxu0
        %v3127 = vadd.f32 %v3062, %v3126
        %v3128 = vpop.f32.mrb[0].mxu0
        %v3129 = vpop.f32.mrb[0].mxu0
        %v3130 = vadd.f32 %v3065, %v3129
        %v3131 = vpop.f32.mrb[0].mxu0
        %3132 = vmatprep.mubr.bf16.mxu0 0
        %3133 = vmatmul.mubr.bf16.gmra.mrb[0].mxu0 %v2854
        %v3134 = vpop.f32.mrb[0].mxu0
        %v3135 = vadd.f32 %v3070, %v3134
        %v3136 = vpop.f32.mrb[0].mxu0
        %v3137 = vpop.f32.mrb[0].mxu0
        %v3138 = vadd.f32 %v3073, %v3137
        %v3139 = vpop.f32.mrb[0].mxu0
        %3140 = vdwg.mxu0
        %v3141 = vadd.f32 %v2784, %v3111
        %v3142 = vadd.f32 %v2785, %v3114
        %v3143 = vadd.f32 %v2786, %v3119
        %v3144 = vadd.f32 %v2787, %v3122
        %v3145 = vadd.f32 %v2788, %v3127
        %v3146 = vadd.f32 %v2789, %v3130
        %v3147 = vadd.f32 %v2790, %v3135
        %v3148 = vadd.f32 %v2791, %v3138
        %v3149 = vunpack.c.l.b16 %v2374
        %v3150 = vunpack.c.l.b16 %v2414
        %s3151 = scalar_lea.vmem [#allocation10], 384
        %v3152 = vld [vmem:[%s3151] sm:$0xf]
        %v3153 = vld [vmem:[%s3151 + $0x4] sm:$0xf]
        %v3154 = vld [vmem:[%s3151 + $0x8] sm:$0xf]
        %v3155 = vld [vmem:[%s3151 + $0xc] sm:$0xf]
        %v3156 = vld [vmem:[%s3151 + $0x10] sm:$0xf]
        %v3157 = vld [vmem:[%s3151 + $0x14] sm:$0xf]
        %v3158 = vld [vmem:[%s3151 + $0x18] sm:$0xf]
        %v3159 = vld [vmem:[%s3151 + $0x1c] sm:$0xf]
        %v3160 = vld [vmem:[%s3151 + $0x20] sm:$0xf]
        %v3161 = vld [vmem:[%s3151 + $0x24] sm:$0xf]
        %v3162 = vld [vmem:[%s3151 + $0x28] sm:$0xf]
        %v3163 = vld [vmem:[%s3151 + $0x2c] sm:$0xf]
        %v3164 = vld [vmem:[%s3151 + $0x30] sm:$0xf]
        %v3165 = vld [vmem:[%s3151 + $0x34] sm:$0xf]
        %v3166 = vld [vmem:[%s3151 + $0x38] sm:$0xf]
        %v3167 = vld [vmem:[%s3151 + $0x3c] sm:$0xf]
        %v3168 = vld [vmem:[%s3151 + $0x40] sm:$0xf]
        %v3169 = vld [vmem:[%s3151 + $0x44] sm:$0xf]
        %v3170 = vld [vmem:[%s3151 + $0x48] sm:$0xf]
        %v3171 = vld [vmem:[%s3151 + $0x4c] sm:$0xf]
        %v3172 = vld [vmem:[%s3151 + $0x50] sm:$0xf]
        %v3173 = vld [vmem:[%s3151 + $0x54] sm:$0xf]
        %v3174 = vld [vmem:[%s3151 + $0x58] sm:$0xf]
        %v3175 = vld [vmem:[%s3151 + $0x5c] sm:$0xf]
        %v3176 = vld [vmem:[%s3151 + $0x60] sm:$0xf]
        %v3177 = vld [vmem:[%s3151 + $0x64] sm:$0xf]
        %v3178 = vld [vmem:[%s3151 + $0x68] sm:$0xf]
        %v3179 = vld [vmem:[%s3151 + $0x6c] sm:$0xf]
        %v3180 = vld [vmem:[%s3151 + $0x70] sm:$0xf]
        %v3181 = vld [vmem:[%s3151 + $0x74] sm:$0xf]
        %v3182 = vld [vmem:[%s3151 + $0x78] sm:$0xf]
        %v3183 = vld [vmem:[%s3151 + $0x7c] sm:$0xf]
        %v3184 = vld [vmem:[%s3151 + $0x80] sm:$0xf]
        %v3185 = vld [vmem:[%s3151 + $0x84] sm:$0xf]
        %v3186 = vld [vmem:[%s3151 + $0x88] sm:$0xf]
        %v3187 = vld [vmem:[%s3151 + $0x8c] sm:$0xf]
        %v3188 = vld [vmem:[%s3151 + $0x90] sm:$0xf]
        %v3189 = vld [vmem:[%s3151 + $0x94] sm:$0xf]
        %v3190 = vld [vmem:[%s3151 + $0x98] sm:$0xf]
        %v3191 = vld [vmem:[%s3151 + $0x9c] sm:$0xf]
        %v3192 = vld [vmem:[%s3151 + $0xa0] sm:$0xf]
        %v3193 = vld [vmem:[%s3151 + $0xa4] sm:$0xf]
        %v3194 = vld [vmem:[%s3151 + $0xa8] sm:$0xf]
        %v3195 = vld [vmem:[%s3151 + $0xac] sm:$0xf]
        %v3196 = vld [vmem:[%s3151 + $0xb0] sm:$0xf]
        %v3197 = vld [vmem:[%s3151 + $0xb4] sm:$0xf]
        %v3198 = vld [vmem:[%s3151 + $0xb8] sm:$0xf]
        %v3199 = vld [vmem:[%s3151 + $0xbc] sm:$0xf]
        %v3200 = vpack.c.b16 %v2293, %v2291
        %v3201 = vpack.c.b16 %v3149, %v2792
        %v3202 = vpack.c.b16 %v3150, %v2793
        %v3254 = vunpack.c.l.b16 %v3152
        %v3255 = vunpack.c.l.b16 %v3153
        %v3256 = vunpack.c.l.b16 %v3154
        %v3257 = vunpack.c.l.b16 %v3155
        %v3258 = vunpack.c.l.b16 %v3156
        %v3259 = vunpack.c.l.b16 %v3157
        %v3260 = vunpack.c.l.b16 %v3158
        %v3261 = vunpack.c.l.b16 %v3159
        %v3262 = vunpack.c.l.b16 %v3160
        %v3263 = vunpack.c.l.b16 %v3161
        %v3264 = vunpack.c.l.b16 %v3162
        %v3265 = vunpack.c.l.b16 %v3163
        %v3266 = vunpack.c.l.b16 %v3164
        %v3267 = vunpack.c.l.b16 %v3165
        %v3268 = vunpack.c.l.b16 %v3166
        %v3269 = vunpack.c.l.b16 %v3167
        %v3270 = vunpack.c.l.b16 %v3168
        %v3271 = vunpack.c.l.b16 %v3169
        %v3272 = vunpack.c.l.b16 %v3170
        %v3273 = vunpack.c.l.b16 %v3171
        %v3274 = vunpack.c.l.b16 %v3172
        %v3275 = vunpack.c.l.b16 %v3173
        %v3276 = vunpack.c.l.b16 %v3174
        %v3277 = vunpack.c.l.b16 %v3175
        %v3278 = vunpack.c.l.b16 %v3176
        %v3279 = vunpack.c.l.b16 %v3177
        %v3280 = vunpack.c.l.b16 %v3178
        %v3281 = vunpack.c.l.b16 %v3179
        %v3282 = vunpack.c.l.b16 %v3180
        %v3283 = vunpack.c.l.b16 %v3181
        %v3284 = vunpack.c.l.b16 %v3182
        %v3285 = vunpack.c.l.b16 %v3183
        %v3286 = vunpack.c.l.b16 %v3184
        %v3287 = vunpack.c.l.b16 %v3185
        %v3288 = vunpack.c.l.b16 %v3186
        %v3289 = vunpack.c.l.b16 %v3187
        %v3290 = vunpack.c.l.b16 %v3188
        %v3291 = vunpack.c.l.b16 %v3189
        %v3292 = vunpack.c.l.b16 %v3190
        %v3293 = vunpack.c.l.b16 %v3191
        %v3294 = vunpack.c.l.b16 %v3192
        %v3295 = vunpack.c.l.b16 %v3193
        %v3296 = vunpack.c.l.b16 %v3194
        %v3297 = vunpack.c.l.b16 %v3195
        %v3298 = vunpack.c.l.b16 %v3196
        %v3299 = vunpack.c.l.b16 %v3197
        %v3300 = vunpack.c.l.b16 %v3198
        %v3301 = vunpack.c.l.b16 %v3199
        %v3302 = vpack.c.b16 %v3255, %v3254
        %v3303 = vpack.c.b16 %v3257, %v3256
        %v3304 = vpack.c.b16 %v3259, %v3258
        %v3305 = vpack.c.b16 %v3261, %v3260
        %v3306 = vpack.c.b16 %v3263, %v3262
        %v3307 = vpack.c.b16 %v3265, %v3264
        %v3308 = vpack.c.b16 %v3267, %v3266
        %v3309 = vpack.c.b16 %v3269, %v3268
        %v3310 = vpack.c.b16 %v3271, %v3270
        %v3311 = vpack.c.b16 %v3273, %v3272
        %v3312 = vpack.c.b16 %v3275, %v3274
        %v3313 = vpack.c.b16 %v3277, %v3276
        %v3314 = vpack.c.b16 %v3279, %v3278
        %v3315 = vpack.c.b16 %v3281, %v3280
        %v3316 = vpack.c.b16 %v3283, %v3282
        %v3317 = vpack.c.b16 %v3285, %v3284
        %v3318 = vpack.c.b16 %v3287, %v3286
        %v3319 = vpack.c.b16 %v3289, %v3288
        %v3320 = vpack.c.b16 %v3291, %v3290
        %v3321 = vpack.c.b16 %v3293, %v3292
        %v3322 = vpack.c.b16 %v3295, %v3294
        %v3323 = vpack.c.b16 %v3297, %v3296
        %v3324 = vpack.c.b16 %v3299, %v3298
        %v3325 = vpack.c.b16 %v3301, %v3300
        %3350 = vmatprep.subr.bf16.mxu0 0
        %3351 = vmatpush1.bf16.msra.mxu0 %v3302
        %3352 = vmatprep.subr.bf16.mxu0 0
        %3353 = vmatpush1.bf16.msra.mxu0 %v3303
        %3354 = vmatprep.subr.bf16.mxu0 0
        %3355 = vmatpush1.bf16.msra.mxu0 %v3304
        %3356 = vmatprep.subr.bf16.mxu0 0
        %3357 = vmatpush1.bf16.msra.mxu0 %v3305
        %3358 = vmatprep.subr.bf16.mxu0 0
        %3359 = vmatpush1.bf16.msra.mxu0 %v3306
        %3360 = vmatprep.subr.bf16.mxu0 0
        %3361 = vmatpush1.bf16.msra.mxu0 %v3307
        %3362 = vmatprep.subr.bf16.mxu0 0
        %3363 = vmatpush1.bf16.msra.mxu0 %v3308
        %3364 = vmatprep.subr.bf16.mxu0 0
        %3365 = vmatpush1.bf16.msra.mxu0 %v3309
        %3366 = vmatprep.subr.bf16.mxu0 0
        %3367 = vmatpush1.bf16.msra.mxu0 %v3310
        %3368 = vmatprep.subr.bf16.mxu0 0
        %3369 = vmatpush1.bf16.msra.mxu0 %v3311
        %3370 = vmatprep.subr.bf16.mxu0 0
        %3371 = vmatpush1.bf16.msra.mxu0 %v3312
        %3372 = vmatprep.subr.bf16.mxu0 0
        %3373 = vmatpush1.bf16.msra.mxu0 %v3313
        %3374 = vmatprep.subr.bf16.mxu0 0
        %3375 = vmatpush1.bf16.msra.mxu0 %v3314
        %3376 = vmatprep.subr.bf16.mxu0 0
        %3377 = vmatpush1.bf16.msra.mxu0 %v3315
        %3378 = vmatprep.subr.bf16.mxu0 0
        %3379 = vmatpush1.bf16.msra.mxu0 %v3316
        %3380 = vmatprep.subr.bf16.mxu0 0
        %3381 = vmatpush1.bf16.msra.mxu0 %v3317
        %3382 = vmatprep.mubr.bf16.mxu0 %v2484
        %3383 = vmatmul.mubr.bf16.gmra.mrb[0].mxu0 %v2483
        %v3384 = vpop.f32.mrb[0].mxu0
        %v3385 = vadd.f32 0.0, %v3384
        %v3386 = vpop.f32.mrb[0].mxu0
        %v3387 = vpop.f32.mrb[0].mxu0
        %v3388 = vadd.f32 0.0, %v3387
        %v3389 = vpop.f32.mrb[0].mxu0
        %3390 = vmatprep.mubr.bf16.mxu0 %v2487
        %3391 = vmatmul.mubr.bf16.gmra.mrb[0].mxu0 %v2486
        %v3392 = vpop.f32.mrb[0].mxu0
        %v3393 = vadd.f32 0.0, %v3392
        %v3394 = vpop.f32.mrb[0].mxu0
        %v3395 = vpop.f32.mrb[0].mxu0
        %v3396 = vadd.f32 0.0, %v3395
        %v3397 = vpop.f32.mrb[0].mxu0
        %3398 = vmatprep.mubr.bf16.mxu0 %v2490
        %3399 = vmatmul.mubr.bf16.gmra.mrb[0].mxu0 %v2489
        %v3400 = vpop.f32.mrb[0].mxu0
        %v3401 = vadd.f32 0.0, %v3400
        %v3402 = vpop.f32.mrb[0].mxu0
        %v3403 = vpop.f32.mrb[0].mxu0
        %v3404 = vadd.f32 0.0, %v3403
        %v3405 = vpop.f32.mrb[0].mxu0
        %3406 = vmatprep.mubr.bf16.mxu0 %v3201
        %3407 = vmatmul.mubr.bf16.gmra.mrb[0].mxu0 %v3200
        %v3408 = vpop.f32.mrb[0].mxu0
        %v3409 = vadd.f32 0.0, %v3408
        %v3410 = vpop.f32.mrb[0].mxu0
        %v3411 = vpop.f32.mrb[0].mxu0
        %v3412 = vadd.f32 0.0, %v3411
        %v3413 = vpop.f32.mrb[0].mxu0
        %3414 = vdwg.mxu0
        %3415 = vmatprep.subr.bf16.mxu0 0
        %3416 = vmatpush1.bf16.msra.mxu0 %v3318
        %3417 = vmatprep.subr.bf16.mxu0 0
        %3418 = vmatpush1.bf16.msra.mxu0 %v3319
        %3419 = vmatprep.subr.bf16.mxu0 0
        %3420 = vmatpush1.bf16.msra.mxu0 %v3320
        %3421 = vmatprep.subr.bf16.mxu0 0
        %3422 = vmatpush1.bf16.msra.mxu0 %v3321
        %3423 = vmatprep.subr.bf16.mxu0 0
        %3424 = vmatpush1.bf16.msra.mxu0 %v3322
        %3425 = vmatprep.subr.bf16.mxu0 0
        %3426 = vmatpush1.bf16.msra.mxu0 %v3323
        %3427 = vmatprep.subr.bf16.mxu0 0
        %3428 = vmatpush1.bf16.msra.mxu0 %v3324
        %3429 = vmatprep.subr.bf16.mxu0 0
        %3430 = vmatpush1.bf16.msra.mxu0 %v3325
        %3431 = vmatprep.subr.bf16.mxu0 0
        %3432 = vmatpush1.bf16.msra.mxu0 0
        %3433 = vmatprep.subr.bf16.mxu0 0
        %3434 = vmatpush1.bf16.msra.mxu0 0
        %3435 = vmatprep.subr.bf16.mxu0 0
        %3436 = vmatpush1.bf16.msra.mxu0 0
        %3437 = vmatprep.subr.bf16.mxu0 0
        %3438 = vmatpush1.bf16.msra.mxu0 0
        %3439 = vmatprep.subr.bf16.mxu0 0
        %3440 = vmatpush1.bf16.msra.mxu0 0
        %3441 = vmatprep.subr.bf16.mxu0 0
        %3442 = vmatpush1.bf16.msra.mxu0 0
        %3443 = vmatprep.subr.bf16.mxu0 0
        %3444 = vmatpush1.bf16.msra.mxu0 0
        %3445 = vmatprep.subr.bf16.mxu0 0
        %3446 = vmatpush1.bf16.msra.mxu0 0
        %3447 = vmatprep.mubr.bf16.mxu0 0
        %3448 = vmatmul.mubr.bf16.gmra.mrb[0].mxu0 %v2485
        %v3449 = vpop.f32.mrb[0].mxu0
        %v3450 = vadd.f32 %v3385, %v3449
        %v3451 = vpop.f32.mrb[0].mxu0
        %v3452 = vpop.f32.mrb[0].mxu0
        %v3453 = vadd.f32 %v3388, %v3452
        %v3454 = vpop.f32.mrb[0].mxu0
        %3455 = vmatprep.mubr.bf16.mxu0 0
        %3456 = vmatmul.mubr.bf16.gmra.mrb[0].mxu0 %v2488
        %v3457 = vpop.f32.mrb[0].mxu0
        %v3458 = vadd.f32 %v3393, %v3457
        %v3459 = vpop.f32.mrb[0].mxu0
        %v3460 = vpop.f32.mrb[0].mxu0
        %v3461 = vadd.f32 %v3396, %v3460
        %v3462 = vpop.f32.mrb[0].mxu0
        %3463 = vmatprep.mubr.bf16.mxu0 0
        %3464 = vmatmul.mubr.bf16.gmra.mrb[0].mxu0 %v2491
        %v3465 = vpop.f32.mrb[0].mxu0
        %v3466 = vadd.f32 %v3401, %v3465
        %v3467 = vpop.f32.mrb[0].mxu0
        %v3468 = vpop.f32.mrb[0].mxu0
        %v3469 = vadd.f32 %v3404, %v3468
        %v3470 = vpop.f32.mrb[0].mxu0
        %3471 = vmatprep.mubr.bf16.mxu0 0
        %3472 = vmatmul.mubr.bf16.gmra.mrb[0].mxu0 %v3202
        %v3473 = vpop.f32.mrb[0].mxu0
        %v3474 = vadd.f32 %v3409, %v3473
        %v3475 = vpop.f32.mrb[0].mxu0
        %v3476 = vpop.f32.mrb[0].mxu0
        %v3477 = vadd.f32 %v3412, %v3476
        %v3478 = vpop.f32.mrb[0].mxu0
        %3479 = vdwg.mxu0
        %v3480 = vadd.f32 %v3141, %v3450
        %v3481 = vadd.f32 %v3142, %v3453
        %v3482 = vadd.f32 %v3143, %v3458
        %v3483 = vadd.f32 %v3144, %v3461
        %v3484 = vadd.f32 %v3145, %v3466
        %v3485 = vadd.f32 %v3146, %v3469
        %v3486 = vadd.f32 %v3147, %v3474
        %v3487 = vadd.f32 %v3148, %v3477
        %v3488 = vsel %vm1968, %v3480, 0.0
        %v3489 = vsel %vm1968, %v3481, 0.0
        %v3490 = vsel %vm1968, %v3482, 0.0
        %v3491 = vsel %vm1968, %v3483, 0.0
        %v3492 = vsel %vm1968, %v3484, 0.0
        %v3493 = vsel %vm1968, %v3485, 0.0
        %v3494 = vsel %vm1968, %v3486, 0.0
        %v3495 = vsel %vm1968, %v3487, 0.0
        %v3496 = vadd.f32 %v3488, %v3489
        %v3497 = vadd.f32 %v3496, %v3490
        %v3498 = vadd.f32 %v3497, %v3491
        %v3499 = vadd.f32 %v3498, %v3492
        %v3500 = vadd.f32 %v3499, %v3493
        %v3501 = vadd.f32 %v3500, %v3494
        %v3502 = vadd.f32 %v3501, %v3495
        %v3503 = vrot.slane %v3502, 4
        %v3504 = vadd.f32 %v3502, %v3503
        %v3505 = vrot.slane %v3504, 2
        %v3506 = vadd.f32 %v3504, %v3505
        %v3507 = vrot.slane %v3506, 1
        %v3508 = vadd.f32 %v3506, %v3507
        %v3509 = vmul.f32 %v3508, %v1990
        %v3510 = vsub.f32 %v3480, %v3509
        %v3511 = vsub.f32 %v3481, %v3509
        %v3512 = vsub.f32 %v3482, %v3509
        %v3513 = vsub.f32 %v3483, %v3509
        %v3514 = vsub.f32 %v3484, %v3509
        %v3515 = vsub.f32 %v3485, %v3509
        %v3516 = vsub.f32 %v3486, %v3509
        %v3517 = vsub.f32 %v3487, %v3509
        %v3518 = vsel %vm1968, %v3510, 0.0
        %v3519 = vsel %vm1968, %v3511, 0.0
        %v3520 = vsel %vm1968, %v3512, 0.0
        %v3521 = vsel %vm1968, %v3513, 0.0
        %v3522 = vsel %vm1968, %v3514, 0.0
        %v3523 = vsel %vm1968, %v3515, 0.0
        %v3524 = vsel %vm1968, %v3516, 0.0
        %v3525 = vsel %vm1968, %v3517, 0.0
        %v3526 = vmul.f32 %v3518, %v3518
        %v3527 = vmul.f32 %v3519, %v3519
        %v3528 = vmul.f32 %v3520, %v3520
        %v3529 = vmul.f32 %v3521, %v3521
        %v3530 = vmul.f32 %v3522, %v3522
        %v3531 = vmul.f32 %v3523, %v3523
        %v3532 = vmul.f32 %v3524, %v3524
        %v3533 = vmul.f32 %v3525, %v3525
        %v3534 = vadd.f32 %v3526, %v3527
        %v3535 = vadd.f32 %v3534, %v3528
        %v3536 = vadd.f32 %v3535, %v3529
        %v3537 = vadd.f32 %v3536, %v3530
        %v3538 = vadd.f32 %v3537, %v3531
        %v3539 = vadd.f32 %v3538, %v3532
        %v3540 = vadd.f32 %v3539, %v3533
        %v3541 = vrot.slane %v3540, 4
        %v3542 = vadd.f32 %v3540, %v3541
        %v3543 = vrot.slane %v3542, 2
        %v3544 = vadd.f32 %v3542, %v3543
        %v3545 = vrot.slane %v3544, 1
        %v3546 = vadd.f32 %v3544, %v3545
        %v3547 = vmul.f32 %v3546, %v1990
        %v3548 = vadd.f32 %v3547, 1e-05
        %v3549 = vrsqrt.pop %v3548
        %v3550 = vmul.f32 %v3510, %v3549
        %v3551 = vmul.f32 %v3511, %v3549
        %v3552 = vmul.f32 %v3512, %v3549
        %v3553 = vmul.f32 %v3513, %v3549
        %v3554 = vmul.f32 %v3514, %v3549
        %v3555 = vmul.f32 %v3515, %v3549
        %v3556 = vmul.f32 %v3516, %v3549
        %v3557 = vmul.f32 %v3517, %v3549
        %vm3558 = vcmp.ge.f32.partialorder %v3550, 0.0
        %vm3559 = vcmp.ge.f32.partialorder %v3551, 0.0
        %vm3560 = vcmp.ge.f32.partialorder %v3552, 0.0
        %vm3561 = vcmp.ge.f32.partialorder %v3553, 0.0
        %vm3562 = vcmp.ge.f32.partialorder %v3554, 0.0
        %vm3563 = vcmp.ge.f32.partialorder %v3555, 0.0
        %vm3564 = vcmp.ge.f32.partialorder %v3556, 0.0
        %vm3565 = vcmp.ge.f32.partialorder %v3557, 0.0
        %v3566 = vmul.f32 %v3550, 0.01
        %v3567 = vmul.f32 %v3551, 0.01
        %v3568 = vmul.f32 %v3552, 0.01
        %v3569 = vmul.f32 %v3553, 0.01
        %v3570 = vmul.f32 %v3554, 0.01
        %v3571 = vmul.f32 %v3555, 0.01
        %v3572 = vmul.f32 %v3556, 0.01
        %v3573 = vmul.f32 %v3557, 0.01
        %v3574 = vsel %vm3558, %v3550, %v3566
        %v3575 = vsel %vm3559, %v3551, %v3567
        %v3576 = vsel %vm3560, %v3552, %v3568
        %v3577 = vsel %vm3561, %v3553, %v3569
        %v3578 = vsel %vm3562, %v3554, %v3570
        %v3579 = vsel %vm3563, %v3555, %v3571
        %v3580 = vsel %vm3564, %v3556, %v3572
        %v3581 = vsel %vm3565, %v3557, %v3573
        %vm3582 = vsmask.f32 3328
        %vm3583 = vsmask.f32 7440
        %vm3584 = vmor %vm3582, %vm3583
        %v3586 = vshrl.u32 %v705, 16
        %v3588 = vrot.slane %v3586, 4
        %v3589 = vshll.u32 %v705, 16
        %v3591 = vrot.slane %v3589, 5
        %v3592 = vor.u32 %v3588, %v3591
        %v3593 = vrot.slane %v3592, 4
        %v3595 = vshll.u32 %v715, 16
        %v3597 = vrot.slane %v3595, 5
        %v3598 = vsel %vm3584, %v3593, %v3597
        %v3600 = vshrl.u32 %v706, 16
        %v3602 = vrot.slane %v3600, 4
        %v3603 = vshll.u32 %v706, 16
        %v3605 = vrot.slane %v3603, 5
        %v3606 = vor.u32 %v3602, %v3605
        %v3607 = vrot.slane %v3606, 4
        %v3609 = vshll.u32 %v716, 16
        %v3611 = vrot.slane %v3609, 5
        %v3612 = vsel %vm3584, %v3607, %v3611
        %v3614 = vshrl.u32 %v707, 16
        %v3616 = vrot.slane %v3614, 4
        %v3617 = vshll.u32 %v707, 16
        %v3619 = vrot.slane %v3617, 5
        %v3620 = vor.u32 %v3616, %v3619
        %v3621 = vrot.slane %v3620, 4
        %v3623 = vshll.u32 %v717, 16
        %v3625 = vrot.slane %v3623, 5
        %v3626 = vsel %vm3584, %v3621, %v3625
        %v3628 = vshrl.u32 %v708, 16
        %v3630 = vrot.slane %v3628, 4
        %v3631 = vshll.u32 %v708, 16
        %v3633 = vrot.slane %v3631, 5
        %v3634 = vor.u32 %v3630, %v3633
        %v3635 = vrot.slane %v3634, 4
        %v3637 = vshll.u32 %v718, 16
        %v3639 = vrot.slane %v3637, 5
        %v3640 = vsel %vm3584, %v3635, %v3639
        %v3642 = vshrl.u32 %v709, 16
        %v3644 = vrot.slane %v3642, 4
        %v3645 = vshll.u32 %v709, 16
        %v3647 = vrot.slane %v3645, 5
        %v3648 = vor.u32 %v3644, %v3647
        %v3649 = vrot.slane %v3648, 4
        %v3651 = vshll.u32 %v719, 16
        %v3653 = vrot.slane %v3651, 5
        %v3654 = vsel %vm3584, %v3649, %v3653
        %v3656 = vshrl.u32 %v710, 16
        %v3658 = vrot.slane %v3656, 4
        %v3659 = vshll.u32 %v710, 16
        %v3661 = vrot.slane %v3659, 5
        %v3662 = vor.u32 %v3658, %v3661
        %v3663 = vrot.slane %v3662, 4
        %v3665 = vshll.u32 %v720, 16
        %v3667 = vrot.slane %v3665, 5
        %v3668 = vsel %vm3584, %v3663, %v3667
        %v3670 = vshrl.u32 %v711, 16
        %v3672 = vrot.slane %v3670, 4
        %v3673 = vshll.u32 %v711, 16
        %v3675 = vrot.slane %v3673, 5
        %v3676 = vor.u32 %v3672, %v3675
        %v3677 = vrot.slane %v3676, 4
        %v3679 = vshll.u32 %v721, 16
        %v3681 = vrot.slane %v3679, 5
        %v3682 = vsel %vm3584, %v3677, %v3681
        %v3684 = vshrl.u32 %v712, 16
        %v3686 = vrot.slane %v3684, 4
        %v3687 = vshll.u32 %v712, 16
        %v3689 = vrot.slane %v3687, 5
        %v3690 = vor.u32 %v3686, %v3689
        %v3691 = vrot.slane %v3690, 4
        %v3693 = vshll.u32 %v722, 16
        %v3695 = vrot.slane %v3693, 5
        %v3696 = vsel %vm3584, %v3691, %v3695
        %v3697 = vld [vmem:[#allocation13] sm:$0xf]
        %v3698 = vld [vmem:[#allocation13 + $0x4] sm:$0xf]
        %v3699 = vld [vmem:[#allocation13 + $0x8] sm:$0xf]
        %v3700 = vld [vmem:[#allocation13 + $0xc] sm:$0xf]
        %v3701 = vld [vmem:[#allocation13 + $0x10] sm:$0xf]
        %v3702 = vld [vmem:[#allocation13 + $0x14] sm:$0xf]
        %v3703 = vld [vmem:[#allocation13 + $0x18] sm:$0xf]
        %v3704 = vld [vmem:[#allocation13 + $0x1c] sm:$0xf]
        %v3705 = vld [vmem:[#allocation13 + $0x20] sm:$0xf]
        %v3706 = vld [vmem:[#allocation13 + $0x24] sm:$0xf]
        %v3707 = vld [vmem:[#allocation13 + $0x28] sm:$0xf]
        %v3708 = vld [vmem:[#allocation13 + $0x2c] sm:$0xf]
        %v3709 = vld [vmem:[#allocation13 + $0x30] sm:$0xf]
        %v3710 = vld [vmem:[#allocation13 + $0x34] sm:$0xf]
        %v3711 = vld [vmem:[#allocation13 + $0x38] sm:$0xf]
        %v3712 = vld [vmem:[#allocation13 + $0x3c] sm:$0xf]
        %v3713 = vld [vmem:[#allocation15] sm:$0x1]
        %v3715 = vlaneseq
        %v3716 = vshrl.u32 %v3715, 7
        %v3717 = vsub.s32 0, %v3716
        %v3718 = vrot.slane %v3713, %v3717
        %v3720 = vunpack.c.l.b16 %v3598
        %v3721 = vunpack.c.l.b16 %v3612
        %v3722 = vunpack.c.l.b16 %v3626
        %v3723 = vunpack.c.l.b16 %v3640
        %v3724 = vunpack.c.l.b16 %v3654
        %v3725 = vunpack.c.l.b16 %v3668
        %v3726 = vunpack.c.l.b16 %v3682
        %v3727 = vunpack.c.l.b16 %v3696
        %v3728 = vpack.c.b16 %v3721, %v3720
        %v3729 = vpack.c.b16 %v3723, %v3722
        %v3730 = vpack.c.b16 %v3725, %v3724
        %v3731 = vpack.c.b16 %v3727, %v3726
        %v3752 = vunpack.c.l.b16 %v3697
        %v3753 = vunpack.c.l.b16 %v3698
        %v3754 = vunpack.c.l.b16 %v3699
        %v3755 = vunpack.c.l.b16 %v3700
        %v3756 = vunpack.c.l.b16 %v3701
        %v3757 = vunpack.c.l.b16 %v3702
        %v3758 = vunpack.c.l.b16 %v3703
        %v3759 = vunpack.c.l.b16 %v3704
        %v3760 = vunpack.c.l.b16 %v3705
        %v3761 = vunpack.c.l.b16 %v3706
        %v3762 = vunpack.c.l.b16 %v3707
        %v3763 = vunpack.c.l.b16 %v3708
        %v3764 = vunpack.c.l.b16 %v3709
        %v3765 = vunpack.c.l.b16 %v3710
        %v3766 = vunpack.c.l.b16 %v3711
        %v3767 = vunpack.c.l.b16 %v3712
        %v3768 = vpack.c.b16 %v3753, %v3752
        %v3769 = vpack.c.b16 %v3755, %v3754
        %v3770 = vpack.c.b16 %v3757, %v3756
        %v3771 = vpack.c.b16 %v3759, %v3758
        %v3772 = vpack.c.b16 %v3761, %v3760
        %v3773 = vpack.c.b16 %v3763, %v3762
        %v3774 = vpack.c.b16 %v3765, %v3764
        %v3775 = vpack.c.b16 %v3767, %v3766
        %3784 = vmatprep.subr.bf16.mxu0 0
        %3785 = vmatpush1.bf16.msra.mxu0 %v3768
        %3786 = vmatprep.subr.bf16.mxu0 0
        %3787 = vmatpush1.bf16.msra.mxu0 %v3769
        %3788 = vmatprep.subr.bf16.mxu0 0
        %3789 = vmatpush1.bf16.msra.mxu0 %v3770
        %3790 = vmatprep.subr.bf16.mxu0 0
        %3791 = vmatpush1.bf16.msra.mxu0 %v3771
        %3792 = vmatprep.subr.bf16.mxu0 0
        %3793 = vmatpush1.bf16.msra.mxu0 %v3772
        %3794 = vmatprep.subr.bf16.mxu0 0
        %3795 = vmatpush1.bf16.msra.mxu0 %v3773
        %3796 = vmatprep.subr.bf16.mxu0 0
        %3797 = vmatpush1.bf16.msra.mxu0 %v3774
        %3798 = vmatprep.subr.bf16.mxu0 0
        %3799 = vmatpush1.bf16.msra.mxu0 %v3775
        %3800 = vmatprep.subr.bf16.mxu0 0
        %3801 = vmatpush1.bf16.msra.mxu0 0
        %3802 = vmatprep.subr.bf16.mxu0 0
        %3803 = vmatpush1.bf16.msra.mxu0 0
        %3804 = vmatprep.subr.bf16.mxu0 0
        %3805 = vmatpush1.bf16.msra.mxu0 0
        %3806 = vmatprep.subr.bf16.mxu0 0
        %3807 = vmatpush1.bf16.msra.mxu0 0
        %3808 = vmatprep.subr.bf16.mxu0 0
        %3809 = vmatpush1.bf16.msra.mxu0 0
        %3810 = vmatprep.subr.bf16.mxu0 0
        %3811 = vmatpush1.bf16.msra.mxu0 0
        %3812 = vmatprep.subr.bf16.mxu0 0
        %3813 = vmatpush1.bf16.msra.mxu0 0
        %3814 = vmatprep.subr.bf16.mxu0 0
        %3815 = vmatpush1.bf16.msra.mxu0 0
        %3816 = vmatprep.mubr.bf16.mxu0 0
        %3817 = vmatmul.mubr.bf16.gmra.mrb[0].mxu0 %v3728
        %v3818 = vpop.f32.mrb[0].mxu0
        %v3819 = vadd.f32 %v3718, %v3818
        %v3820 = vpop.f32.mrb[0].mxu0
        %v3821 = vpop.f32.mrb[0].mxu0
        %v3822 = vadd.f32 %v3718, %v3821
        %v3823 = vpop.f32.mrb[0].mxu0
        %3824 = vmatprep.mubr.bf16.mxu0 0
        %3825 = vmatmul.mubr.bf16.gmra.mrb[0].mxu0 %v3729
        %v3826 = vpop.f32.mrb[0].mxu0
        %v3827 = vadd.f32 %v3718, %v3826
        %v3828 = vpop.f32.mrb[0].mxu0
        %v3829 = vpop.f32.mrb[0].mxu0
        %v3830 = vadd.f32 %v3718, %v3829
        %v3831 = vpop.f32.mrb[0].mxu0
        %3832 = vmatprep.mubr.bf16.mxu0 0
        %3833 = vmatmul.mubr.bf16.gmra.mrb[0].mxu0 %v3730
        %v3834 = vpop.f32.mrb[0].mxu0
        %v3835 = vadd.f32 %v3718, %v3834
        %v3836 = vpop.f32.mrb[0].mxu0
        %v3837 = vpop.f32.mrb[0].mxu0
        %v3838 = vadd.f32 %v3718, %v3837
        %v3839 = vpop.f32.mrb[0].mxu0
        %3840 = vmatprep.mubr.bf16.mxu0 0
        %3841 = vmatmul.mubr.bf16.gmra.mrb[0].mxu0 %v3731
        %v3842 = vpop.f32.mrb[0].mxu0
        %v3843 = vadd.f32 %v3718, %v3842
        %v3844 = vpop.f32.mrb[0].mxu0
        %v3845 = vpop.f32.mrb[0].mxu0
        %v3846 = vadd.f32 %v3718, %v3845
        %v3847 = vpop.f32.mrb[0].mxu0
        %3848 = vdwg.mxu0
        %v3849 = vadd.f32 %v3574, %v3819
        %v3850 = vadd.f32 %v3575, %v3822
        %v3851 = vadd.f32 %v3576, %v3827
        %v3852 = vadd.f32 %v3577, %v3830
        %v3853 = vadd.f32 %v3578, %v3835
        %v3854 = vadd.f32 %v3579, %v3838
        %v3855 = vadd.f32 %v3580, %v3843
        %v3856 = vadd.f32 %v3581, %v3846
        %3857 = vst [vmem:[%s377] sm:$0xff] %v3849
        %3858 = vst [vmem:[%s377 + $0x8] sm:$0xff] %v3850
        %3859 = vst [vmem:[%s377 + $0x10] sm:$0xff] %v3851
        %3860 = vst [vmem:[%s377 + $0x18] sm:$0xff] %v3852
        %3861 = vst [vmem:[%s377 + $0x20] sm:$0xff] %v3853
        %3862 = vst [vmem:[%s377 + $0x28] sm:$0xff] %v3854
        %3863 = vst [vmem:[%s377 + $0x30] sm:$0xff] %v3855
        %3864 = vst [vmem:[%s377 + $0x38] sm:$0xff] %v3856
        %s3865 = sand.u32 %s187, 1
        %s3866 = scalar_lea.sflag [#allocation6], %s3865
        %s3867 = sand.u32 %s187, 1
        %s3868 = smul.addr %s3867, 64
        %s3869 = scalar_lea.vmem [#allocation16], %s3868
        // Predicated region
        $region77: #{nnunet_down_block.1} parent=47 // pred_check
          %p3870 = pneg %p197
        $region78: #{nnunet_down_block.1} parent=47 // pred_check_branch
          %3872 = sbr.rel (%p3870) target = $region80
        $region79: #{nnunet_down_block.1} parent=47 // pred_region
          %s3874 = ssub.s32 1024, 1024
          %3875 = vsyncadd %s3866, %s3874
          %s3876 = smul.addr %s27, 8
          %s3877 = smul.addr %s3876, 128
          %s3878 = scalar_lea.hbm %s7, %s3877
          %s3879 = sshll.u32 %s3869, 4
          %s3880 = int_to_ptr.vmem [resolvable:$true] %s3879
          %3885 = dma.vmem_to_hbm [thread:$0]  %s3880, 1024, %s3878, %s3866, 128, 128, 8
        $region80: #{nnunet_down_block.1} parent=47 // pred_fallthru
          _
      $region48: #{nnunet_down_block.1} parent=5 // pred_fallthru
        _
      %p3886 = scmp.le.s32.totalorder 2, %s22
      // Predicated region
      $region81: #{nnunet_down_block.1} parent=5 // pred_check
        %p3887 = pneg %p3886
      $region82: #{nnunet_down_block.1} parent=5 // pred_check_branch
        %3889 = sbr.rel (%p3887) target = $region84
      $region83: #{nnunet_down_block.1} parent=5 // pred_region
        %s3890 = ssub.s32 %s22, 2
        // Predicated region
        $region85: #{nnunet_down_block.1} parent=83 // pred_check
          %p3891 = pneg %p203
        $region86: #{nnunet_down_block.1} parent=83 // pred_check_branch
          %3893 = sbr.rel (%p3891) target = $region88
        $region87: #{nnunet_down_block.1} parent=83 // pred_region
          %s3894 = sand.u32 %s188, 1
          %s3895 = scalar_lea.sflag [#allocation6], %s3894
          %s3896 = sand.u32 %s188, 1
          %s3897 = smul.addr %s3896, 64
          %s3898 = scalar_lea.vmem [#allocation16], %s3897
          %3899 = dma.done %s3895, 1024
        $region88: #{nnunet_down_block.1} parent=83 // pred_fallthru
          _
      $region84: #{nnunet_down_block.1} parent=5 // pred_fallthru
        _
    $region6: #{nnunet_down_block.1} parent=1 // loop_footer
      %s26 = sadd.s32 1, %s22
    $region7: #{nnunet_down_block.1} parent=1 // loop_footer_branch
      %21 = sbr.rel target = $region3
    $region8: #{nnunet_down_block.1} parent=1 // loop_exit
      _
    %3900 = vsyncpa [#allocation5], 1
    %s3901 = scalar_lea.sflag [#allocation5], 1
    %3902 = vsyncpa %s3901, 1
    %3903 = vsyncpa [#allocation8], 1
    %3904 = vsyncpa [#allocation11], 1
    %3905 = vsyncpa [#allocation14], 1
    %3906 = vsyncpa [#allocation6], 1
    %s3907 = scalar_lea.sflag [#allocation6], 1
    %3908 = vsyncpa %s3907, 1

</llo_original>
